<compile_context>
chip_gen: v7x
topology: tpu7x:2x2x1
jax: 0.10.0
libtpu: 0.0.40
codegen_flags: <defaults>
</compile_context>

<pallas_src>
import jax
import jax.numpy as jnp
from jax.experimental import pallas as pl
from jax.experimental.pallas import tpu as pltpu

IN, IN_PAD = 28 * 28, 896            # 896 = 7 * 128 (lane-aligned contraction dim)
H1, H2, H3 = 512, 512, 256
OUT, OUT_PAD = 10, 128               # pad final output lanes to 128 for dense stores


def mlp4_kernel(x_ref, w1_ref, b1_ref, w2_ref, b2_ref,
                w3_ref, b3_ref, w4_ref, b4_ref, o_ref):
    # fc1 + ReLU : bf16 operands on the MXU, f32 accumulate, bias/ReLU in f32
    h = jnp.dot(x_ref[...], w1_ref[...], preferred_element_type=jnp.float32)
    h = jnp.maximum(h + b1_ref[...], 0.0)
    # fc2 + ReLU
    h = jnp.dot(h.astype(w2_ref.dtype), w2_ref[...], preferred_element_type=jnp.float32)
    h = jnp.maximum(h + b2_ref[...], 0.0)
    # fc3 + ReLU
    h = jnp.dot(h.astype(w3_ref.dtype), w3_ref[...], preferred_element_type=jnp.float32)
    h = jnp.maximum(h + b3_ref[...], 0.0)
    # fc4 (no activation); output columns 10..127 are zero-padded weights/bias
    h = jnp.dot(h.astype(w4_ref.dtype), w4_ref[...], preferred_element_type=jnp.float32)
    o_ref[...] = (h + b4_ref[...]).astype(o_ref.dtype)


def init_mlp4_params(key, dtype=jnp.float32):
    """Deterministic init mimicking torch.nn.Linear default (U(-1/sqrt(fan_in), +))."""
    dims = [(IN, H1), (H1, H2), (H2, H3), (H3, OUT)]
    params = []
    for i, (fan_in, fan_out) in enumerate(dims):
        kw, kb = jax.random.split(jax.random.fold_in(key, i))
        bound = 1.0 / jnp.sqrt(jnp.array(fan_in, dtype=jnp.float32))
        w = jax.random.uniform(kw, (fan_in, fan_out), dtype, -bound, bound)
        b = jax.random.uniform(kb, (1, fan_out), dtype, -bound, bound)
        params.append((w, b))
    return params


def prepare_params(params):
    """f32 (in,out)/(1,out) params -> padded bf16 weights + f32 biases for the kernel."""
    (w1, b1), (w2, b2), (w3, b3), (w4, b4) = params
    w1p = jnp.pad(w1, ((0, IN_PAD - IN), (0, 0))).astype(jnp.bfloat16)
    w4p = jnp.pad(w4, ((0, 0), (0, OUT_PAD - OUT))).astype(jnp.bfloat16)
    b4p = jnp.pad(b4, ((0, 0), (0, OUT_PAD - OUT))).astype(jnp.float32)
    return (w1p, b1.astype(jnp.float32),
            w2.astype(jnp.bfloat16), b2.astype(jnp.float32),
            w3.astype(jnp.bfloat16), b3.astype(jnp.float32),
            w4p, b4p)


def _round_up(n, m):
    return ((n + m - 1) // m) * m


def _run_pallas(xp, kparams, block_b):
    Bp = xp.shape[0]
    w1, b1, w2, b2, w3, b3, w4, b4 = kparams

    def param_spec(arr):
        nd = arr.ndim
        # constant index_map -> parameter block is the same every step; Pallas keeps it
        # resident in VMEM instead of re-fetching it per grid step.
        return pl.BlockSpec(arr.shape, lambda i, _nd=nd: (0,) * _nd)

    grid = (Bp // block_b,)
    return pl.pallas_call(
        mlp4_kernel,
        out_shape=jax.ShapeDtypeStruct((Bp, OUT_PAD), jnp.float32),
        grid_spec=pltpu.PrefetchScalarGridSpec(
            num_scalar_prefetch=0,
            grid=grid,
            in_specs=[
                pl.BlockSpec((block_b, IN_PAD), lambda i: (i, 0)),   # batch-tiled input
                param_spec(w1), param_spec(b1),
                param_spec(w2), param_spec(b2),
                param_spec(w3), param_spec(b3),
                param_spec(w4), param_spec(b4),
            ],
            out_specs=pl.BlockSpec((block_b, OUT_PAD), lambda i: (i, 0)),
        ),
        compiler_params=pltpu.CompilerParams(
            dimension_semantics=("parallel",)),
    )(xp, w1, b1, w2, b2, w3, b3, w4, b4)


def mlp4_forward(x, kernel_params, *, block_b=128):
    """x: (B, 1, 28, 28) or (B, 784) float. Returns (B, 10) float32."""
    B = x.shape[0]
    x2 = x.reshape(B, IN)                                            # torch: x.view(-1, 784)

    # batch tile: multiple of 8, at most block_b, never wildly larger than B.
    bb = min(block_b, _round_up(B, 8))
    Bp = _round_up(B, bb)                                            # pad batch -> full tiles

    xp = jnp.pad(x2, ((0, Bp - B), (0, IN_PAD - IN))).astype(jnp.bfloat16)
    out = _run_pallas(xp, kernel_params, bb)
    return out[:B, :OUT]


def _ref_forward(x, kparams):
    """Plain-JAX reference with the same bf16-operand / f32-accumulate math."""
    b = x.shape[0]
    h = jnp.pad(x.reshape(b, IN), ((0, 0), (0, IN_PAD - IN))).astype(jnp.bfloat16)
    w1, b1, w2, b2, w3, b3, w4, b4 = kparams
    h = jnp.maximum(jnp.dot(h, w1, preferred_element_type=jnp.float32) + b1, 0.0)
    h = jnp.maximum(jnp.dot(h.astype(jnp.bfloat16), w2,
                            preferred_element_type=jnp.float32) + b2, 0.0)
    h = jnp.maximum(jnp.dot(h.astype(jnp.bfloat16), w3,
                            preferred_element_type=jnp.float32) + b3, 0.0)
    h = jnp.dot(h.astype(jnp.bfloat16), w4,
                preferred_element_type=jnp.float32) + b4
    return h[:, :OUT]


if __name__ == "__main__":
    key = jax.random.PRNGKey(0)
    k_params, k_x = jax.random.split(key)

    params = init_mlp4_params(k_params)
    kparams = prepare_params(params)

    # small deterministic batch (single full tile)
    x = jax.random.normal(k_x, (32, 1, 28, 28), dtype=jnp.float32)
    y = jax.block_until_ready(mlp4_forward(x, kparams))
    assert y.shape == (32, OUT)
    assert jnp.allclose(y, _ref_forward(x, kparams), atol=1e-2, rtol=1e-2), \
        "mismatch vs reference"

    # ragged batch (exercises batch padding + slicing back)
    x_small = jax.random.normal(jax.random.fold_in(k_x, 1), (12, 1, 28, 28), jnp.float32)
    y_small = jax.block_until_ready(mlp4_forward(x_small, kparams))
    assert y_small.shape == (12, OUT)
    assert jnp.allclose(y_small, _ref_forward(x_small, kparams), atol=1e-2, rtol=1e-2), \
        "mismatch vs reference (ragged batch)"

    print("KERNEL_OK")
</pallas_src>

<mosaic_0001>
module attributes {stable_mosaic.version = 11 : i64} {
  func.func @mlp4_kernel(%arg0: i32, %arg1: memref<32x896xbf16, #tpu.memory_space<vmem>>, %arg2: memref<896x512xbf16, #tpu.memory_space<vmem>>, %arg3: memref<1x512xf32, #tpu.memory_space<vmem>>, %arg4: memref<512x512xbf16, #tpu.memory_space<vmem>>, %arg5: memref<1x512xf32, #tpu.memory_space<vmem>>, %arg6: memref<512x256xbf16, #tpu.memory_space<vmem>>, %arg7: memref<1x256xf32, #tpu.memory_space<vmem>>, %arg8: memref<256x128xbf16, #tpu.memory_space<vmem>>, %arg9: memref<1x128xf32, #tpu.memory_space<vmem>>, %arg10: memref<32x128xf32, #tpu.memory_space<vmem>>) attributes {dimension_semantics = [#tpu.dimension_semantics<parallel>], iteration_bounds = array<i64: 1>, scalar_prefetch = 0 : i64, scratch_operands = 0 : i64, tpu.core_type = #tpu.core_type<tc>, window_params = [{transform_indices = @transform_0, window_bounds = array<i64: 32, 896>}, {pipeline_mode = #tpu.pipeline_mode<synchronous>, transform_indices = @transform_1, window_bounds = array<i64: 896, 512>}, {pipeline_mode = #tpu.pipeline_mode<synchronous>, transform_indices = @transform_2, window_bounds = array<i64: 1, 512>}, {pipeline_mode = #tpu.pipeline_mode<synchronous>, transform_indices = @transform_3, window_bounds = array<i64: 512, 512>}, {pipeline_mode = #tpu.pipeline_mode<synchronous>, transform_indices = @transform_4, window_bounds = array<i64: 1, 512>}, {pipeline_mode = #tpu.pipeline_mode<synchronous>, transform_indices = @transform_5, window_bounds = array<i64: 512, 256>}, {pipeline_mode = #tpu.pipeline_mode<synchronous>, transform_indices = @transform_6, window_bounds = array<i64: 1, 256>}, {pipeline_mode = #tpu.pipeline_mode<synchronous>, transform_indices = @transform_7, window_bounds = array<i64: 256, 128>}, {pipeline_mode = #tpu.pipeline_mode<synchronous>, transform_indices = @transform_8, window_bounds = array<i64: 1, 128>}, {transform_indices = @transform_9, window_bounds = array<i64: 32, 128>}]} {
    %c0 = arith.constant 0 : index
    %c0_0 = arith.constant 0 : index
    %0 = vector.load %arg1[%c0, %c0_0] : memref<32x896xbf16, #tpu.memory_space<vmem>>, vector<32x896xbf16>
    %c0_1 = arith.constant 0 : index
    %c0_2 = arith.constant 0 : index
    %1 = vector.load %arg2[%c0_1, %c0_2] : memref<896x512xbf16, #tpu.memory_space<vmem>>, vector<896x512xbf16>
    %cst = arith.constant dense<0.000000e+00> : vector<32x512xf32>
    %2 = tpu.matmul %0, %1, %cst {dimension_numbers = #tpu.dot_dimension_numbers<[1], [0], [0], [1], [0, 0, 1, 1], [], []>} : vector<32x896xbf16>, vector<896x512xbf16>, vector<32x512xf32> -> vector<32x512xf32>
    %c0_3 = arith.constant 0 : index
    %c0_4 = arith.constant 0 : index
    %3 = vector.load %arg3[%c0_3, %c0_4] : memref<1x512xf32, #tpu.memory_space<vmem>>, vector<1x512xf32>
    %4 = vector.broadcast %3 : vector<1x512xf32> to vector<32x512xf32>
    %5 = arith.addf %2, %4 : vector<32x512xf32>
    %cst_5 = arith.constant 0.000000e+00 : f32
    %6 = vector.broadcast %cst_5 : f32 to vector<32x512xf32>
    %7 = arith.maximumf %5, %6 : vector<32x512xf32>
    %8 = arith.truncf %7 : vector<32x512xf32> to vector<32x512xbf16>
    %c0_6 = arith.constant 0 : index
    %c0_7 = arith.constant 0 : index
    %9 = vector.load %arg4[%c0_6, %c0_7] : memref<512x512xbf16, #tpu.memory_space<vmem>>, vector<512x512xbf16>
    %cst_8 = arith.constant dense<0.000000e+00> : vector<32x512xf32>
    %10 = tpu.matmul %8, %9, %cst_8 {dimension_numbers = #tpu.dot_dimension_numbers<[1], [0], [0], [1], [0, 0, 1, 1], [], []>} : vector<32x512xbf16>, vector<512x512xbf16>, vector<32x512xf32> -> vector<32x512xf32>
    %c0_9 = arith.constant 0 : index
    %c0_10 = arith.constant 0 : index
    %11 = vector.load %arg5[%c0_9, %c0_10] : memref<1x512xf32, #tpu.memory_space<vmem>>, vector<1x512xf32>
    %12 = vector.broadcast %11 : vector<1x512xf32> to vector<32x512xf32>
    %13 = arith.addf %10, %12 : vector<32x512xf32>
    %cst_11 = arith.constant 0.000000e+00 : f32
    %14 = vector.broadcast %cst_11 : f32 to vector<32x512xf32>
    %15 = arith.maximumf %13, %14 : vector<32x512xf32>
    %16 = arith.truncf %15 : vector<32x512xf32> to vector<32x512xbf16>
    %c0_12 = arith.constant 0 : index
    %c0_13 = arith.constant 0 : index
    %17 = vector.load %arg6[%c0_12, %c0_13] : memref<512x256xbf16, #tpu.memory_space<vmem>>, vector<512x256xbf16>
    %cst_14 = arith.constant dense<0.000000e+00> : vector<32x256xf32>
    %18 = tpu.matmul %16, %17, %cst_14 {dimension_numbers = #tpu.dot_dimension_numbers<[1], [0], [0], [1], [0, 0, 1, 1], [], []>} : vector<32x512xbf16>, vector<512x256xbf16>, vector<32x256xf32> -> vector<32x256xf32>
    %c0_15 = arith.constant 0 : index
    %c0_16 = arith.constant 0 : index
    %19 = vector.load %arg7[%c0_15, %c0_16] : memref<1x256xf32, #tpu.memory_space<vmem>>, vector<1x256xf32>
    %20 = vector.broadcast %19 : vector<1x256xf32> to vector<32x256xf32>
    %21 = arith.addf %18, %20 : vector<32x256xf32>
    %cst_17 = arith.constant 0.000000e+00 : f32
    %22 = vector.broadcast %cst_17 : f32 to vector<32x256xf32>
    %23 = arith.maximumf %21, %22 : vector<32x256xf32>
    %24 = arith.truncf %23 : vector<32x256xf32> to vector<32x256xbf16>
    %c0_18 = arith.constant 0 : index
    %c0_19 = arith.constant 0 : index
    %25 = vector.load %arg8[%c0_18, %c0_19] : memref<256x128xbf16, #tpu.memory_space<vmem>>, vector<256x128xbf16>
    %cst_20 = arith.constant dense<0.000000e+00> : vector<32x128xf32>
    %26 = tpu.matmul %24, %25, %cst_20 {dimension_numbers = #tpu.dot_dimension_numbers<[1], [0], [0], [1], [0, 0, 1, 1], [], []>} : vector<32x256xbf16>, vector<256x128xbf16>, vector<32x128xf32> -> vector<32x128xf32>
    %c0_21 = arith.constant 0 : index
    %c0_22 = arith.constant 0 : index
    %27 = vector.load %arg9[%c0_21, %c0_22] : memref<1x128xf32, #tpu.memory_space<vmem>>, vector<1x128xf32>
    %28 = vector.broadcast %27 : vector<1x128xf32> to vector<32x128xf32>
    %29 = arith.addf %26, %28 : vector<32x128xf32>
    %c0_23 = arith.constant 0 : index
    %c0_24 = arith.constant 0 : index
    %30 = vector.load %arg10[%c0_23, %c0_24] : memref<32x128xf32, #tpu.memory_space<vmem>>, vector<32x128xf32>
    tpu.vector_store %arg10[%c0_23, %c0_24], %29 {strides = array<i32>} : memref<32x128xf32, #tpu.memory_space<vmem>>, vector<32x128xf32>,
    return
  }
  func.func @transform_0(%arg0: i32) -> (i32, i32) {
    %c0_i32 = arith.constant 0 : i32
    %c0_i32_0 = arith.constant 0 : i32
    return %arg0, %c0_i32 : i32, i32
  }
  func.func @transform_1(%arg0: i32) -> (i32, i32) {
    %c0_i32 = arith.constant 0 : i32
    %c0_i32_0 = arith.constant 0 : i32
    %c0_i32_1 = arith.constant 0 : i32
    return %c0_i32, %c0_i32_0 : i32, i32
  }
  func.func @transform_2(%arg0: i32) -> (i32, i32) {
    %c0_i32 = arith.constant 0 : i32
    %c0_i32_0 = arith.constant 0 : i32
    %c0_i32_1 = arith.constant 0 : i32
    return %c0_i32, %c0_i32_0 : i32, i32
  }
  func.func @transform_3(%arg0: i32) -> (i32, i32) {
    %c0_i32 = arith.constant 0 : i32
    %c0_i32_0 = arith.constant 0 : i32
    %c0_i32_1 = arith.constant 0 : i32
    return %c0_i32, %c0_i32_0 : i32, i32
  }
  func.func @transform_4(%arg0: i32) -> (i32, i32) {
    %c0_i32 = arith.constant 0 : i32
    %c0_i32_0 = arith.constant 0 : i32
    %c0_i32_1 = arith.constant 0 : i32
    return %c0_i32, %c0_i32_0 : i32, i32
  }
  func.func @transform_5(%arg0: i32) -> (i32, i32) {
    %c0_i32 = arith.constant 0 : i32
    %c0_i32_0 = arith.constant 0 : i32
    %c0_i32_1 = arith.constant 0 : i32
    return %c0_i32, %c0_i32_0 : i32, i32
  }
  func.func @transform_6(%arg0: i32) -> (i32, i32) {
    %c0_i32 = arith.constant 0 : i32
    %c0_i32_0 = arith.constant 0 : i32
    %c0_i32_1 = arith.constant 0 : i32
    return %c0_i32, %c0_i32_0 : i32, i32
  }
  func.func @transform_7(%arg0: i32) -> (i32, i32) {
    %c0_i32 = arith.constant 0 : i32
    %c0_i32_0 = arith.constant 0 : i32
    %c0_i32_1 = arith.constant 0 : i32
    return %c0_i32, %c0_i32_0 : i32, i32
  }
  func.func @transform_8(%arg0: i32) -> (i32, i32) {
    %c0_i32 = arith.constant 0 : i32
    %c0_i32_0 = arith.constant 0 : i32
    %c0_i32_1 = arith.constant 0 : i32
    return %c0_i32, %c0_i32_0 : i32, i32
  }
  func.func @transform_9(%arg0: i32) -> (i32, i32) {
    %c0_i32 = arith.constant 0 : i32
    %c0_i32_0 = arith.constant 0 : i32
    return %arg0, %c0_i32 : i32, i32
  }
}

</mosaic_0001>

<llo_original>
// kernel: tpu_custom_call.1
$region0: #{tpu_custom_call.1}
  #allocation0 [shape = 'u32[]', space=smem, size = 0x4, offset = 0x4, fixed_abs, tag = 'smem constant byte address 0x4 - core index']
  #allocation1 [shape = 'u32[144,128]{1,0:T(1,128)}', space=vmem, size = 0x12000, scoped, tag = 'internal scratch']
  %s0 = inlined_call_operand.hbm [shape: bf16[32,896], index: 0, kind: input, shape index: {}]
  %s1 = inlined_call_operand.hbm [shape: bf16[896,512], index: 1, kind: input, shape index: {}]
  %s2 = inlined_call_operand.vmem [shape: f32[1,512], index: 2, kind: input, shape index: {}]
  %s3 = inlined_call_operand.hbm [shape: bf16[512,512], index: 3, kind: input, shape index: {}]
  %s4 = inlined_call_operand.vmem [shape: f32[1,512], index: 4, kind: input, shape index: {}]
  %s5 = inlined_call_operand.hbm [shape: bf16[512,256], index: 5, kind: input, shape index: {}]
  %s6 = inlined_call_operand.vmem [shape: f32[1,256], index: 6, kind: input, shape index: {}]
  %s7 = inlined_call_operand.hbm [shape: bf16[256,128], index: 7, kind: input, shape index: {}]
  %s8 = inlined_call_operand.vmem [shape: f32[1,128], index: 8, kind: input, shape index: {}]
  %s9 = inlined_call_operand.hbm [shape: f32[32,128], index: 9, kind: output, shape index: {}]
  %s10 = sld [smem:[#allocation0]]
  $region66: #{tpu_custom_call.1} parent=0
    _
  %s12 = ssub.s32 1, %s10
  %s13 = scalar_select 0, %s12, %s10
  $region1: #{tpu_custom_call.1} parent=0
    #allocation2 [shape = 'u8[57344]{0}', space=vmem, size = 0xe000, scoped, tag = 'input window, operand 0, single buffered']
    #allocation3 [shape = 's32[1]{0}', space=sflag, size = 0x4, scoped, tag = 'scoped memory for tpu_custom_call.1']
    #allocation4 [shape = 's32[1]{0}', space=sflag, size = 0x4, scoped, tag = 'scoped memory for tpu_custom_call.1']
    #allocation5 [shape = 'u8[917504]{0}', space=vmem, size = 0xe0000, scoped, tag = 'input window, operand 1, single buffered']
    #allocation6 [shape = 's32[1]{0}', space=sflag, size = 0x4, scoped, tag = 'scoped memory for tpu_custom_call.1']
    #allocation7 [shape = 'u8[524288]{0}', space=vmem, size = 0x80000, scoped, tag = 'input window, operand 3, single buffered']
    #allocation8 [shape = 'u8[262144]{0}', space=vmem, size = 0x40000, scoped, tag = 'input window, operand 5, single buffered']
    #allocation9 [shape = 's32[1]{0}', space=sflag, size = 0x4, scoped, tag = 'scoped memory for tpu_custom_call.1']
    #allocation10 [shape = 'u8[65536]{0}', space=vmem, size = 0x10000, scoped, tag = 'input window, operand 7, single buffered']
    #allocation11 [shape = 'u8[16384]{0}', space=vmem, size = 0x4000, scoped, tag = 'output window, operand 0, single buffered']
    %14 = vsyncpa [#allocation3], 0
    %15 = vsyncpa [#allocation6], 0
    %16 = vsyncpa [#allocation9], 0
    %17 = vsyncpa [#allocation4], 0
    // Predicated region
    $region2: #{tpu_custom_call.1} parent=1 // pred_check
      _
    $region3: #{tpu_custom_call.1} parent=1 // pred_check_branch
      %19 = sbr.rel (0) target = $region5
    $region4: #{tpu_custom_call.1} parent=1 // pred_region
      %s21 = ssub.s32 1792, 1792
      %22 = vsyncadd [#allocation3], %s21
      %s23 = sshll.u32 [#allocation2], 4
      %s24 = int_to_ptr.vmem [resolvable:$true] %s23
      %29 = dma.hbm_to_vmem [thread:$0]  %s0, 1792, %s24, [#allocation3], 448, 448, 28
    $region5: #{tpu_custom_call.1} parent=1 // pred_fallthru
      _
    // Predicated region
    $region6: #{tpu_custom_call.1} parent=1 // pred_check
      _
    $region7: #{tpu_custom_call.1} parent=1 // pred_check_branch
      %31 = sbr.rel (0) target = $region9
    $region8: #{tpu_custom_call.1} parent=1 // pred_region
      %s33 = ssub.s32 28672, 28672
      %34 = vsyncadd [#allocation6], %s33
      %s35 = sshll.u32 [#allocation5], 4
      %s36 = int_to_ptr.vmem [resolvable:$true] %s35
      %41 = dma.hbm_to_vmem [thread:$0]  %s1, 28672, %s36, [#allocation6], 256, 256, 16
    $region9: #{tpu_custom_call.1} parent=1 // pred_fallthru
      _
    // Predicated region
    $region10: #{tpu_custom_call.1} parent=1 // pred_check
      _
    $region11: #{tpu_custom_call.1} parent=1 // pred_check_branch
      %43 = sbr.rel (0) target = $region13
    $region12: #{tpu_custom_call.1} parent=1 // pred_region
      _
    $region13: #{tpu_custom_call.1} parent=1 // pred_fallthru
      _
    // Predicated region
    $region14: #{tpu_custom_call.1} parent=1 // pred_check
      _
    $region15: #{tpu_custom_call.1} parent=1 // pred_check_branch
      %45 = sbr.rel (0) target = $region17
    $region16: #{tpu_custom_call.1} parent=1 // pred_region
      %s47 = ssub.s32 16384, 16384
      %48 = vsyncadd [#allocation6], %s47
      %s49 = sshll.u32 [#allocation7], 4
      %s50 = int_to_ptr.vmem [resolvable:$true] %s49
      %55 = dma.hbm_to_vmem [thread:$0]  %s3, 16384, %s50, [#allocation6], 256, 256, 16
    $region17: #{tpu_custom_call.1} parent=1 // pred_fallthru
      _
    // Predicated region
    $region18: #{tpu_custom_call.1} parent=1 // pred_check
      _
    $region19: #{tpu_custom_call.1} parent=1 // pred_check_branch
      %57 = sbr.rel (0) target = $region21
    $region20: #{tpu_custom_call.1} parent=1 // pred_region
      _
    $region21: #{tpu_custom_call.1} parent=1 // pred_fallthru
      _
    // Predicated region
    $region22: #{tpu_custom_call.1} parent=1 // pred_check
      _
    $region23: #{tpu_custom_call.1} parent=1 // pred_check_branch
      %59 = sbr.rel (0) target = $region25
    $region24: #{tpu_custom_call.1} parent=1 // pred_region
      %s61 = ssub.s32 8192, 8192
      %62 = vsyncadd [#allocation9], %s61
      %s63 = sshll.u32 [#allocation8], 4
      %s64 = int_to_ptr.vmem [resolvable:$true] %s63
      %69 = dma.hbm_to_vmem [thread:$0]  %s5, 8192, %s64, [#allocation9], 128, 128, 8
    $region25: #{tpu_custom_call.1} parent=1 // pred_fallthru
      _
    // Predicated region
    $region26: #{tpu_custom_call.1} parent=1 // pred_check
      _
    $region27: #{tpu_custom_call.1} parent=1 // pred_check_branch
      %71 = sbr.rel (0) target = $region29
    $region28: #{tpu_custom_call.1} parent=1 // pred_region
      _
    $region29: #{tpu_custom_call.1} parent=1 // pred_fallthru
      _
    // Predicated region
    $region30: #{tpu_custom_call.1} parent=1 // pred_check
      _
    $region31: #{tpu_custom_call.1} parent=1 // pred_check_branch
      %73 = sbr.rel (0) target = $region33
    $region32: #{tpu_custom_call.1} parent=1 // pred_region
      %s75 = ssub.s32 2048, 2048
      %76 = vsyncadd [#allocation9], %s75
      %s77 = sshll.u32 [#allocation10], 4
      %s78 = int_to_ptr.vmem [resolvable:$true] %s77
      %83 = dma.hbm_to_vmem [thread:$0]  %s7, 2048, %s78, [#allocation9], 64, 64, 4
    $region33: #{tpu_custom_call.1} parent=1 // pred_fallthru
      _
    // Predicated region
    $region34: #{tpu_custom_call.1} parent=1 // pred_check
      _
    $region35: #{tpu_custom_call.1} parent=1 // pred_check_branch
      %85 = sbr.rel (0) target = $region37
    $region36: #{tpu_custom_call.1} parent=1 // pred_region
      _
    $region37: #{tpu_custom_call.1} parent=1 // pred_fallthru
      _
    // Predicated region
    $region38: #{tpu_custom_call.1} parent=1 // pred_check
      _
    $region39: #{tpu_custom_call.1} parent=1 // pred_check_branch
      %87 = sbr.rel (0) target = $region41
    $region40: #{tpu_custom_call.1} parent=1 // pred_region
      %88 = dma.done [#allocation3], 1792
    $region41: #{tpu_custom_call.1} parent=1 // pred_fallthru
      _
    // Predicated region
    $region42: #{tpu_custom_call.1} parent=1 // pred_check
      _
    $region43: #{tpu_custom_call.1} parent=1 // pred_check_branch
      %90 = sbr.rel (0) target = $region45
    $region44: #{tpu_custom_call.1} parent=1 // pred_region
      %91 = dma.done [#allocation6], 28672
    $region45: #{tpu_custom_call.1} parent=1 // pred_fallthru
      _
    // Predicated region
    $region46: #{tpu_custom_call.1} parent=1 // pred_check
      _
    $region47: #{tpu_custom_call.1} parent=1 // pred_check_branch
      %93 = sbr.rel (0) target = $region49
    $region48: #{tpu_custom_call.1} parent=1 // pred_region
      %94 = dma.done [#allocation6], 16384
    $region49: #{tpu_custom_call.1} parent=1 // pred_fallthru
      _
    // Predicated region
    $region50: #{tpu_custom_call.1} parent=1 // pred_check
      _
    $region51: #{tpu_custom_call.1} parent=1 // pred_check_branch
      %96 = sbr.rel (0) target = $region53
    $region52: #{tpu_custom_call.1} parent=1 // pred_region
      %97 = dma.done [#allocation9], 8192
    $region53: #{tpu_custom_call.1} parent=1 // pred_fallthru
      _
    // Predicated region
    $region54: #{tpu_custom_call.1} parent=1 // pred_check
      _
    $region55: #{tpu_custom_call.1} parent=1 // pred_check_branch
      %99 = sbr.rel (0) target = $region57
    $region56: #{tpu_custom_call.1} parent=1 // pred_region
      %100 = dma.done [#allocation9], 2048
    $region57: #{tpu_custom_call.1} parent=1 // pred_fallthru
      _
    %v102 = vld [vmem:[#allocation2] sm:$0xff]
    %v103 = vld [vmem:[#allocation2 + $0x8] sm:$0xff]
    %v104 = vld [vmem:[#allocation2 + $0x10] sm:$0xff]
    %v105 = vld [vmem:[#allocation2 + $0x18] sm:$0xf]
    %v106 = vld [vmem:[#allocation2 + $0x1c] sm:$0xff]
    %v107 = vld [vmem:[#allocation2 + $0x24] sm:$0xff]
    %v108 = vld [vmem:[#allocation2 + $0x2c] sm:$0xff]
    %v109 = vld [vmem:[#allocation2 + $0x34] sm:$0xf]
    %v110 = vld [vmem:[#allocation2 + $0x38] sm:$0xff]
    %v111 = vld [vmem:[#allocation2 + $0x40] sm:$0xff]
    %v112 = vld [vmem:[#allocation2 + $0x48] sm:$0xff]
    %v113 = vld [vmem:[#allocation2 + $0x50] sm:$0xf]
    %v114 = vld [vmem:[#allocation2 + $0x54] sm:$0xff]
    %v115 = vld [vmem:[#allocation2 + $0x5c] sm:$0xff]
    %v116 = vld [vmem:[#allocation2 + $0x64] sm:$0xff]
    %v117 = vld [vmem:[#allocation2 + $0x6c] sm:$0xf]
    %v118 = vld [vmem:[#allocation5] sm:$0xff]
    %v119 = vld [vmem:[#allocation5 + $0x8] sm:$0xff]
    %v120 = vld [vmem:[#allocation5 + $0x10] sm:$0xff]
    %v121 = vld [vmem:[#allocation5 + $0x18] sm:$0xff]
    %v122 = vld [vmem:[#allocation5 + $0x20] sm:$0xff]
    %v123 = vld [vmem:[#allocation5 + $0x28] sm:$0xff]
    %v124 = vld [vmem:[#allocation5 + $0x30] sm:$0xff]
    %v125 = vld [vmem:[#allocation5 + $0x38] sm:$0xff]
    %v126 = vld [vmem:[#allocation5 + $0x40] sm:$0xff]
    %v127 = vld [vmem:[#allocation5 + $0x48] sm:$0xff]
    %v128 = vld [vmem:[#allocation5 + $0x50] sm:$0xff]
    %v129 = vld [vmem:[#allocation5 + $0x58] sm:$0xff]
    %v130 = vld [vmem:[#allocation5 + $0x60] sm:$0xff]
    %v131 = vld [vmem:[#allocation5 + $0x68] sm:$0xff]
    %v132 = vld [vmem:[#allocation5 + $0x70] sm:$0xff]
    %v133 = vld [vmem:[#allocation5 + $0x78] sm:$0xff]
    %v134 = vld [vmem:[#allocation5 + $0x80] sm:$0xff]
    %v135 = vld [vmem:[#allocation5 + $0x88] sm:$0xff]
    %v136 = vld [vmem:[#allocation5 + $0x90] sm:$0xff]
    %v137 = vld [vmem:[#allocation5 + $0x98] sm:$0xff]
    %v138 = vld [vmem:[#allocation5 + $0xa0] sm:$0xff]
    %v139 = vld [vmem:[#allocation5 + $0xa8] sm:$0xff]
    %v140 = vld [vmem:[#allocation5 + $0xb0] sm:$0xff]
    %v141 = vld [vmem:[#allocation5 + $0xb8] sm:$0xff]
    %v142 = vld [vmem:[#allocation5 + $0xc0] sm:$0xff]
    %v143 = vld [vmem:[#allocation5 + $0xc8] sm:$0xff]
    %v144 = vld [vmem:[#allocation5 + $0xd0] sm:$0xff]
    %v145 = vld [vmem:[#allocation5 + $0xd8] sm:$0xff]
    %v146 = vld [vmem:[#allocation5 + $0xe0] sm:$0xff]
    %v147 = vld [vmem:[#allocation5 + $0xe8] sm:$0xff]
    %v148 = vld [vmem:[#allocation5 + $0xf0] sm:$0xff]
    %v149 = vld [vmem:[#allocation5 + $0xf8] sm:$0xff]
    %v150 = vld [vmem:[#allocation5 + $0x100] sm:$0xff]
    %v151 = vld [vmem:[#allocation5 + $0x108] sm:$0xff]
    %v152 = vld [vmem:[#allocation5 + $0x110] sm:$0xff]
    %v153 = vld [vmem:[#allocation5 + $0x118] sm:$0xff]
    %v154 = vld [vmem:[#allocation5 + $0x120] sm:$0xff]
    %v155 = vld [vmem:[#allocation5 + $0x128] sm:$0xff]
    %v156 = vld [vmem:[#allocation5 + $0x130] sm:$0xff]
    %v157 = vld [vmem:[#allocation5 + $0x138] sm:$0xff]
    %v158 = vld [vmem:[#allocation5 + $0x140] sm:$0xff]
    %v159 = vld [vmem:[#allocation5 + $0x148] sm:$0xff]
    %v160 = vld [vmem:[#allocation5 + $0x150] sm:$0xff]
    %v161 = vld [vmem:[#allocation5 + $0x158] sm:$0xff]
    %v162 = vld [vmem:[#allocation5 + $0x160] sm:$0xff]
    %v163 = vld [vmem:[#allocation5 + $0x168] sm:$0xff]
    %v164 = vld [vmem:[#allocation5 + $0x170] sm:$0xff]
    %v165 = vld [vmem:[#allocation5 + $0x178] sm:$0xff]
    %v166 = vld [vmem:[#allocation5 + $0x180] sm:$0xff]
    %v167 = vld [vmem:[#allocation5 + $0x188] sm:$0xff]
    %v168 = vld [vmem:[#allocation5 + $0x190] sm:$0xff]
    %v169 = vld [vmem:[#allocation5 + $0x198] sm:$0xff]
    %v170 = vld [vmem:[#allocation5 + $0x1a0] sm:$0xff]
    %v171 = vld [vmem:[#allocation5 + $0x1a8] sm:$0xff]
    %v172 = vld [vmem:[#allocation5 + $0x1b0] sm:$0xff]
    %v173 = vld [vmem:[#allocation5 + $0x1b8] sm:$0xff]
    %v174 = vld [vmem:[#allocation5 + $0x1c0] sm:$0xff]
    %v175 = vld [vmem:[#allocation5 + $0x1c8] sm:$0xff]
    %v176 = vld [vmem:[#allocation5 + $0x1d0] sm:$0xff]
    %v177 = vld [vmem:[#allocation5 + $0x1d8] sm:$0xff]
    %v178 = vld [vmem:[#allocation5 + $0x1e0] sm:$0xff]
    %v179 = vld [vmem:[#allocation5 + $0x1e8] sm:$0xff]
    %v180 = vld [vmem:[#allocation5 + $0x1f0] sm:$0xff]
    %v181 = vld [vmem:[#allocation5 + $0x1f8] sm:$0xff]
    %v182 = vld [vmem:[#allocation5 + $0x200] sm:$0xff]
    %v183 = vld [vmem:[#allocation5 + $0x208] sm:$0xff]
    %v184 = vld [vmem:[#allocation5 + $0x210] sm:$0xff]
    %v185 = vld [vmem:[#allocation5 + $0x218] sm:$0xff]
    %v186 = vld [vmem:[#allocation5 + $0x220] sm:$0xff]
    %v187 = vld [vmem:[#allocation5 + $0x228] sm:$0xff]
    %v188 = vld [vmem:[#allocation5 + $0x230] sm:$0xff]
    %v189 = vld [vmem:[#allocation5 + $0x238] sm:$0xff]
    %v190 = vld [vmem:[#allocation5 + $0x240] sm:$0xff]
    %v191 = vld [vmem:[#allocation5 + $0x248] sm:$0xff]
    %v192 = vld [vmem:[#allocation5 + $0x250] sm:$0xff]
    %v193 = vld [vmem:[#allocation5 + $0x258] sm:$0xff]
    %v194 = vld [vmem:[#allocation5 + $0x260] sm:$0xff]
    %v195 = vld [vmem:[#allocation5 + $0x268] sm:$0xff]
    %v196 = vld [vmem:[#allocation5 + $0x270] sm:$0xff]
    %v197 = vld [vmem:[#allocation5 + $0x278] sm:$0xff]
    %v198 = vld [vmem:[#allocation5 + $0x280] sm:$0xff]
    %v199 = vld [vmem:[#allocation5 + $0x288] sm:$0xff]
    %v200 = vld [vmem:[#allocation5 + $0x290] sm:$0xff]
    %v201 = vld [vmem:[#allocation5 + $0x298] sm:$0xff]
    %v202 = vld [vmem:[#allocation5 + $0x2a0] sm:$0xff]
    %v203 = vld [vmem:[#allocation5 + $0x2a8] sm:$0xff]
    %v204 = vld [vmem:[#allocation5 + $0x2b0] sm:$0xff]
    %v205 = vld [vmem:[#allocation5 + $0x2b8] sm:$0xff]
    %v206 = vld [vmem:[#allocation5 + $0x2c0] sm:$0xff]
    %v207 = vld [vmem:[#allocation5 + $0x2c8] sm:$0xff]
    %v208 = vld [vmem:[#allocation5 + $0x2d0] sm:$0xff]
    %v209 = vld [vmem:[#allocation5 + $0x2d8] sm:$0xff]
    %v210 = vld [vmem:[#allocation5 + $0x2e0] sm:$0xff]
    %v211 = vld [vmem:[#allocation5 + $0x2e8] sm:$0xff]
    %v212 = vld [vmem:[#allocation5 + $0x2f0] sm:$0xff]
    %v213 = vld [vmem:[#allocation5 + $0x2f8] sm:$0xff]
    %v214 = vld [vmem:[#allocation5 + $0x300] sm:$0xff]
    %v215 = vld [vmem:[#allocation5 + $0x308] sm:$0xff]
    %v216 = vld [vmem:[#allocation5 + $0x310] sm:$0xff]
    %v217 = vld [vmem:[#allocation5 + $0x318] sm:$0xff]
    %v218 = vld [vmem:[#allocation5 + $0x320] sm:$0xff]
    %v219 = vld [vmem:[#allocation5 + $0x328] sm:$0xff]
    %v220 = vld [vmem:[#allocation5 + $0x330] sm:$0xff]
    %v221 = vld [vmem:[#allocation5 + $0x338] sm:$0xff]
    %v222 = vld [vmem:[#allocation5 + $0x340] sm:$0xff]
    %v223 = vld [vmem:[#allocation5 + $0x348] sm:$0xff]
    %v224 = vld [vmem:[#allocation5 + $0x350] sm:$0xff]
    %v225 = vld [vmem:[#allocation5 + $0x358] sm:$0xff]
    %v226 = vld [vmem:[#allocation5 + $0x360] sm:$0xff]
    %v227 = vld [vmem:[#allocation5 + $0x368] sm:$0xff]
    %v228 = vld [vmem:[#allocation5 + $0x370] sm:$0xff]
    %v229 = vld [vmem:[#allocation5 + $0x378] sm:$0xff]
    %v230 = vld [vmem:[#allocation5 + $0x380] sm:$0xff]
    %v231 = vld [vmem:[#allocation5 + $0x388] sm:$0xff]
    %v232 = vld [vmem:[#allocation5 + $0x390] sm:$0xff]
    %v233 = vld [vmem:[#allocation5 + $0x398] sm:$0xff]
    %v234 = vld [vmem:[#allocation5 + $0x3a0] sm:$0xff]
    %v235 = vld [vmem:[#allocation5 + $0x3a8] sm:$0xff]
    %v236 = vld [vmem:[#allocation5 + $0x3b0] sm:$0xff]
    %v237 = vld [vmem:[#allocation5 + $0x3b8] sm:$0xff]
    %v238 = vld [vmem:[#allocation5 + $0x3c0] sm:$0xff]
    %v239 = vld [vmem:[#allocation5 + $0x3c8] sm:$0xff]
    %v240 = vld [vmem:[#allocation5 + $0x3d0] sm:$0xff]
    %v241 = vld [vmem:[#allocation5 + $0x3d8] sm:$0xff]
    %v242 = vld [vmem:[#allocation5 + $0x3e0] sm:$0xff]
    %v243 = vld [vmem:[#allocation5 + $0x3e8] sm:$0xff]
    %v244 = vld [vmem:[#allocation5 + $0x3f0] sm:$0xff]
    %v245 = vld [vmem:[#allocation5 + $0x3f8] sm:$0xff]
    %v246 = vld [vmem:[#allocation5 + $0x400] sm:$0xff]
    %v247 = vld [vmem:[#allocation5 + $0x408] sm:$0xff]
    %v248 = vld [vmem:[#allocation5 + $0x410] sm:$0xff]
    %v249 = vld [vmem:[#allocation5 + $0x418] sm:$0xff]
    %v250 = vld [vmem:[#allocation5 + $0x420] sm:$0xff]
    %v251 = vld [vmem:[#allocation5 + $0x428] sm:$0xff]
    %v252 = vld [vmem:[#allocation5 + $0x430] sm:$0xff]
    %v253 = vld [vmem:[#allocation5 + $0x438] sm:$0xff]
    %v254 = vld [vmem:[#allocation5 + $0x440] sm:$0xff]
    %v255 = vld [vmem:[#allocation5 + $0x448] sm:$0xff]
    %v256 = vld [vmem:[#allocation5 + $0x450] sm:$0xff]
    %v257 = vld [vmem:[#allocation5 + $0x458] sm:$0xff]
    %v258 = vld [vmem:[#allocation5 + $0x460] sm:$0xff]
    %v259 = vld [vmem:[#allocation5 + $0x468] sm:$0xff]
    %v260 = vld [vmem:[#allocation5 + $0x470] sm:$0xff]
    %v261 = vld [vmem:[#allocation5 + $0x478] sm:$0xff]
    %v262 = vld [vmem:[#allocation5 + $0x480] sm:$0xff]
    %v263 = vld [vmem:[#allocation5 + $0x488] sm:$0xff]
    %v264 = vld [vmem:[#allocation5 + $0x490] sm:$0xff]
    %v265 = vld [vmem:[#allocation5 + $0x498] sm:$0xff]
    %v266 = vld [vmem:[#allocation5 + $0x4a0] sm:$0xff]
    %v267 = vld [vmem:[#allocation5 + $0x4a8] sm:$0xff]
    %v268 = vld [vmem:[#allocation5 + $0x4b0] sm:$0xff]
    %v269 = vld [vmem:[#allocation5 + $0x4b8] sm:$0xff]
    %v270 = vld [vmem:[#allocation5 + $0x4c0] sm:$0xff]
    %v271 = vld [vmem:[#allocation5 + $0x4c8] sm:$0xff]
    %v272 = vld [vmem:[#allocation5 + $0x4d0] sm:$0xff]
    %v273 = vld [vmem:[#allocation5 + $0x4d8] sm:$0xff]
    %v274 = vld [vmem:[#allocation5 + $0x4e0] sm:$0xff]
    %v275 = vld [vmem:[#allocation5 + $0x4e8] sm:$0xff]
    %v276 = vld [vmem:[#allocation5 + $0x4f0] sm:$0xff]
    %v277 = vld [vmem:[#allocation5 + $0x4f8] sm:$0xff]
    %v278 = vld [vmem:[#allocation5 + $0x500] sm:$0xff]
    %v279 = vld [vmem:[#allocation5 + $0x508] sm:$0xff]
    %v280 = vld [vmem:[#allocation5 + $0x510] sm:$0xff]
    %v281 = vld [vmem:[#allocation5 + $0x518] sm:$0xff]
    %v282 = vld [vmem:[#allocation5 + $0x520] sm:$0xff]
    %v283 = vld [vmem:[#allocation5 + $0x528] sm:$0xff]
    %v284 = vld [vmem:[#allocation5 + $0x530] sm:$0xff]
    %v285 = vld [vmem:[#allocation5 + $0x538] sm:$0xff]
    %v286 = vld [vmem:[#allocation5 + $0x540] sm:$0xff]
    %v287 = vld [vmem:[#allocation5 + $0x548] sm:$0xff]
    %v288 = vld [vmem:[#allocation5 + $0x550] sm:$0xff]
    %v289 = vld [vmem:[#allocation5 + $0x558] sm:$0xff]
    %v290 = vld [vmem:[#allocation5 + $0x560] sm:$0xff]
    %v291 = vld [vmem:[#allocation5 + $0x568] sm:$0xff]
    %v292 = vld [vmem:[#allocation5 + $0x570] sm:$0xff]
    %v293 = vld [vmem:[#allocation5 + $0x578] sm:$0xff]
    %v294 = vld [vmem:[#allocation5 + $0x580] sm:$0xff]
    %v295 = vld [vmem:[#allocation5 + $0x588] sm:$0xff]
    %v296 = vld [vmem:[#allocation5 + $0x590] sm:$0xff]
    %v297 = vld [vmem:[#allocation5 + $0x598] sm:$0xff]
    %v298 = vld [vmem:[#allocation5 + $0x5a0] sm:$0xff]
    %v299 = vld [vmem:[#allocation5 + $0x5a8] sm:$0xff]
    %v300 = vld [vmem:[#allocation5 + $0x5b0] sm:$0xff]
    %v301 = vld [vmem:[#allocation5 + $0x5b8] sm:$0xff]
    %v302 = vld [vmem:[#allocation5 + $0x5c0] sm:$0xff]
    %v303 = vld [vmem:[#allocation5 + $0x5c8] sm:$0xff]
    %v304 = vld [vmem:[#allocation5 + $0x5d0] sm:$0xff]
    %v305 = vld [vmem:[#allocation5 + $0x5d8] sm:$0xff]
    %v306 = vld [vmem:[#allocation5 + $0x5e0] sm:$0xff]
    %v307 = vld [vmem:[#allocation5 + $0x5e8] sm:$0xff]
    %v308 = vld [vmem:[#allocation5 + $0x5f0] sm:$0xff]
    %v309 = vld [vmem:[#allocation5 + $0x5f8] sm:$0xff]
    %v310 = vld [vmem:[#allocation5 + $0x600] sm:$0xff]
    %v311 = vld [vmem:[#allocation5 + $0x608] sm:$0xff]
    %v312 = vld [vmem:[#allocation5 + $0x610] sm:$0xff]
    %v313 = vld [vmem:[#allocation5 + $0x618] sm:$0xff]
    %v314 = vld [vmem:[#allocation5 + $0x620] sm:$0xff]
    %v315 = vld [vmem:[#allocation5 + $0x628] sm:$0xff]
    %v316 = vld [vmem:[#allocation5 + $0x630] sm:$0xff]
    %v317 = vld [vmem:[#allocation5 + $0x638] sm:$0xff]
    %v318 = vld [vmem:[#allocation5 + $0x640] sm:$0xff]
    %v319 = vld [vmem:[#allocation5 + $0x648] sm:$0xff]
    %v320 = vld [vmem:[#allocation5 + $0x650] sm:$0xff]
    %v321 = vld [vmem:[#allocation5 + $0x658] sm:$0xff]
    %v322 = vld [vmem:[#allocation5 + $0x660] sm:$0xff]
    %v323 = vld [vmem:[#allocation5 + $0x668] sm:$0xff]
    %v324 = vld [vmem:[#allocation5 + $0x670] sm:$0xff]
    %v325 = vld [vmem:[#allocation5 + $0x678] sm:$0xff]
    %v326 = vld [vmem:[#allocation5 + $0x680] sm:$0xff]
    %v327 = vld [vmem:[#allocation5 + $0x688] sm:$0xff]
    %v328 = vld [vmem:[#allocation5 + $0x690] sm:$0xff]
    %v329 = vld [vmem:[#allocation5 + $0x698] sm:$0xff]
    %v330 = vld [vmem:[#allocation5 + $0x6a0] sm:$0xff]
    %v331 = vld [vmem:[#allocation5 + $0x6a8] sm:$0xff]
    %v332 = vld [vmem:[#allocation5 + $0x6b0] sm:$0xff]
    %v333 = vld [vmem:[#allocation5 + $0x6b8] sm:$0xff]
    %v334 = vld [vmem:[#allocation5 + $0x6c0] sm:$0xff]
    %v335 = vld [vmem:[#allocation5 + $0x6c8] sm:$0xff]
    %v336 = vld [vmem:[#allocation5 + $0x6d0] sm:$0xff]
    %v337 = vld [vmem:[#allocation5 + $0x6d8] sm:$0xff]
    %v338 = vld [vmem:[#allocation5 + $0x6e0] sm:$0xff]
    %v339 = vld [vmem:[#allocation5 + $0x6e8] sm:$0xff]
    %v340 = vld [vmem:[#allocation5 + $0x6f0] sm:$0xff]
    %v341 = vld [vmem:[#allocation5 + $0x6f8] sm:$0xff]
    %v342 = vld [vmem:[%s2] sm:$0xf]
    %v344 = vlaneseq
    %v345 = vshrl.u32 %v344, 7
    %v346 = vsub.s32 0, %v345
    %v347 = vrot.slane %v342, %v346
    %v348 = vlaneseq
    %v349 = vshrl.u32 %v348, 7
    %v350 = vsub.s32 1, %v349
    %v351 = vrot.slane %v342, %v350
    %v352 = vlaneseq
    %v353 = vshrl.u32 %v352, 7
    %v354 = vsub.s32 2, %v353
    %v355 = vrot.slane %v342, %v354
    %v356 = vlaneseq
    %v357 = vshrl.u32 %v356, 7
    %v358 = vsub.s32 3, %v357
    %v359 = vrot.slane %v342, %v358
    %v380 = vunpack.c.l.b16 %v102
    %v381 = vunpack.c.h.b16 %v102
    %v382 = vunpack.c.l.b16 %v103
    %v383 = vunpack.c.h.b16 %v103
    %v384 = vunpack.c.l.b16 %v104
    %v385 = vunpack.c.h.b16 %v104
    %v386 = vunpack.c.l.b16 %v105
    %v387 = vunpack.c.l.b16 %v106
    %v388 = vunpack.c.h.b16 %v106
    %v389 = vunpack.c.l.b16 %v107
    %v390 = vunpack.c.h.b16 %v107
    %v391 = vunpack.c.l.b16 %v108
    %v392 = vunpack.c.h.b16 %v108
    %v393 = vunpack.c.l.b16 %v109
    %v394 = vunpack.c.l.b16 %v110
    %v395 = vunpack.c.h.b16 %v110
    %v396 = vunpack.c.l.b16 %v111
    %v397 = vunpack.c.h.b16 %v111
    %v398 = vunpack.c.l.b16 %v112
    %v399 = vunpack.c.h.b16 %v112
    %v400 = vunpack.c.l.b16 %v113
    %v401 = vunpack.c.l.b16 %v114
    %v402 = vunpack.c.h.b16 %v114
    %v403 = vunpack.c.l.b16 %v115
    %v404 = vunpack.c.h.b16 %v115
    %v405 = vunpack.c.l.b16 %v116
    %v406 = vunpack.c.h.b16 %v116
    %v407 = vunpack.c.l.b16 %v117
    %v408 = vpack.c.b16 %v387, %v380
    %v409 = vpack.c.b16 %v388, %v381
    %v410 = vpack.c.b16 %v389, %v382
    %v411 = vpack.c.b16 %v390, %v383
    %v412 = vpack.c.b16 %v391, %v384
    %v413 = vpack.c.b16 %v392, %v385
    %v414 = vpack.c.b16 %v393, %v386
    %v415 = vpack.c.b16 %v401, %v394
    %v416 = vpack.c.b16 %v402, %v395
    %v417 = vpack.c.b16 %v403, %v396
    %v418 = vpack.c.b16 %v404, %v397
    %v419 = vpack.c.b16 %v405, %v398
    %v420 = vpack.c.b16 %v406, %v399
    %v421 = vpack.c.b16 %v407, %v400
    %v660 = vunpack.c.l.b16 %v118
    %v661 = vunpack.c.h.b16 %v118
    %v662 = vunpack.c.l.b16 %v119
    %v663 = vunpack.c.h.b16 %v119
    %v664 = vunpack.c.l.b16 %v120
    %v665 = vunpack.c.h.b16 %v120
    %v666 = vunpack.c.l.b16 %v121
    %v667 = vunpack.c.h.b16 %v121
    %v668 = vunpack.c.l.b16 %v122
    %v669 = vunpack.c.h.b16 %v122
    %v670 = vunpack.c.l.b16 %v123
    %v671 = vunpack.c.h.b16 %v123
    %v672 = vunpack.c.l.b16 %v124
    %v673 = vunpack.c.h.b16 %v124
    %v674 = vunpack.c.l.b16 %v125
    %v675 = vunpack.c.h.b16 %v125
    %v676 = vunpack.c.l.b16 %v126
    %v677 = vunpack.c.h.b16 %v126
    %v678 = vunpack.c.l.b16 %v127
    %v679 = vunpack.c.h.b16 %v127
    %v680 = vunpack.c.l.b16 %v128
    %v681 = vunpack.c.h.b16 %v128
    %v682 = vunpack.c.l.b16 %v129
    %v683 = vunpack.c.h.b16 %v129
    %v684 = vunpack.c.l.b16 %v130
    %v685 = vunpack.c.h.b16 %v130
    %v686 = vunpack.c.l.b16 %v131
    %v687 = vunpack.c.h.b16 %v131
    %v688 = vunpack.c.l.b16 %v132
    %v689 = vunpack.c.h.b16 %v132
    %v690 = vunpack.c.l.b16 %v133
    %v691 = vunpack.c.h.b16 %v133
    %v692 = vunpack.c.l.b16 %v134
    %v693 = vunpack.c.h.b16 %v134
    %v694 = vunpack.c.l.b16 %v135
    %v695 = vunpack.c.h.b16 %v135
    %v696 = vunpack.c.l.b16 %v136
    %v697 = vunpack.c.h.b16 %v136
    %v698 = vunpack.c.l.b16 %v137
    %v699 = vunpack.c.h.b16 %v137
    %v700 = vunpack.c.l.b16 %v138
    %v701 = vunpack.c.h.b16 %v138
    %v702 = vunpack.c.l.b16 %v139
    %v703 = vunpack.c.h.b16 %v139
    %v704 = vunpack.c.l.b16 %v140
    %v705 = vunpack.c.h.b16 %v140
    %v706 = vunpack.c.l.b16 %v141
    %v707 = vunpack.c.h.b16 %v141
    %v708 = vunpack.c.l.b16 %v142
    %v709 = vunpack.c.h.b16 %v142
    %v710 = vunpack.c.l.b16 %v143
    %v711 = vunpack.c.h.b16 %v143
    %v712 = vunpack.c.l.b16 %v144
    %v713 = vunpack.c.h.b16 %v144
    %v714 = vunpack.c.l.b16 %v145
    %v715 = vunpack.c.h.b16 %v145
    %v716 = vunpack.c.l.b16 %v146
    %v717 = vunpack.c.h.b16 %v146
    %v718 = vunpack.c.l.b16 %v147
    %v719 = vunpack.c.h.b16 %v147
    %v720 = vunpack.c.l.b16 %v148
    %v721 = vunpack.c.h.b16 %v148
    %v722 = vunpack.c.l.b16 %v149
    %v723 = vunpack.c.h.b16 %v149
    %v724 = vunpack.c.l.b16 %v150
    %v725 = vunpack.c.h.b16 %v150
    %v726 = vunpack.c.l.b16 %v151
    %v727 = vunpack.c.h.b16 %v151
    %v728 = vunpack.c.l.b16 %v152
    %v729 = vunpack.c.h.b16 %v152
    %v730 = vunpack.c.l.b16 %v153
    %v731 = vunpack.c.h.b16 %v153
    %v732 = vunpack.c.l.b16 %v154
    %v733 = vunpack.c.h.b16 %v154
    %v734 = vunpack.c.l.b16 %v155
    %v735 = vunpack.c.h.b16 %v155
    %v736 = vunpack.c.l.b16 %v156
    %v737 = vunpack.c.h.b16 %v156
    %v738 = vunpack.c.l.b16 %v157
    %v739 = vunpack.c.h.b16 %v157
    %v740 = vunpack.c.l.b16 %v158
    %v741 = vunpack.c.h.b16 %v158
    %v742 = vunpack.c.l.b16 %v159
    %v743 = vunpack.c.h.b16 %v159
    %v744 = vunpack.c.l.b16 %v160
    %v745 = vunpack.c.h.b16 %v160
    %v746 = vunpack.c.l.b16 %v161
    %v747 = vunpack.c.h.b16 %v161
    %v748 = vunpack.c.l.b16 %v162
    %v749 = vunpack.c.h.b16 %v162
    %v750 = vunpack.c.l.b16 %v163
    %v751 = vunpack.c.h.b16 %v163
    %v752 = vunpack.c.l.b16 %v164
    %v753 = vunpack.c.h.b16 %v164
    %v754 = vunpack.c.l.b16 %v165
    %v755 = vunpack.c.h.b16 %v165
    %v756 = vunpack.c.l.b16 %v166
    %v757 = vunpack.c.h.b16 %v166
    %v758 = vunpack.c.l.b16 %v167
    %v759 = vunpack.c.h.b16 %v167
    %v760 = vunpack.c.l.b16 %v168
    %v761 = vunpack.c.h.b16 %v168
    %v762 = vunpack.c.l.b16 %v169
    %v763 = vunpack.c.h.b16 %v169
    %v764 = vunpack.c.l.b16 %v170
    %v765 = vunpack.c.h.b16 %v170
    %v766 = vunpack.c.l.b16 %v171
    %v767 = vunpack.c.h.b16 %v171
    %v768 = vunpack.c.l.b16 %v172
    %v769 = vunpack.c.h.b16 %v172
    %v770 = vunpack.c.l.b16 %v173
    %v771 = vunpack.c.h.b16 %v173
    %v772 = vunpack.c.l.b16 %v174
    %v773 = vunpack.c.h.b16 %v174
    %v774 = vunpack.c.l.b16 %v175
    %v775 = vunpack.c.h.b16 %v175
    %v776 = vunpack.c.l.b16 %v176
    %v777 = vunpack.c.h.b16 %v176
    %v778 = vunpack.c.l.b16 %v177
    %v779 = vunpack.c.h.b16 %v177
    %v780 = vunpack.c.l.b16 %v178
    %v781 = vunpack.c.h.b16 %v178
    %v782 = vunpack.c.l.b16 %v179
    %v783 = vunpack.c.h.b16 %v179
    %v784 = vunpack.c.l.b16 %v180
    %v785 = vunpack.c.h.b16 %v180
    %v786 = vunpack.c.l.b16 %v181
    %v787 = vunpack.c.h.b16 %v181
    %v788 = vunpack.c.l.b16 %v182
    %v789 = vunpack.c.h.b16 %v182
    %v790 = vunpack.c.l.b16 %v183
    %v791 = vunpack.c.h.b16 %v183
    %v792 = vunpack.c.l.b16 %v184
    %v793 = vunpack.c.h.b16 %v184
    %v794 = vunpack.c.l.b16 %v185
    %v795 = vunpack.c.h.b16 %v185
    %v796 = vunpack.c.l.b16 %v186
    %v797 = vunpack.c.h.b16 %v186
    %v798 = vunpack.c.l.b16 %v187
    %v799 = vunpack.c.h.b16 %v187
    %v800 = vunpack.c.l.b16 %v188
    %v801 = vunpack.c.h.b16 %v188
    %v802 = vunpack.c.l.b16 %v189
    %v803 = vunpack.c.h.b16 %v189
    %v804 = vunpack.c.l.b16 %v190
    %v805 = vunpack.c.h.b16 %v190
    %v806 = vunpack.c.l.b16 %v191
    %v807 = vunpack.c.h.b16 %v191
    %v808 = vunpack.c.l.b16 %v192
    %v809 = vunpack.c.h.b16 %v192
    %v810 = vunpack.c.l.b16 %v193
    %v811 = vunpack.c.h.b16 %v193
    %v812 = vunpack.c.l.b16 %v194
    %v813 = vunpack.c.h.b16 %v194
    %v814 = vunpack.c.l.b16 %v195
    %v815 = vunpack.c.h.b16 %v195
    %v816 = vunpack.c.l.b16 %v196
    %v817 = vunpack.c.h.b16 %v196
    %v818 = vunpack.c.l.b16 %v197
    %v819 = vunpack.c.h.b16 %v197
    %v820 = vunpack.c.l.b16 %v198
    %v821 = vunpack.c.h.b16 %v198
    %v822 = vunpack.c.l.b16 %v199
    %v823 = vunpack.c.h.b16 %v199
    %v824 = vunpack.c.l.b16 %v200
    %v825 = vunpack.c.h.b16 %v200
    %v826 = vunpack.c.l.b16 %v201
    %v827 = vunpack.c.h.b16 %v201
    %v828 = vunpack.c.l.b16 %v202
    %v829 = vunpack.c.h.b16 %v202
    %v830 = vunpack.c.l.b16 %v203
    %v831 = vunpack.c.h.b16 %v203
    %v832 = vunpack.c.l.b16 %v204
    %v833 = vunpack.c.h.b16 %v204
    %v834 = vunpack.c.l.b16 %v205
    %v835 = vunpack.c.h.b16 %v205
    %v836 = vunpack.c.l.b16 %v206
    %v837 = vunpack.c.h.b16 %v206
    %v838 = vunpack.c.l.b16 %v207
    %v839 = vunpack.c.h.b16 %v207
    %v840 = vunpack.c.l.b16 %v208
    %v841 = vunpack.c.h.b16 %v208
    %v842 = vunpack.c.l.b16 %v209
    %v843 = vunpack.c.h.b16 %v209
    %v844 = vunpack.c.l.b16 %v210
    %v845 = vunpack.c.h.b16 %v210
    %v846 = vunpack.c.l.b16 %v211
    %v847 = vunpack.c.h.b16 %v211
    %v848 = vunpack.c.l.b16 %v212
    %v849 = vunpack.c.h.b16 %v212
    %v850 = vunpack.c.l.b16 %v213
    %v851 = vunpack.c.h.b16 %v213
    %v852 = vunpack.c.l.b16 %v214
    %v853 = vunpack.c.h.b16 %v214
    %v854 = vunpack.c.l.b16 %v215
    %v855 = vunpack.c.h.b16 %v215
    %v856 = vunpack.c.l.b16 %v216
    %v857 = vunpack.c.h.b16 %v216
    %v858 = vunpack.c.l.b16 %v217
    %v859 = vunpack.c.h.b16 %v217
    %v860 = vunpack.c.l.b16 %v218
    %v861 = vunpack.c.h.b16 %v218
    %v862 = vunpack.c.l.b16 %v219
    %v863 = vunpack.c.h.b16 %v219
    %v864 = vunpack.c.l.b16 %v220
    %v865 = vunpack.c.h.b16 %v220
    %v866 = vunpack.c.l.b16 %v221
    %v867 = vunpack.c.h.b16 %v221
    %v868 = vunpack.c.l.b16 %v222
    %v869 = vunpack.c.h.b16 %v222
    %v870 = vunpack.c.l.b16 %v223
    %v871 = vunpack.c.h.b16 %v223
    %v872 = vunpack.c.l.b16 %v224
    %v873 = vunpack.c.h.b16 %v224
    %v874 = vunpack.c.l.b16 %v225
    %v875 = vunpack.c.h.b16 %v225
    %v876 = vunpack.c.l.b16 %v226
    %v877 = vunpack.c.h.b16 %v226
    %v878 = vunpack.c.l.b16 %v227
    %v879 = vunpack.c.h.b16 %v227
    %v880 = vunpack.c.l.b16 %v228
    %v881 = vunpack.c.h.b16 %v228
    %v882 = vunpack.c.l.b16 %v229
    %v883 = vunpack.c.h.b16 %v229
    %v884 = vunpack.c.l.b16 %v230
    %v885 = vunpack.c.h.b16 %v230
    %v886 = vunpack.c.l.b16 %v231
    %v887 = vunpack.c.h.b16 %v231
    %v888 = vunpack.c.l.b16 %v232
    %v889 = vunpack.c.h.b16 %v232
    %v890 = vunpack.c.l.b16 %v233
    %v891 = vunpack.c.h.b16 %v233
    %v892 = vunpack.c.l.b16 %v234
    %v893 = vunpack.c.h.b16 %v234
    %v894 = vunpack.c.l.b16 %v235
    %v895 = vunpack.c.h.b16 %v235
    %v896 = vunpack.c.l.b16 %v236
    %v897 = vunpack.c.h.b16 %v236
    %v898 = vunpack.c.l.b16 %v237
    %v899 = vunpack.c.h.b16 %v237
    %v900 = vunpack.c.l.b16 %v238
    %v901 = vunpack.c.h.b16 %v238
    %v902 = vunpack.c.l.b16 %v239
    %v903 = vunpack.c.h.b16 %v239
    %v904 = vunpack.c.l.b16 %v240
    %v905 = vunpack.c.h.b16 %v240
    %v906 = vunpack.c.l.b16 %v241
    %v907 = vunpack.c.h.b16 %v241
    %v908 = vunpack.c.l.b16 %v242
    %v909 = vunpack.c.h.b16 %v242
    %v910 = vunpack.c.l.b16 %v243
    %v911 = vunpack.c.h.b16 %v243
    %v912 = vunpack.c.l.b16 %v244
    %v913 = vunpack.c.h.b16 %v244
    %v914 = vunpack.c.l.b16 %v245
    %v915 = vunpack.c.h.b16 %v245
    %v916 = vunpack.c.l.b16 %v246
    %v917 = vunpack.c.h.b16 %v246
    %v918 = vunpack.c.l.b16 %v247
    %v919 = vunpack.c.h.b16 %v247
    %v920 = vunpack.c.l.b16 %v248
    %v921 = vunpack.c.h.b16 %v248
    %v922 = vunpack.c.l.b16 %v249
    %v923 = vunpack.c.h.b16 %v249
    %v924 = vunpack.c.l.b16 %v250
    %v925 = vunpack.c.h.b16 %v250
    %v926 = vunpack.c.l.b16 %v251
    %v927 = vunpack.c.h.b16 %v251
    %v928 = vunpack.c.l.b16 %v252
    %v929 = vunpack.c.h.b16 %v252
    %v930 = vunpack.c.l.b16 %v253
    %v931 = vunpack.c.h.b16 %v253
    %v932 = vunpack.c.l.b16 %v254
    %v933 = vunpack.c.h.b16 %v254
    %v934 = vunpack.c.l.b16 %v255
    %v935 = vunpack.c.h.b16 %v255
    %v936 = vunpack.c.l.b16 %v256
    %v937 = vunpack.c.h.b16 %v256
    %v938 = vunpack.c.l.b16 %v257
    %v939 = vunpack.c.h.b16 %v257
    %v940 = vunpack.c.l.b16 %v258
    %v941 = vunpack.c.h.b16 %v258
    %v942 = vunpack.c.l.b16 %v259
    %v943 = vunpack.c.h.b16 %v259
    %v944 = vunpack.c.l.b16 %v260
    %v945 = vunpack.c.h.b16 %v260
    %v946 = vunpack.c.l.b16 %v261
    %v947 = vunpack.c.h.b16 %v261
    %v948 = vunpack.c.l.b16 %v262
    %v949 = vunpack.c.h.b16 %v262
    %v950 = vunpack.c.l.b16 %v263
    %v951 = vunpack.c.h.b16 %v263
    %v952 = vunpack.c.l.b16 %v264
    %v953 = vunpack.c.h.b16 %v264
    %v954 = vunpack.c.l.b16 %v265
    %v955 = vunpack.c.h.b16 %v265
    %v956 = vunpack.c.l.b16 %v266
    %v957 = vunpack.c.h.b16 %v266
    %v958 = vunpack.c.l.b16 %v267
    %v959 = vunpack.c.h.b16 %v267
    %v960 = vunpack.c.l.b16 %v268
    %v961 = vunpack.c.h.b16 %v268
    %v962 = vunpack.c.l.b16 %v269
    %v963 = vunpack.c.h.b16 %v269
    %v964 = vunpack.c.l.b16 %v270
    %v965 = vunpack.c.h.b16 %v270
    %v966 = vunpack.c.l.b16 %v271
    %v967 = vunpack.c.h.b16 %v271
    %v968 = vunpack.c.l.b16 %v272
    %v969 = vunpack.c.h.b16 %v272
    %v970 = vunpack.c.l.b16 %v273
    %v971 = vunpack.c.h.b16 %v273
    %v972 = vunpack.c.l.b16 %v274
    %v973 = vunpack.c.h.b16 %v274
    %v974 = vunpack.c.l.b16 %v275
    %v975 = vunpack.c.h.b16 %v275
    %v976 = vunpack.c.l.b16 %v276
    %v977 = vunpack.c.h.b16 %v276
    %v978 = vunpack.c.l.b16 %v277
    %v979 = vunpack.c.h.b16 %v277
    %v980 = vunpack.c.l.b16 %v278
    %v981 = vunpack.c.h.b16 %v278
    %v982 = vunpack.c.l.b16 %v279
    %v983 = vunpack.c.h.b16 %v279
    %v984 = vunpack.c.l.b16 %v280
    %v985 = vunpack.c.h.b16 %v280
    %v986 = vunpack.c.l.b16 %v281
    %v987 = vunpack.c.h.b16 %v281
    %v988 = vunpack.c.l.b16 %v282
    %v989 = vunpack.c.h.b16 %v282
    %v990 = vunpack.c.l.b16 %v283
    %v991 = vunpack.c.h.b16 %v283
    %v992 = vunpack.c.l.b16 %v284
    %v993 = vunpack.c.h.b16 %v284
    %v994 = vunpack.c.l.b16 %v285
    %v995 = vunpack.c.h.b16 %v285
    %v996 = vunpack.c.l.b16 %v286
    %v997 = vunpack.c.h.b16 %v286
    %v998 = vunpack.c.l.b16 %v287
    %v999 = vunpack.c.h.b16 %v287
    %v1000 = vunpack.c.l.b16 %v288
    %v1001 = vunpack.c.h.b16 %v288
    %v1002 = vunpack.c.l.b16 %v289
    %v1003 = vunpack.c.h.b16 %v289
    %v1004 = vunpack.c.l.b16 %v290
    %v1005 = vunpack.c.h.b16 %v290
    %v1006 = vunpack.c.l.b16 %v291
    %v1007 = vunpack.c.h.b16 %v291
    %v1008 = vunpack.c.l.b16 %v292
    %v1009 = vunpack.c.h.b16 %v292
    %v1010 = vunpack.c.l.b16 %v293
    %v1011 = vunpack.c.h.b16 %v293
    %v1012 = vunpack.c.l.b16 %v294
    %v1013 = vunpack.c.h.b16 %v294
    %v1014 = vunpack.c.l.b16 %v295
    %v1015 = vunpack.c.h.b16 %v295
    %v1016 = vunpack.c.l.b16 %v296
    %v1017 = vunpack.c.h.b16 %v296
    %v1018 = vunpack.c.l.b16 %v297
    %v1019 = vunpack.c.h.b16 %v297
    %v1020 = vunpack.c.l.b16 %v298
    %v1021 = vunpack.c.h.b16 %v298
    %v1022 = vunpack.c.l.b16 %v299
    %v1023 = vunpack.c.h.b16 %v299
    %v1024 = vunpack.c.l.b16 %v300
    %v1025 = vunpack.c.h.b16 %v300
    %v1026 = vunpack.c.l.b16 %v301
    %v1027 = vunpack.c.h.b16 %v301
    %v1028 = vunpack.c.l.b16 %v302
    %v1029 = vunpack.c.h.b16 %v302
    %v1030 = vunpack.c.l.b16 %v303
    %v1031 = vunpack.c.h.b16 %v303
    %v1032 = vunpack.c.l.b16 %v304
    %v1033 = vunpack.c.h.b16 %v304
    %v1034 = vunpack.c.l.b16 %v305
    %v1035 = vunpack.c.h.b16 %v305
    %v1036 = vunpack.c.l.b16 %v306
    %v1037 = vunpack.c.h.b16 %v306
    %v1038 = vunpack.c.l.b16 %v307
    %v1039 = vunpack.c.h.b16 %v307
    %v1040 = vunpack.c.l.b16 %v308
    %v1041 = vunpack.c.h.b16 %v308
    %v1042 = vunpack.c.l.b16 %v309
    %v1043 = vunpack.c.h.b16 %v309
    %v1044 = vunpack.c.l.b16 %v310
    %v1045 = vunpack.c.h.b16 %v310
    %v1046 = vunpack.c.l.b16 %v311
    %v1047 = vunpack.c.h.b16 %v311
    %v1048 = vunpack.c.l.b16 %v312
    %v1049 = vunpack.c.h.b16 %v312
    %v1050 = vunpack.c.l.b16 %v313
    %v1051 = vunpack.c.h.b16 %v313
    %v1052 = vunpack.c.l.b16 %v314
    %v1053 = vunpack.c.h.b16 %v314
    %v1054 = vunpack.c.l.b16 %v315
    %v1055 = vunpack.c.h.b16 %v315
    %v1056 = vunpack.c.l.b16 %v316
    %v1057 = vunpack.c.h.b16 %v316
    %v1058 = vunpack.c.l.b16 %v317
    %v1059 = vunpack.c.h.b16 %v317
    %v1060 = vunpack.c.l.b16 %v318
    %v1061 = vunpack.c.h.b16 %v318
    %v1062 = vunpack.c.l.b16 %v319
    %v1063 = vunpack.c.h.b16 %v319
    %v1064 = vunpack.c.l.b16 %v320
    %v1065 = vunpack.c.h.b16 %v320
    %v1066 = vunpack.c.l.b16 %v321
    %v1067 = vunpack.c.h.b16 %v321
    %v1068 = vunpack.c.l.b16 %v322
    %v1069 = vunpack.c.h.b16 %v322
    %v1070 = vunpack.c.l.b16 %v323
    %v1071 = vunpack.c.h.b16 %v323
    %v1072 = vunpack.c.l.b16 %v324
    %v1073 = vunpack.c.h.b16 %v324
    %v1074 = vunpack.c.l.b16 %v325
    %v1075 = vunpack.c.h.b16 %v325
    %v1076 = vunpack.c.l.b16 %v326
    %v1077 = vunpack.c.h.b16 %v326
    %v1078 = vunpack.c.l.b16 %v327
    %v1079 = vunpack.c.h.b16 %v327
    %v1080 = vunpack.c.l.b16 %v328
    %v1081 = vunpack.c.h.b16 %v328
    %v1082 = vunpack.c.l.b16 %v329
    %v1083 = vunpack.c.h.b16 %v329
    %v1084 = vunpack.c.l.b16 %v330
    %v1085 = vunpack.c.h.b16 %v330
    %v1086 = vunpack.c.l.b16 %v331
    %v1087 = vunpack.c.h.b16 %v331
    %v1088 = vunpack.c.l.b16 %v332
    %v1089 = vunpack.c.h.b16 %v332
    %v1090 = vunpack.c.l.b16 %v333
    %v1091 = vunpack.c.h.b16 %v333
    %v1092 = vunpack.c.l.b16 %v334
    %v1093 = vunpack.c.h.b16 %v334
    %v1094 = vunpack.c.l.b16 %v335
    %v1095 = vunpack.c.h.b16 %v335
    %v1096 = vunpack.c.l.b16 %v336
    %v1097 = vunpack.c.h.b16 %v336
    %v1098 = vunpack.c.l.b16 %v337
    %v1099 = vunpack.c.h.b16 %v337
    %v1100 = vunpack.c.l.b16 %v338
    %v1101 = vunpack.c.h.b16 %v338
    %v1102 = vunpack.c.l.b16 %v339
    %v1103 = vunpack.c.h.b16 %v339
    %v1104 = vunpack.c.l.b16 %v340
    %v1105 = vunpack.c.h.b16 %v340
    %v1106 = vunpack.c.l.b16 %v341
    %v1107 = vunpack.c.h.b16 %v341
    %v1108 = vpack.c.b16 %v664, %v660
    %v1109 = vpack.c.b16 %v665, %v661
    %v1110 = vpack.c.b16 %v666, %v662
    %v1111 = vpack.c.b16 %v667, %v663
    %v1112 = vpack.c.b16 %v672, %v668
    %v1113 = vpack.c.b16 %v673, %v669
    %v1114 = vpack.c.b16 %v674, %v670
    %v1115 = vpack.c.b16 %v675, %v671
    %v1116 = vpack.c.b16 %v680, %v676
    %v1117 = vpack.c.b16 %v681, %v677
    %v1118 = vpack.c.b16 %v682, %v678
    %v1119 = vpack.c.b16 %v683, %v679
    %v1120 = vpack.c.b16 %v688, %v684
    %v1121 = vpack.c.b16 %v689, %v685
    %v1122 = vpack.c.b16 %v690, %v686
    %v1123 = vpack.c.b16 %v691, %v687
    %v1124 = vpack.c.b16 %v696, %v692
    %v1125 = vpack.c.b16 %v697, %v693
    %v1126 = vpack.c.b16 %v698, %v694
    %v1127 = vpack.c.b16 %v699, %v695
    %v1128 = vpack.c.b16 %v704, %v700
    %v1129 = vpack.c.b16 %v705, %v701
    %v1130 = vpack.c.b16 %v706, %v702
    %v1131 = vpack.c.b16 %v707, %v703
    %v1132 = vpack.c.b16 %v712, %v708
    %v1133 = vpack.c.b16 %v713, %v709
    %v1134 = vpack.c.b16 %v714, %v710
    %v1135 = vpack.c.b16 %v715, %v711
    %v1136 = vpack.c.b16 %v720, %v716
    %v1137 = vpack.c.b16 %v721, %v717
    %v1138 = vpack.c.b16 %v722, %v718
    %v1139 = vpack.c.b16 %v723, %v719
    %v1140 = vpack.c.b16 %v728, %v724
    %v1141 = vpack.c.b16 %v729, %v725
    %v1142 = vpack.c.b16 %v730, %v726
    %v1143 = vpack.c.b16 %v731, %v727
    %v1144 = vpack.c.b16 %v736, %v732
    %v1145 = vpack.c.b16 %v737, %v733
    %v1146 = vpack.c.b16 %v738, %v734
    %v1147 = vpack.c.b16 %v739, %v735
    %v1148 = vpack.c.b16 %v744, %v740
    %v1149 = vpack.c.b16 %v745, %v741
    %v1150 = vpack.c.b16 %v746, %v742
    %v1151 = vpack.c.b16 %v747, %v743
    %v1152 = vpack.c.b16 %v752, %v748
    %v1153 = vpack.c.b16 %v753, %v749
    %v1154 = vpack.c.b16 %v754, %v750
    %v1155 = vpack.c.b16 %v755, %v751
    %v1156 = vpack.c.b16 %v760, %v756
    %v1157 = vpack.c.b16 %v761, %v757
    %v1158 = vpack.c.b16 %v762, %v758
    %v1159 = vpack.c.b16 %v763, %v759
    %v1160 = vpack.c.b16 %v768, %v764
    %v1161 = vpack.c.b16 %v769, %v765
    %v1162 = vpack.c.b16 %v770, %v766
    %v1163 = vpack.c.b16 %v771, %v767
    %v1164 = vpack.c.b16 %v776, %v772
    %v1165 = vpack.c.b16 %v777, %v773
    %v1166 = vpack.c.b16 %v778, %v774
    %v1167 = vpack.c.b16 %v779, %v775
    %v1168 = vpack.c.b16 %v784, %v780
    %v1169 = vpack.c.b16 %v785, %v781
    %v1170 = vpack.c.b16 %v786, %v782
    %v1171 = vpack.c.b16 %v787, %v783
    %v1172 = vpack.c.b16 %v792, %v788
    %v1173 = vpack.c.b16 %v793, %v789
    %v1174 = vpack.c.b16 %v794, %v790
    %v1175 = vpack.c.b16 %v795, %v791
    %v1176 = vpack.c.b16 %v800, %v796
    %v1177 = vpack.c.b16 %v801, %v797
    %v1178 = vpack.c.b16 %v802, %v798
    %v1179 = vpack.c.b16 %v803, %v799
    %v1180 = vpack.c.b16 %v808, %v804
    %v1181 = vpack.c.b16 %v809, %v805
    %v1182 = vpack.c.b16 %v810, %v806
    %v1183 = vpack.c.b16 %v811, %v807
    %v1184 = vpack.c.b16 %v816, %v812
    %v1185 = vpack.c.b16 %v817, %v813
    %v1186 = vpack.c.b16 %v818, %v814
    %v1187 = vpack.c.b16 %v819, %v815
    %v1188 = vpack.c.b16 %v824, %v820
    %v1189 = vpack.c.b16 %v825, %v821
    %v1190 = vpack.c.b16 %v826, %v822
    %v1191 = vpack.c.b16 %v827, %v823
    %v1192 = vpack.c.b16 %v832, %v828
    %v1193 = vpack.c.b16 %v833, %v829
    %v1194 = vpack.c.b16 %v834, %v830
    %v1195 = vpack.c.b16 %v835, %v831
    %v1196 = vpack.c.b16 %v840, %v836
    %v1197 = vpack.c.b16 %v841, %v837
    %v1198 = vpack.c.b16 %v842, %v838
    %v1199 = vpack.c.b16 %v843, %v839
    %v1200 = vpack.c.b16 %v848, %v844
    %v1201 = vpack.c.b16 %v849, %v845
    %v1202 = vpack.c.b16 %v850, %v846
    %v1203 = vpack.c.b16 %v851, %v847
    %v1204 = vpack.c.b16 %v856, %v852
    %v1205 = vpack.c.b16 %v857, %v853
    %v1206 = vpack.c.b16 %v858, %v854
    %v1207 = vpack.c.b16 %v859, %v855
    %v1208 = vpack.c.b16 %v864, %v860
    %v1209 = vpack.c.b16 %v865, %v861
    %v1210 = vpack.c.b16 %v866, %v862
    %v1211 = vpack.c.b16 %v867, %v863
    %v1212 = vpack.c.b16 %v872, %v868
    %v1213 = vpack.c.b16 %v873, %v869
    %v1214 = vpack.c.b16 %v874, %v870
    %v1215 = vpack.c.b16 %v875, %v871
    %v1216 = vpack.c.b16 %v880, %v876
    %v1217 = vpack.c.b16 %v881, %v877
    %v1218 = vpack.c.b16 %v882, %v878
    %v1219 = vpack.c.b16 %v883, %v879
    %v1220 = vpack.c.b16 %v888, %v884
    %v1221 = vpack.c.b16 %v889, %v885
    %v1222 = vpack.c.b16 %v890, %v886
    %v1223 = vpack.c.b16 %v891, %v887
    %v1224 = vpack.c.b16 %v896, %v892
    %v1225 = vpack.c.b16 %v897, %v893
    %v1226 = vpack.c.b16 %v898, %v894
    %v1227 = vpack.c.b16 %v899, %v895
    %v1228 = vpack.c.b16 %v904, %v900
    %v1229 = vpack.c.b16 %v905, %v901
    %v1230 = vpack.c.b16 %v906, %v902
    %v1231 = vpack.c.b16 %v907, %v903
    %v1232 = vpack.c.b16 %v912, %v908
    %v1233 = vpack.c.b16 %v913, %v909
    %v1234 = vpack.c.b16 %v914, %v910
    %v1235 = vpack.c.b16 %v915, %v911
    %v1236 = vpack.c.b16 %v920, %v916
    %v1237 = vpack.c.b16 %v921, %v917
    %v1238 = vpack.c.b16 %v922, %v918
    %v1239 = vpack.c.b16 %v923, %v919
    %v1240 = vpack.c.b16 %v928, %v924
    %v1241 = vpack.c.b16 %v929, %v925
    %v1242 = vpack.c.b16 %v930, %v926
    %v1243 = vpack.c.b16 %v931, %v927
    %v1244 = vpack.c.b16 %v936, %v932
    %v1245 = vpack.c.b16 %v937, %v933
    %v1246 = vpack.c.b16 %v938, %v934
    %v1247 = vpack.c.b16 %v939, %v935
    %v1248 = vpack.c.b16 %v944, %v940
    %v1249 = vpack.c.b16 %v945, %v941
    %v1250 = vpack.c.b16 %v946, %v942
    %v1251 = vpack.c.b16 %v947, %v943
    %v1252 = vpack.c.b16 %v952, %v948
    %v1253 = vpack.c.b16 %v953, %v949
    %v1254 = vpack.c.b16 %v954, %v950
    %v1255 = vpack.c.b16 %v955, %v951
    %v1256 = vpack.c.b16 %v960, %v956
    %v1257 = vpack.c.b16 %v961, %v957
    %v1258 = vpack.c.b16 %v962, %v958
    %v1259 = vpack.c.b16 %v963, %v959
    %v1260 = vpack.c.b16 %v968, %v964
    %v1261 = vpack.c.b16 %v969, %v965
    %v1262 = vpack.c.b16 %v970, %v966
    %v1263 = vpack.c.b16 %v971, %v967
    %v1264 = vpack.c.b16 %v976, %v972
    %v1265 = vpack.c.b16 %v977, %v973
    %v1266 = vpack.c.b16 %v978, %v974
    %v1267 = vpack.c.b16 %v979, %v975
    %v1268 = vpack.c.b16 %v984, %v980
    %v1269 = vpack.c.b16 %v985, %v981
    %v1270 = vpack.c.b16 %v986, %v982
    %v1271 = vpack.c.b16 %v987, %v983
    %v1272 = vpack.c.b16 %v992, %v988
    %v1273 = vpack.c.b16 %v993, %v989
    %v1274 = vpack.c.b16 %v994, %v990
    %v1275 = vpack.c.b16 %v995, %v991
    %v1276 = vpack.c.b16 %v1000, %v996
    %v1277 = vpack.c.b16 %v1001, %v997
    %v1278 = vpack.c.b16 %v1002, %v998
    %v1279 = vpack.c.b16 %v1003, %v999
    %v1280 = vpack.c.b16 %v1008, %v1004
    %v1281 = vpack.c.b16 %v1009, %v1005
    %v1282 = vpack.c.b16 %v1010, %v1006
    %v1283 = vpack.c.b16 %v1011, %v1007
    %v1284 = vpack.c.b16 %v1016, %v1012
    %v1285 = vpack.c.b16 %v1017, %v1013
    %v1286 = vpack.c.b16 %v1018, %v1014
    %v1287 = vpack.c.b16 %v1019, %v1015
    %v1288 = vpack.c.b16 %v1024, %v1020
    %v1289 = vpack.c.b16 %v1025, %v1021
    %v1290 = vpack.c.b16 %v1026, %v1022
    %v1291 = vpack.c.b16 %v1027, %v1023
    %v1292 = vpack.c.b16 %v1032, %v1028
    %v1293 = vpack.c.b16 %v1033, %v1029
    %v1294 = vpack.c.b16 %v1034, %v1030
    %v1295 = vpack.c.b16 %v1035, %v1031
    %v1296 = vpack.c.b16 %v1040, %v1036
    %v1297 = vpack.c.b16 %v1041, %v1037
    %v1298 = vpack.c.b16 %v1042, %v1038
    %v1299 = vpack.c.b16 %v1043, %v1039
    %v1300 = vpack.c.b16 %v1048, %v1044
    %v1301 = vpack.c.b16 %v1049, %v1045
    %v1302 = vpack.c.b16 %v1050, %v1046
    %v1303 = vpack.c.b16 %v1051, %v1047
    %v1304 = vpack.c.b16 %v1056, %v1052
    %v1305 = vpack.c.b16 %v1057, %v1053
    %v1306 = vpack.c.b16 %v1058, %v1054
    %v1307 = vpack.c.b16 %v1059, %v1055
    %v1308 = vpack.c.b16 %v1064, %v1060
    %v1309 = vpack.c.b16 %v1065, %v1061
    %v1310 = vpack.c.b16 %v1066, %v1062
    %v1311 = vpack.c.b16 %v1067, %v1063
    %v1312 = vpack.c.b16 %v1072, %v1068
    %v1313 = vpack.c.b16 %v1073, %v1069
    %v1314 = vpack.c.b16 %v1074, %v1070
    %v1315 = vpack.c.b16 %v1075, %v1071
    %v1316 = vpack.c.b16 %v1080, %v1076
    %v1317 = vpack.c.b16 %v1081, %v1077
    %v1318 = vpack.c.b16 %v1082, %v1078
    %v1319 = vpack.c.b16 %v1083, %v1079
    %v1320 = vpack.c.b16 %v1088, %v1084
    %v1321 = vpack.c.b16 %v1089, %v1085
    %v1322 = vpack.c.b16 %v1090, %v1086
    %v1323 = vpack.c.b16 %v1091, %v1087
    %v1324 = vpack.c.b16 %v1096, %v1092
    %v1325 = vpack.c.b16 %v1097, %v1093
    %v1326 = vpack.c.b16 %v1098, %v1094
    %v1327 = vpack.c.b16 %v1099, %v1095
    %v1328 = vpack.c.b16 %v1104, %v1100
    %v1329 = vpack.c.b16 %v1105, %v1101
    %v1330 = vpack.c.b16 %v1106, %v1102
    %v1331 = vpack.c.b16 %v1107, %v1103
    %1556 = vmatprep.subr.bf16.mxu0 %v1109
    %1557 = vmatpush1.bf16.msra.mxu0 %v1108
    %1558 = vmatprep.subr.bf16.mxu0 %v1113
    %1559 = vmatpush1.bf16.msra.mxu0 %v1112
    %1560 = vmatprep.subr.bf16.mxu0 %v1117
    %1561 = vmatpush1.bf16.msra.mxu0 %v1116
    %1562 = vmatprep.subr.bf16.mxu0 %v1121
    %1563 = vmatpush1.bf16.msra.mxu0 %v1120
    %1564 = vmatprep.subr.bf16.mxu0 %v1125
    %1565 = vmatpush1.bf16.msra.mxu0 %v1124
    %1566 = vmatprep.subr.bf16.mxu0 %v1129
    %1567 = vmatpush1.bf16.msra.mxu0 %v1128
    %1568 = vmatprep.subr.bf16.mxu0 %v1133
    %1569 = vmatpush1.bf16.msra.mxu0 %v1132
    %1570 = vmatprep.subr.bf16.mxu0 %v1137
    %1571 = vmatpush1.bf16.msra.mxu0 %v1136
    %1572 = vmatprep.subr.bf16.mxu0 %v1141
    %1573 = vmatpush1.bf16.msra.mxu0 %v1140
    %1574 = vmatprep.subr.bf16.mxu0 %v1145
    %1575 = vmatpush1.bf16.msra.mxu0 %v1144
    %1576 = vmatprep.subr.bf16.mxu0 %v1149
    %1577 = vmatpush1.bf16.msra.mxu0 %v1148
    %1578 = vmatprep.subr.bf16.mxu0 %v1153
    %1579 = vmatpush1.bf16.msra.mxu0 %v1152
    %1580 = vmatprep.subr.bf16.mxu0 %v1157
    %1581 = vmatpush1.bf16.msra.mxu0 %v1156
    %1582 = vmatprep.subr.bf16.mxu0 %v1161
    %1583 = vmatpush1.bf16.msra.mxu0 %v1160
    %1584 = vmatprep.subr.bf16.mxu0 %v1165
    %1585 = vmatpush1.bf16.msra.mxu0 %v1164
    %1586 = vmatprep.subr.bf16.mxu0 %v1169
    %1587 = vmatpush1.bf16.msra.mxu0 %v1168
    %1588 = vmatprep.mubr.bf16.mxu0 %v409
    %1589 = vmatmul.mubr.bf16.gmra.mrb[0].mxu0 %v408
    %v1590 = vpop.f32.mrb[0].mxu0
    %v1591 = vadd.f32 %v347, %v1590
    %v1592 = vpop.f32.mrb[0].mxu0
    %v1593 = vadd.f32 %v351, %v1592
    %v1594 = vpop.f32.mrb[0].mxu0
    %v1595 = vadd.f32 %v347, %v1594
    %v1596 = vpop.f32.mrb[0].mxu0
    %v1597 = vadd.f32 %v351, %v1596
    %1598 = vmatprep.mubr.bf16.mxu0 %v416
    %1599 = vmatmul.mubr.bf16.gmra.mrb[0].mxu0 %v415
    %v1600 = vpop.f32.mrb[0].mxu0
    %v1601 = vadd.f32 %v347, %v1600
    %v1602 = vpop.f32.mrb[0].mxu0
    %v1603 = vadd.f32 %v351, %v1602
    %v1604 = vpop.f32.mrb[0].mxu0
    %v1605 = vadd.f32 %v347, %v1604
    %v1606 = vpop.f32.mrb[0].mxu0
    %v1607 = vadd.f32 %v351, %v1606
    %1608 = vdwg.mxu0
    %1609 = vmatprep.subr.bf16.mxu0 %v1173
    %1610 = vmatpush1.bf16.msra.mxu0 %v1172
    %1611 = vmatprep.subr.bf16.mxu0 %v1177
    %1612 = vmatpush1.bf16.msra.mxu0 %v1176
    %1613 = vmatprep.subr.bf16.mxu0 %v1181
    %1614 = vmatpush1.bf16.msra.mxu0 %v1180
    %1615 = vmatprep.subr.bf16.mxu0 %v1185
    %1616 = vmatpush1.bf16.msra.mxu0 %v1184
    %1617 = vmatprep.subr.bf16.mxu0 %v1189
    %1618 = vmatpush1.bf16.msra.mxu0 %v1188
    %1619 = vmatprep.subr.bf16.mxu0 %v1193
    %1620 = vmatpush1.bf16.msra.mxu0 %v1192
    %1621 = vmatprep.subr.bf16.mxu0 %v1197
    %1622 = vmatpush1.bf16.msra.mxu0 %v1196
    %1623 = vmatprep.subr.bf16.mxu0 %v1201
    %1624 = vmatpush1.bf16.msra.mxu0 %v1200
    %1625 = vmatprep.subr.bf16.mxu0 %v1205
    %1626 = vmatpush1.bf16.msra.mxu0 %v1204
    %1627 = vmatprep.subr.bf16.mxu0 %v1209
    %1628 = vmatpush1.bf16.msra.mxu0 %v1208
    %1629 = vmatprep.subr.bf16.mxu0 %v1213
    %1630 = vmatpush1.bf16.msra.mxu0 %v1212
    %1631 = vmatprep.subr.bf16.mxu0 %v1217
    %1632 = vmatpush1.bf16.msra.mxu0 %v1216
    %1633 = vmatprep.subr.bf16.mxu0 %v1221
    %1634 = vmatpush1.bf16.msra.mxu0 %v1220
    %1635 = vmatprep.subr.bf16.mxu0 %v1225
    %1636 = vmatpush1.bf16.msra.mxu0 %v1224
    %1637 = vmatprep.subr.bf16.mxu0 %v1229
    %1638 = vmatpush1.bf16.msra.mxu0 %v1228
    %1639 = vmatprep.subr.bf16.mxu0 %v1233
    %1640 = vmatpush1.bf16.msra.mxu0 %v1232
    %1641 = vmatprep.mubr.bf16.mxu0 %v411
    %1642 = vmatmul.mubr.bf16.gmra.mrb[0].mxu0 %v410
    %v1643 = vpop.f32.mrb[0].mxu0
    %v1644 = vadd.f32 %v1591, %v1643
    %v1645 = vpop.f32.mrb[0].mxu0
    %v1646 = vadd.f32 %v1593, %v1645
    %v1647 = vpop.f32.mrb[0].mxu0
    %v1648 = vadd.f32 %v1595, %v1647
    %v1649 = vpop.f32.mrb[0].mxu0
    %v1650 = vadd.f32 %v1597, %v1649
    %1651 = vmatprep.mubr.bf16.mxu0 %v418
    %1652 = vmatmul.mubr.bf16.gmra.mrb[0].mxu0 %v417
    %v1653 = vpop.f32.mrb[0].mxu0
    %v1654 = vadd.f32 %v1601, %v1653
    %v1655 = vpop.f32.mrb[0].mxu0
    %v1656 = vadd.f32 %v1603, %v1655
    %v1657 = vpop.f32.mrb[0].mxu0
    %v1658 = vadd.f32 %v1605, %v1657
    %v1659 = vpop.f32.mrb[0].mxu0
    %v1660 = vadd.f32 %v1607, %v1659
    %1661 = vdwg.mxu0
    %1662 = vmatprep.subr.bf16.mxu0 %v1237
    %1663 = vmatpush1.bf16.msra.mxu0 %v1236
    %1664 = vmatprep.subr.bf16.mxu0 %v1241
    %1665 = vmatpush1.bf16.msra.mxu0 %v1240
    %1666 = vmatprep.subr.bf16.mxu0 %v1245
    %1667 = vmatpush1.bf16.msra.mxu0 %v1244
    %1668 = vmatprep.subr.bf16.mxu0 %v1249
    %1669 = vmatpush1.bf16.msra.mxu0 %v1248
    %1670 = vmatprep.subr.bf16.mxu0 %v1253
    %1671 = vmatpush1.bf16.msra.mxu0 %v1252
    %1672 = vmatprep.subr.bf16.mxu0 %v1257
    %1673 = vmatpush1.bf16.msra.mxu0 %v1256
    %1674 = vmatprep.subr.bf16.mxu0 %v1261
    %1675 = vmatpush1.bf16.msra.mxu0 %v1260
    %1676 = vmatprep.subr.bf16.mxu0 %v1265
    %1677 = vmatpush1.bf16.msra.mxu0 %v1264
    %1678 = vmatprep.subr.bf16.mxu0 %v1269
    %1679 = vmatpush1.bf16.msra.mxu0 %v1268
    %1680 = vmatprep.subr.bf16.mxu0 %v1273
    %1681 = vmatpush1.bf16.msra.mxu0 %v1272
    %1682 = vmatprep.subr.bf16.mxu0 %v1277
    %1683 = vmatpush1.bf16.msra.mxu0 %v1276
    %1684 = vmatprep.subr.bf16.mxu0 %v1281
    %1685 = vmatpush1.bf16.msra.mxu0 %v1280
    %1686 = vmatprep.subr.bf16.mxu0 %v1285
    %1687 = vmatpush1.bf16.msra.mxu0 %v1284
    %1688 = vmatprep.subr.bf16.mxu0 %v1289
    %1689 = vmatpush1.bf16.msra.mxu0 %v1288
    %1690 = vmatprep.subr.bf16.mxu0 %v1293
    %1691 = vmatpush1.bf16.msra.mxu0 %v1292
    %1692 = vmatprep.subr.bf16.mxu0 %v1297
    %1693 = vmatpush1.bf16.msra.mxu0 %v1296
    %1694 = vmatprep.mubr.bf16.mxu0 %v413
    %1695 = vmatmul.mubr.bf16.gmra.mrb[0].mxu0 %v412
    %v1696 = vpop.f32.mrb[0].mxu0
    %v1697 = vadd.f32 %v1644, %v1696
    %v1698 = vpop.f32.mrb[0].mxu0
    %v1699 = vadd.f32 %v1646, %v1698
    %v1700 = vpop.f32.mrb[0].mxu0
    %v1701 = vadd.f32 %v1648, %v1700
    %v1702 = vpop.f32.mrb[0].mxu0
    %v1703 = vadd.f32 %v1650, %v1702
    %1704 = vmatprep.mubr.bf16.mxu0 %v420
    %1705 = vmatmul.mubr.bf16.gmra.mrb[0].mxu0 %v419
    %v1706 = vpop.f32.mrb[0].mxu0
    %v1707 = vadd.f32 %v1654, %v1706
    %v1708 = vpop.f32.mrb[0].mxu0
    %v1709 = vadd.f32 %v1656, %v1708
    %v1710 = vpop.f32.mrb[0].mxu0
    %v1711 = vadd.f32 %v1658, %v1710
    %v1712 = vpop.f32.mrb[0].mxu0
    %v1713 = vadd.f32 %v1660, %v1712
    %1714 = vdwg.mxu0
    %1715 = vmatprep.subr.bf16.mxu0 %v1301
    %1716 = vmatpush1.bf16.msra.mxu0 %v1300
    %1717 = vmatprep.subr.bf16.mxu0 %v1305
    %1718 = vmatpush1.bf16.msra.mxu0 %v1304
    %1719 = vmatprep.subr.bf16.mxu0 %v1309
    %1720 = vmatpush1.bf16.msra.mxu0 %v1308
    %1721 = vmatprep.subr.bf16.mxu0 %v1313
    %1722 = vmatpush1.bf16.msra.mxu0 %v1312
    %1723 = vmatprep.subr.bf16.mxu0 %v1317
    %1724 = vmatpush1.bf16.msra.mxu0 %v1316
    %1725 = vmatprep.subr.bf16.mxu0 %v1321
    %1726 = vmatpush1.bf16.msra.mxu0 %v1320
    %1727 = vmatprep.subr.bf16.mxu0 %v1325
    %1728 = vmatpush1.bf16.msra.mxu0 %v1324
    %1729 = vmatprep.subr.bf16.mxu0 %v1329
    %1730 = vmatpush1.bf16.msra.mxu0 %v1328
    %1731 = vmatprep.subr.bf16.mxu0 0
    %1732 = vmatpush1.bf16.msra.mxu0 0
    %1733 = vmatprep.subr.bf16.mxu0 0
    %1734 = vmatpush1.bf16.msra.mxu0 0
    %1735 = vmatprep.subr.bf16.mxu0 0
    %1736 = vmatpush1.bf16.msra.mxu0 0
    %1737 = vmatprep.subr.bf16.mxu0 0
    %1738 = vmatpush1.bf16.msra.mxu0 0
    %1739 = vmatprep.subr.bf16.mxu0 0
    %1740 = vmatpush1.bf16.msra.mxu0 0
    %1741 = vmatprep.subr.bf16.mxu0 0
    %1742 = vmatpush1.bf16.msra.mxu0 0
    %1743 = vmatprep.subr.bf16.mxu0 0
    %1744 = vmatpush1.bf16.msra.mxu0 0
    %1745 = vmatprep.subr.bf16.mxu0 0
    %1746 = vmatpush1.bf16.msra.mxu0 0
    %1747 = vmatprep.mubr.bf16.mxu0 0
    %1748 = vmatmul.mubr.bf16.gmra.mrb[0].mxu0 %v414
    %v1749 = vpop.f32.mrb[0].mxu0
    %v1750 = vadd.f32 %v1697, %v1749
    %v1751 = vpop.f32.mrb[0].mxu0
    %v1752 = vadd.f32 %v1699, %v1751
    %v1753 = vpop.f32.mrb[0].mxu0
    %v1754 = vadd.f32 %v1701, %v1753
    %v1755 = vpop.f32.mrb[0].mxu0
    %v1756 = vadd.f32 %v1703, %v1755
    %1757 = vmatprep.mubr.bf16.mxu0 0
    %1758 = vmatmul.mubr.bf16.gmra.mrb[0].mxu0 %v421
    %v1759 = vpop.f32.mrb[0].mxu0
    %v1760 = vadd.f32 %v1707, %v1759
    %v1761 = vpop.f32.mrb[0].mxu0
    %v1762 = vadd.f32 %v1709, %v1761
    %v1763 = vpop.f32.mrb[0].mxu0
    %v1764 = vadd.f32 %v1711, %v1763
    %v1765 = vpop.f32.mrb[0].mxu0
    %v1766 = vadd.f32 %v1713, %v1765
    %1767 = vdwg.mxu0
    %1768 = vmatprep.subr.bf16.mxu0 %v1111
    %1769 = vmatpush1.bf16.msra.mxu0 %v1110
    %1770 = vmatprep.subr.bf16.mxu0 %v1115
    %1771 = vmatpush1.bf16.msra.mxu0 %v1114
    %1772 = vmatprep.subr.bf16.mxu0 %v1119
    %1773 = vmatpush1.bf16.msra.mxu0 %v1118
    %1774 = vmatprep.subr.bf16.mxu0 %v1123
    %1775 = vmatpush1.bf16.msra.mxu0 %v1122
    %1776 = vmatprep.subr.bf16.mxu0 %v1127
    %1777 = vmatpush1.bf16.msra.mxu0 %v1126
    %1778 = vmatprep.subr.bf16.mxu0 %v1131
    %1779 = vmatpush1.bf16.msra.mxu0 %v1130
    %1780 = vmatprep.subr.bf16.mxu0 %v1135
    %1781 = vmatpush1.bf16.msra.mxu0 %v1134
    %1782 = vmatprep.subr.bf16.mxu0 %v1139
    %1783 = vmatpush1.bf16.msra.mxu0 %v1138
    %1784 = vmatprep.subr.bf16.mxu0 %v1143
    %1785 = vmatpush1.bf16.msra.mxu0 %v1142
    %1786 = vmatprep.subr.bf16.mxu0 %v1147
    %1787 = vmatpush1.bf16.msra.mxu0 %v1146
    %1788 = vmatprep.subr.bf16.mxu0 %v1151
    %1789 = vmatpush1.bf16.msra.mxu0 %v1150
    %1790 = vmatprep.subr.bf16.mxu0 %v1155
    %1791 = vmatpush1.bf16.msra.mxu0 %v1154
    %1792 = vmatprep.subr.bf16.mxu0 %v1159
    %1793 = vmatpush1.bf16.msra.mxu0 %v1158
    %1794 = vmatprep.subr.bf16.mxu0 %v1163
    %1795 = vmatpush1.bf16.msra.mxu0 %v1162
    %1796 = vmatprep.subr.bf16.mxu0 %v1167
    %1797 = vmatpush1.bf16.msra.mxu0 %v1166
    %1798 = vmatprep.subr.bf16.mxu0 %v1171
    %1799 = vmatpush1.bf16.msra.mxu0 %v1170
    %1800 = vmatprep.mubr.bf16.mxu0 %v409
    %1801 = vmatmul.mubr.bf16.gmra.mrb[0].mxu0 %v408
    %v1802 = vpop.f32.mrb[0].mxu0
    %v1803 = vadd.f32 %v355, %v1802
    %v1804 = vpop.f32.mrb[0].mxu0
    %v1805 = vadd.f32 %v359, %v1804
    %v1806 = vpop.f32.mrb[0].mxu0
    %v1807 = vadd.f32 %v355, %v1806
    %v1808 = vpop.f32.mrb[0].mxu0
    %v1809 = vadd.f32 %v359, %v1808
    %1810 = vmatprep.mubr.bf16.mxu0 %v416
    %1811 = vmatmul.mubr.bf16.gmra.mrb[0].mxu0 %v415
    %v1812 = vpop.f32.mrb[0].mxu0
    %v1813 = vadd.f32 %v355, %v1812
    %v1814 = vpop.f32.mrb[0].mxu0
    %v1815 = vadd.f32 %v359, %v1814
    %v1816 = vpop.f32.mrb[0].mxu0
    %v1817 = vadd.f32 %v355, %v1816
    %v1818 = vpop.f32.mrb[0].mxu0
    %v1819 = vadd.f32 %v359, %v1818
    %1820 = vdwg.mxu0
    %1821 = vmatprep.subr.bf16.mxu0 %v1175
    %1822 = vmatpush1.bf16.msra.mxu0 %v1174
    %1823 = vmatprep.subr.bf16.mxu0 %v1179
    %1824 = vmatpush1.bf16.msra.mxu0 %v1178
    %1825 = vmatprep.subr.bf16.mxu0 %v1183
    %1826 = vmatpush1.bf16.msra.mxu0 %v1182
    %1827 = vmatprep.subr.bf16.mxu0 %v1187
    %1828 = vmatpush1.bf16.msra.mxu0 %v1186
    %1829 = vmatprep.subr.bf16.mxu0 %v1191
    %1830 = vmatpush1.bf16.msra.mxu0 %v1190
    %1831 = vmatprep.subr.bf16.mxu0 %v1195
    %1832 = vmatpush1.bf16.msra.mxu0 %v1194
    %1833 = vmatprep.subr.bf16.mxu0 %v1199
    %1834 = vmatpush1.bf16.msra.mxu0 %v1198
    %1835 = vmatprep.subr.bf16.mxu0 %v1203
    %1836 = vmatpush1.bf16.msra.mxu0 %v1202
    %1837 = vmatprep.subr.bf16.mxu0 %v1207
    %1838 = vmatpush1.bf16.msra.mxu0 %v1206
    %1839 = vmatprep.subr.bf16.mxu0 %v1211
    %1840 = vmatpush1.bf16.msra.mxu0 %v1210
    %1841 = vmatprep.subr.bf16.mxu0 %v1215
    %1842 = vmatpush1.bf16.msra.mxu0 %v1214
    %1843 = vmatprep.subr.bf16.mxu0 %v1219
    %1844 = vmatpush1.bf16.msra.mxu0 %v1218
    %1845 = vmatprep.subr.bf16.mxu0 %v1223
    %1846 = vmatpush1.bf16.msra.mxu0 %v1222
    %1847 = vmatprep.subr.bf16.mxu0 %v1227
    %1848 = vmatpush1.bf16.msra.mxu0 %v1226
    %1849 = vmatprep.subr.bf16.mxu0 %v1231
    %1850 = vmatpush1.bf16.msra.mxu0 %v1230
    %1851 = vmatprep.subr.bf16.mxu0 %v1235
    %1852 = vmatpush1.bf16.msra.mxu0 %v1234
    %1853 = vmatprep.mubr.bf16.mxu0 %v411
    %1854 = vmatmul.mubr.bf16.gmra.mrb[0].mxu0 %v410
    %v1855 = vpop.f32.mrb[0].mxu0
    %v1856 = vadd.f32 %v1803, %v1855
    %v1857 = vpop.f32.mrb[0].mxu0
    %v1858 = vadd.f32 %v1805, %v1857
    %v1859 = vpop.f32.mrb[0].mxu0
    %v1860 = vadd.f32 %v1807, %v1859
    %v1861 = vpop.f32.mrb[0].mxu0
    %v1862 = vadd.f32 %v1809, %v1861
    %1863 = vmatprep.mubr.bf16.mxu0 %v418
    %1864 = vmatmul.mubr.bf16.gmra.mrb[0].mxu0 %v417
    %v1865 = vpop.f32.mrb[0].mxu0
    %v1866 = vadd.f32 %v1813, %v1865
    %v1867 = vpop.f32.mrb[0].mxu0
    %v1868 = vadd.f32 %v1815, %v1867
    %v1869 = vpop.f32.mrb[0].mxu0
    %v1870 = vadd.f32 %v1817, %v1869
    %v1871 = vpop.f32.mrb[0].mxu0
    %v1872 = vadd.f32 %v1819, %v1871
    %1873 = vdwg.mxu0
    %1874 = vmatprep.subr.bf16.mxu0 %v1239
    %1875 = vmatpush1.bf16.msra.mxu0 %v1238
    %1876 = vmatprep.subr.bf16.mxu0 %v1243
    %1877 = vmatpush1.bf16.msra.mxu0 %v1242
    %1878 = vmatprep.subr.bf16.mxu0 %v1247
    %1879 = vmatpush1.bf16.msra.mxu0 %v1246
    %1880 = vmatprep.subr.bf16.mxu0 %v1251
    %1881 = vmatpush1.bf16.msra.mxu0 %v1250
    %1882 = vmatprep.subr.bf16.mxu0 %v1255
    %1883 = vmatpush1.bf16.msra.mxu0 %v1254
    %1884 = vmatprep.subr.bf16.mxu0 %v1259
    %1885 = vmatpush1.bf16.msra.mxu0 %v1258
    %1886 = vmatprep.subr.bf16.mxu0 %v1263
    %1887 = vmatpush1.bf16.msra.mxu0 %v1262
    %1888 = vmatprep.subr.bf16.mxu0 %v1267
    %1889 = vmatpush1.bf16.msra.mxu0 %v1266
    %1890 = vmatprep.subr.bf16.mxu0 %v1271
    %1891 = vmatpush1.bf16.msra.mxu0 %v1270
    %1892 = vmatprep.subr.bf16.mxu0 %v1275
    %1893 = vmatpush1.bf16.msra.mxu0 %v1274
    %1894 = vmatprep.subr.bf16.mxu0 %v1279
    %1895 = vmatpush1.bf16.msra.mxu0 %v1278
    %1896 = vmatprep.subr.bf16.mxu0 %v1283
    %1897 = vmatpush1.bf16.msra.mxu0 %v1282
    %1898 = vmatprep.subr.bf16.mxu0 %v1287
    %1899 = vmatpush1.bf16.msra.mxu0 %v1286
    %1900 = vmatprep.subr.bf16.mxu0 %v1291
    %1901 = vmatpush1.bf16.msra.mxu0 %v1290
    %1902 = vmatprep.subr.bf16.mxu0 %v1295
    %1903 = vmatpush1.bf16.msra.mxu0 %v1294
    %1904 = vmatprep.subr.bf16.mxu0 %v1299
    %1905 = vmatpush1.bf16.msra.mxu0 %v1298
    %1906 = vmatprep.mubr.bf16.mxu0 %v413
    %1907 = vmatmul.mubr.bf16.gmra.mrb[0].mxu0 %v412
    %v1908 = vpop.f32.mrb[0].mxu0
    %v1909 = vadd.f32 %v1856, %v1908
    %v1910 = vpop.f32.mrb[0].mxu0
    %v1911 = vadd.f32 %v1858, %v1910
    %v1912 = vpop.f32.mrb[0].mxu0
    %v1913 = vadd.f32 %v1860, %v1912
    %v1914 = vpop.f32.mrb[0].mxu0
    %v1915 = vadd.f32 %v1862, %v1914
    %1916 = vmatprep.mubr.bf16.mxu0 %v420
    %1917 = vmatmul.mubr.bf16.gmra.mrb[0].mxu0 %v419
    %v1918 = vpop.f32.mrb[0].mxu0
    %v1919 = vadd.f32 %v1866, %v1918
    %v1920 = vpop.f32.mrb[0].mxu0
    %v1921 = vadd.f32 %v1868, %v1920
    %v1922 = vpop.f32.mrb[0].mxu0
    %v1923 = vadd.f32 %v1870, %v1922
    %v1924 = vpop.f32.mrb[0].mxu0
    %v1925 = vadd.f32 %v1872, %v1924
    %1926 = vdwg.mxu0
    %1927 = vmatprep.subr.bf16.mxu0 %v1303
    %1928 = vmatpush1.bf16.msra.mxu0 %v1302
    %1929 = vmatprep.subr.bf16.mxu0 %v1307
    %1930 = vmatpush1.bf16.msra.mxu0 %v1306
    %1931 = vmatprep.subr.bf16.mxu0 %v1311
    %1932 = vmatpush1.bf16.msra.mxu0 %v1310
    %1933 = vmatprep.subr.bf16.mxu0 %v1315
    %1934 = vmatpush1.bf16.msra.mxu0 %v1314
    %1935 = vmatprep.subr.bf16.mxu0 %v1319
    %1936 = vmatpush1.bf16.msra.mxu0 %v1318
    %1937 = vmatprep.subr.bf16.mxu0 %v1323
    %1938 = vmatpush1.bf16.msra.mxu0 %v1322
    %1939 = vmatprep.subr.bf16.mxu0 %v1327
    %1940 = vmatpush1.bf16.msra.mxu0 %v1326
    %1941 = vmatprep.subr.bf16.mxu0 %v1331
    %1942 = vmatpush1.bf16.msra.mxu0 %v1330
    %1943 = vmatprep.subr.bf16.mxu0 0
    %1944 = vmatpush1.bf16.msra.mxu0 0
    %1945 = vmatprep.subr.bf16.mxu0 0
    %1946 = vmatpush1.bf16.msra.mxu0 0
    %1947 = vmatprep.subr.bf16.mxu0 0
    %1948 = vmatpush1.bf16.msra.mxu0 0
    %1949 = vmatprep.subr.bf16.mxu0 0
    %1950 = vmatpush1.bf16.msra.mxu0 0
    %1951 = vmatprep.subr.bf16.mxu0 0
    %1952 = vmatpush1.bf16.msra.mxu0 0
    %1953 = vmatprep.subr.bf16.mxu0 0
    %1954 = vmatpush1.bf16.msra.mxu0 0
    %1955 = vmatprep.subr.bf16.mxu0 0
    %1956 = vmatpush1.bf16.msra.mxu0 0
    %1957 = vmatprep.subr.bf16.mxu0 0
    %1958 = vmatpush1.bf16.msra.mxu0 0
    %1959 = vmatprep.mubr.bf16.mxu0 0
    %1960 = vmatmul.mubr.bf16.gmra.mrb[0].mxu0 %v414
    %v1961 = vpop.f32.mrb[0].mxu0
    %v1962 = vadd.f32 %v1909, %v1961
    %v1963 = vpop.f32.mrb[0].mxu0
    %v1964 = vadd.f32 %v1911, %v1963
    %v1965 = vpop.f32.mrb[0].mxu0
    %v1966 = vadd.f32 %v1913, %v1965
    %v1967 = vpop.f32.mrb[0].mxu0
    %v1968 = vadd.f32 %v1915, %v1967
    %1969 = vmatprep.mubr.bf16.mxu0 0
    %1970 = vmatmul.mubr.bf16.gmra.mrb[0].mxu0 %v421
    %v1971 = vpop.f32.mrb[0].mxu0
    %v1972 = vadd.f32 %v1919, %v1971
    %v1973 = vpop.f32.mrb[0].mxu0
    %v1974 = vadd.f32 %v1921, %v1973
    %v1975 = vpop.f32.mrb[0].mxu0
    %v1976 = vadd.f32 %v1923, %v1975
    %v1977 = vpop.f32.mrb[0].mxu0
    %v1978 = vadd.f32 %v1925, %v1977
    %1979 = vdwg.mxu0
    %v1980 = vmax.f32 %v1750, 0.0
    %v1981 = vmax.f32 %v1752, 0.0
    %v1982 = vmax.f32 %v1962, 0.0
    %v1983 = vmax.f32 %v1964, 0.0
    %v1984 = vmax.f32 %v1754, 0.0
    %v1985 = vmax.f32 %v1756, 0.0
    %v1986 = vmax.f32 %v1966, 0.0
    %v1987 = vmax.f32 %v1968, 0.0
    %v1988 = vmax.f32 %v1760, 0.0
    %v1989 = vmax.f32 %v1762, 0.0
    %v1990 = vmax.f32 %v1972, 0.0
    %v1991 = vmax.f32 %v1974, 0.0
    %v1992 = vmax.f32 %v1764, 0.0
    %v1993 = vmax.f32 %v1766, 0.0
    %v1994 = vmax.f32 %v1976, 0.0
    %v1995 = vmax.f32 %v1978, 0.0
    %v1996 = vpack.c.bf16 %v1984, %v1980
    %v1997 = vpack.c.bf16 %v1985, %v1981
    %v1998 = vpack.c.bf16 %v1986, %v1982
    %v1999 = vpack.c.bf16 %v1987, %v1983
    %v2000 = vpack.c.bf16 %v1992, %v1988
    %v2001 = vpack.c.bf16 %v1993, %v1989
    %v2002 = vpack.c.bf16 %v1994, %v1990
    %v2003 = vpack.c.bf16 %v1995, %v1991
    %v2004 = vld [vmem:[#allocation7] sm:$0xff]
    %v2005 = vld [vmem:[#allocation7 + $0x8] sm:$0xff]
    %v2006 = vld [vmem:[#allocation7 + $0x10] sm:$0xff]
    %v2007 = vld [vmem:[#allocation7 + $0x18] sm:$0xff]
    %v2008 = vld [vmem:[#allocation7 + $0x20] sm:$0xff]
    %v2009 = vld [vmem:[#allocation7 + $0x28] sm:$0xff]
    %v2010 = vld [vmem:[#allocation7 + $0x30] sm:$0xff]
    %v2011 = vld [vmem:[#allocation7 + $0x38] sm:$0xff]
    %v2012 = vld [vmem:[#allocation7 + $0x40] sm:$0xff]
    %v2013 = vld [vmem:[#allocation7 + $0x48] sm:$0xff]
    %v2014 = vld [vmem:[#allocation7 + $0x50] sm:$0xff]
    %v2015 = vld [vmem:[#allocation7 + $0x58] sm:$0xff]
    %v2016 = vld [vmem:[#allocation7 + $0x60] sm:$0xff]
    %v2017 = vld [vmem:[#allocation7 + $0x68] sm:$0xff]
    %v2018 = vld [vmem:[#allocation7 + $0x70] sm:$0xff]
    %v2019 = vld [vmem:[#allocation7 + $0x78] sm:$0xff]
    %v2020 = vld [vmem:[#allocation7 + $0x80] sm:$0xff]
    %v2021 = vld [vmem:[#allocation7 + $0x88] sm:$0xff]
    %v2022 = vld [vmem:[#allocation7 + $0x90] sm:$0xff]
    %v2023 = vld [vmem:[#allocation7 + $0x98] sm:$0xff]
    %v2024 = vld [vmem:[#allocation7 + $0xa0] sm:$0xff]
    %v2025 = vld [vmem:[#allocation7 + $0xa8] sm:$0xff]
    %v2026 = vld [vmem:[#allocation7 + $0xb0] sm:$0xff]
    %v2027 = vld [vmem:[#allocation7 + $0xb8] sm:$0xff]
    %v2028 = vld [vmem:[#allocation7 + $0xc0] sm:$0xff]
    %v2029 = vld [vmem:[#allocation7 + $0xc8] sm:$0xff]
    %v2030 = vld [vmem:[#allocation7 + $0xd0] sm:$0xff]
    %v2031 = vld [vmem:[#allocation7 + $0xd8] sm:$0xff]
    %v2032 = vld [vmem:[#allocation7 + $0xe0] sm:$0xff]
    %v2033 = vld [vmem:[#allocation7 + $0xe8] sm:$0xff]
    %v2034 = vld [vmem:[#allocation7 + $0xf0] sm:$0xff]
    %v2035 = vld [vmem:[#allocation7 + $0xf8] sm:$0xff]
    %v2036 = vld [vmem:[#allocation7 + $0x100] sm:$0xff]
    %v2037 = vld [vmem:[#allocation7 + $0x108] sm:$0xff]
    %v2038 = vld [vmem:[#allocation7 + $0x110] sm:$0xff]
    %v2039 = vld [vmem:[#allocation7 + $0x118] sm:$0xff]
    %v2040 = vld [vmem:[#allocation7 + $0x120] sm:$0xff]
    %v2041 = vld [vmem:[#allocation7 + $0x128] sm:$0xff]
    %v2042 = vld [vmem:[#allocation7 + $0x130] sm:$0xff]
    %v2043 = vld [vmem:[#allocation7 + $0x138] sm:$0xff]
    %v2044 = vld [vmem:[#allocation7 + $0x140] sm:$0xff]
    %v2045 = vld [vmem:[#allocation7 + $0x148] sm:$0xff]
    %v2046 = vld [vmem:[#allocation7 + $0x150] sm:$0xff]
    %v2047 = vld [vmem:[#allocation7 + $0x158] sm:$0xff]
    %v2048 = vld [vmem:[#allocation7 + $0x160] sm:$0xff]
    %v2049 = vld [vmem:[#allocation7 + $0x168] sm:$0xff]
    %v2050 = vld [vmem:[#allocation7 + $0x170] sm:$0xff]
    %v2051 = vld [vmem:[#allocation7 + $0x178] sm:$0xff]
    %v2052 = vld [vmem:[#allocation7 + $0x180] sm:$0xff]
    %v2053 = vld [vmem:[#allocation7 + $0x188] sm:$0xff]
    %v2054 = vld [vmem:[#allocation7 + $0x190] sm:$0xff]
    %v2055 = vld [vmem:[#allocation7 + $0x198] sm:$0xff]
    %v2056 = vld [vmem:[#allocation7 + $0x1a0] sm:$0xff]
    %v2057 = vld [vmem:[#allocation7 + $0x1a8] sm:$0xff]
    %v2058 = vld [vmem:[#allocation7 + $0x1b0] sm:$0xff]
    %v2059 = vld [vmem:[#allocation7 + $0x1b8] sm:$0xff]
    %v2060 = vld [vmem:[#allocation7 + $0x1c0] sm:$0xff]
    %v2061 = vld [vmem:[#allocation7 + $0x1c8] sm:$0xff]
    %v2062 = vld [vmem:[#allocation7 + $0x1d0] sm:$0xff]
    %v2063 = vld [vmem:[#allocation7 + $0x1d8] sm:$0xff]
    %v2064 = vld [vmem:[#allocation7 + $0x1e0] sm:$0xff]
    %v2065 = vld [vmem:[#allocation7 + $0x1e8] sm:$0xff]
    %v2066 = vld [vmem:[#allocation7 + $0x1f0] sm:$0xff]
    %v2067 = vld [vmem:[#allocation7 + $0x1f8] sm:$0xff]
    %v2068 = vld [vmem:[#allocation7 + $0x200] sm:$0xff]
    %v2069 = vld [vmem:[#allocation7 + $0x208] sm:$0xff]
    %v2070 = vld [vmem:[#allocation7 + $0x210] sm:$0xff]
    %v2071 = vld [vmem:[#allocation7 + $0x218] sm:$0xff]
    %v2072 = vld [vmem:[#allocation7 + $0x220] sm:$0xff]
    %v2073 = vld [vmem:[#allocation7 + $0x228] sm:$0xff]
    %v2074 = vld [vmem:[#allocation7 + $0x230] sm:$0xff]
    %v2075 = vld [vmem:[#allocation7 + $0x238] sm:$0xff]
    %v2076 = vld [vmem:[#allocation7 + $0x240] sm:$0xff]
    %v2077 = vld [vmem:[#allocation7 + $0x248] sm:$0xff]
    %v2078 = vld [vmem:[#allocation7 + $0x250] sm:$0xff]
    %v2079 = vld [vmem:[#allocation7 + $0x258] sm:$0xff]
    %v2080 = vld [vmem:[#allocation7 + $0x260] sm:$0xff]
    %v2081 = vld [vmem:[#allocation7 + $0x268] sm:$0xff]
    %v2082 = vld [vmem:[#allocation7 + $0x270] sm:$0xff]
    %v2083 = vld [vmem:[#allocation7 + $0x278] sm:$0xff]
    %v2084 = vld [vmem:[#allocation7 + $0x280] sm:$0xff]
    %v2085 = vld [vmem:[#allocation7 + $0x288] sm:$0xff]
    %v2086 = vld [vmem:[#allocation7 + $0x290] sm:$0xff]
    %v2087 = vld [vmem:[#allocation7 + $0x298] sm:$0xff]
    %v2088 = vld [vmem:[#allocation7 + $0x2a0] sm:$0xff]
    %v2089 = vld [vmem:[#allocation7 + $0x2a8] sm:$0xff]
    %v2090 = vld [vmem:[#allocation7 + $0x2b0] sm:$0xff]
    %v2091 = vld [vmem:[#allocation7 + $0x2b8] sm:$0xff]
    %v2092 = vld [vmem:[#allocation7 + $0x2c0] sm:$0xff]
    %v2093 = vld [vmem:[#allocation7 + $0x2c8] sm:$0xff]
    %v2094 = vld [vmem:[#allocation7 + $0x2d0] sm:$0xff]
    %v2095 = vld [vmem:[#allocation7 + $0x2d8] sm:$0xff]
    %v2096 = vld [vmem:[#allocation7 + $0x2e0] sm:$0xff]
    %v2097 = vld [vmem:[#allocation7 + $0x2e8] sm:$0xff]
    %v2098 = vld [vmem:[#allocation7 + $0x2f0] sm:$0xff]
    %v2099 = vld [vmem:[#allocation7 + $0x2f8] sm:$0xff]
    %v2100 = vld [vmem:[#allocation7 + $0x300] sm:$0xff]
    %v2101 = vld [vmem:[#allocation7 + $0x308] sm:$0xff]
    %v2102 = vld [vmem:[#allocation7 + $0x310] sm:$0xff]
    %v2103 = vld [vmem:[#allocation7 + $0x318] sm:$0xff]
    %v2104 = vld [vmem:[#allocation7 + $0x320] sm:$0xff]
    %v2105 = vld [vmem:[#allocation7 + $0x328] sm:$0xff]
    %v2106 = vld [vmem:[#allocation7 + $0x330] sm:$0xff]
    %v2107 = vld [vmem:[#allocation7 + $0x338] sm:$0xff]
    %v2108 = vld [vmem:[#allocation7 + $0x340] sm:$0xff]
    %v2109 = vld [vmem:[#allocation7 + $0x348] sm:$0xff]
    %v2110 = vld [vmem:[#allocation7 + $0x350] sm:$0xff]
    %v2111 = vld [vmem:[#allocation7 + $0x358] sm:$0xff]
    %v2112 = vld [vmem:[#allocation7 + $0x360] sm:$0xff]
    %v2113 = vld [vmem:[#allocation7 + $0x368] sm:$0xff]
    %v2114 = vld [vmem:[#allocation7 + $0x370] sm:$0xff]
    %v2115 = vld [vmem:[#allocation7 + $0x378] sm:$0xff]
    %v2116 = vld [vmem:[#allocation7 + $0x380] sm:$0xff]
    %v2117 = vld [vmem:[#allocation7 + $0x388] sm:$0xff]
    %v2118 = vld [vmem:[#allocation7 + $0x390] sm:$0xff]
    %v2119 = vld [vmem:[#allocation7 + $0x398] sm:$0xff]
    %v2120 = vld [vmem:[#allocation7 + $0x3a0] sm:$0xff]
    %v2121 = vld [vmem:[#allocation7 + $0x3a8] sm:$0xff]
    %v2122 = vld [vmem:[#allocation7 + $0x3b0] sm:$0xff]
    %v2123 = vld [vmem:[#allocation7 + $0x3b8] sm:$0xff]
    %v2124 = vld [vmem:[#allocation7 + $0x3c0] sm:$0xff]
    %v2125 = vld [vmem:[#allocation7 + $0x3c8] sm:$0xff]
    %v2126 = vld [vmem:[#allocation7 + $0x3d0] sm:$0xff]
    %v2127 = vld [vmem:[#allocation7 + $0x3d8] sm:$0xff]
    %v2128 = vld [vmem:[#allocation7 + $0x3e0] sm:$0xff]
    %v2129 = vld [vmem:[#allocation7 + $0x3e8] sm:$0xff]
    %v2130 = vld [vmem:[#allocation7 + $0x3f0] sm:$0xff]
    %v2131 = vld [vmem:[#allocation7 + $0x3f8] sm:$0xff]
    %v2132 = vld [vmem:[%s4] sm:$0xf]
    %v2134 = vlaneseq
    %v2135 = vshrl.u32 %v2134, 7
    %v2136 = vsub.s32 0, %v2135
    %v2137 = vrot.slane %v2132, %v2136
    %v2138 = vlaneseq
    %v2139 = vshrl.u32 %v2138, 7
    %v2140 = vsub.s32 1, %v2139
    %v2141 = vrot.slane %v2132, %v2140
    %v2142 = vlaneseq
    %v2143 = vshrl.u32 %v2142, 7
    %v2144 = vsub.s32 2, %v2143
    %v2145 = vrot.slane %v2132, %v2144
    %v2146 = vlaneseq
    %v2147 = vshrl.u32 %v2146, 7
    %v2148 = vsub.s32 3, %v2147
    %v2149 = vrot.slane %v2132, %v2148
    %v2282 = vunpack.c.l.b16 %v2004
    %v2283 = vunpack.c.h.b16 %v2004
    %v2284 = vunpack.c.l.b16 %v2005
    %v2285 = vunpack.c.h.b16 %v2005
    %v2286 = vunpack.c.l.b16 %v2006
    %v2287 = vunpack.c.h.b16 %v2006
    %v2288 = vunpack.c.l.b16 %v2007
    %v2289 = vunpack.c.h.b16 %v2007
    %v2290 = vunpack.c.l.b16 %v2008
    %v2291 = vunpack.c.h.b16 %v2008
    %v2292 = vunpack.c.l.b16 %v2009
    %v2293 = vunpack.c.h.b16 %v2009
    %v2294 = vunpack.c.l.b16 %v2010
    %v2295 = vunpack.c.h.b16 %v2010
    %v2296 = vunpack.c.l.b16 %v2011
    %v2297 = vunpack.c.h.b16 %v2011
    %v2298 = vunpack.c.l.b16 %v2012
    %v2299 = vunpack.c.h.b16 %v2012
    %v2300 = vunpack.c.l.b16 %v2013
    %v2301 = vunpack.c.h.b16 %v2013
    %v2302 = vunpack.c.l.b16 %v2014
    %v2303 = vunpack.c.h.b16 %v2014
    %v2304 = vunpack.c.l.b16 %v2015
    %v2305 = vunpack.c.h.b16 %v2015
    %v2306 = vunpack.c.l.b16 %v2016
    %v2307 = vunpack.c.h.b16 %v2016
    %v2308 = vunpack.c.l.b16 %v2017
    %v2309 = vunpack.c.h.b16 %v2017
    %v2310 = vunpack.c.l.b16 %v2018
    %v2311 = vunpack.c.h.b16 %v2018
    %v2312 = vunpack.c.l.b16 %v2019
    %v2313 = vunpack.c.h.b16 %v2019
    %v2314 = vunpack.c.l.b16 %v2020
    %v2315 = vunpack.c.h.b16 %v2020
    %v2316 = vunpack.c.l.b16 %v2021
    %v2317 = vunpack.c.h.b16 %v2021
    %v2318 = vunpack.c.l.b16 %v2022
    %v2319 = vunpack.c.h.b16 %v2022
    %v2320 = vunpack.c.l.b16 %v2023
    %v2321 = vunpack.c.h.b16 %v2023
    %v2322 = vunpack.c.l.b16 %v2024
    %v2323 = vunpack.c.h.b16 %v2024
    %v2324 = vunpack.c.l.b16 %v2025
    %v2325 = vunpack.c.h.b16 %v2025
    %v2326 = vunpack.c.l.b16 %v2026
    %v2327 = vunpack.c.h.b16 %v2026
    %v2328 = vunpack.c.l.b16 %v2027
    %v2329 = vunpack.c.h.b16 %v2027
    %v2330 = vunpack.c.l.b16 %v2028
    %v2331 = vunpack.c.h.b16 %v2028
    %v2332 = vunpack.c.l.b16 %v2029
    %v2333 = vunpack.c.h.b16 %v2029
    %v2334 = vunpack.c.l.b16 %v2030
    %v2335 = vunpack.c.h.b16 %v2030
    %v2336 = vunpack.c.l.b16 %v2031
    %v2337 = vunpack.c.h.b16 %v2031
    %v2338 = vunpack.c.l.b16 %v2032
    %v2339 = vunpack.c.h.b16 %v2032
    %v2340 = vunpack.c.l.b16 %v2033
    %v2341 = vunpack.c.h.b16 %v2033
    %v2342 = vunpack.c.l.b16 %v2034
    %v2343 = vunpack.c.h.b16 %v2034
    %v2344 = vunpack.c.l.b16 %v2035
    %v2345 = vunpack.c.h.b16 %v2035
    %v2346 = vunpack.c.l.b16 %v2036
    %v2347 = vunpack.c.h.b16 %v2036
    %v2348 = vunpack.c.l.b16 %v2037
    %v2349 = vunpack.c.h.b16 %v2037
    %v2350 = vunpack.c.l.b16 %v2038
    %v2351 = vunpack.c.h.b16 %v2038
    %v2352 = vunpack.c.l.b16 %v2039
    %v2353 = vunpack.c.h.b16 %v2039
    %v2354 = vunpack.c.l.b16 %v2040
    %v2355 = vunpack.c.h.b16 %v2040
    %v2356 = vunpack.c.l.b16 %v2041
    %v2357 = vunpack.c.h.b16 %v2041
    %v2358 = vunpack.c.l.b16 %v2042
    %v2359 = vunpack.c.h.b16 %v2042
    %v2360 = vunpack.c.l.b16 %v2043
    %v2361 = vunpack.c.h.b16 %v2043
    %v2362 = vunpack.c.l.b16 %v2044
    %v2363 = vunpack.c.h.b16 %v2044
    %v2364 = vunpack.c.l.b16 %v2045
    %v2365 = vunpack.c.h.b16 %v2045
    %v2366 = vunpack.c.l.b16 %v2046
    %v2367 = vunpack.c.h.b16 %v2046
    %v2368 = vunpack.c.l.b16 %v2047
    %v2369 = vunpack.c.h.b16 %v2047
    %v2370 = vunpack.c.l.b16 %v2048
    %v2371 = vunpack.c.h.b16 %v2048
    %v2372 = vunpack.c.l.b16 %v2049
    %v2373 = vunpack.c.h.b16 %v2049
    %v2374 = vunpack.c.l.b16 %v2050
    %v2375 = vunpack.c.h.b16 %v2050
    %v2376 = vunpack.c.l.b16 %v2051
    %v2377 = vunpack.c.h.b16 %v2051
    %v2378 = vunpack.c.l.b16 %v2052
    %v2379 = vunpack.c.h.b16 %v2052
    %v2380 = vunpack.c.l.b16 %v2053
    %v2381 = vunpack.c.h.b16 %v2053
    %v2382 = vunpack.c.l.b16 %v2054
    %v2383 = vunpack.c.h.b16 %v2054
    %v2384 = vunpack.c.l.b16 %v2055
    %v2385 = vunpack.c.h.b16 %v2055
    %v2386 = vunpack.c.l.b16 %v2056
    %v2387 = vunpack.c.h.b16 %v2056
    %v2388 = vunpack.c.l.b16 %v2057
    %v2389 = vunpack.c.h.b16 %v2057
    %v2390 = vunpack.c.l.b16 %v2058
    %v2391 = vunpack.c.h.b16 %v2058
    %v2392 = vunpack.c.l.b16 %v2059
    %v2393 = vunpack.c.h.b16 %v2059
    %v2394 = vunpack.c.l.b16 %v2060
    %v2395 = vunpack.c.h.b16 %v2060
    %v2396 = vunpack.c.l.b16 %v2061
    %v2397 = vunpack.c.h.b16 %v2061
    %v2398 = vunpack.c.l.b16 %v2062
    %v2399 = vunpack.c.h.b16 %v2062
    %v2400 = vunpack.c.l.b16 %v2063
    %v2401 = vunpack.c.h.b16 %v2063
    %v2402 = vunpack.c.l.b16 %v2064
    %v2403 = vunpack.c.h.b16 %v2064
    %v2404 = vunpack.c.l.b16 %v2065
    %v2405 = vunpack.c.h.b16 %v2065
    %v2406 = vunpack.c.l.b16 %v2066
    %v2407 = vunpack.c.h.b16 %v2066
    %v2408 = vunpack.c.l.b16 %v2067
    %v2409 = vunpack.c.h.b16 %v2067
    %v2410 = vunpack.c.l.b16 %v2068
    %v2411 = vunpack.c.h.b16 %v2068
    %v2412 = vunpack.c.l.b16 %v2069
    %v2413 = vunpack.c.h.b16 %v2069
    %v2414 = vunpack.c.l.b16 %v2070
    %v2415 = vunpack.c.h.b16 %v2070
    %v2416 = vunpack.c.l.b16 %v2071
    %v2417 = vunpack.c.h.b16 %v2071
    %v2418 = vunpack.c.l.b16 %v2072
    %v2419 = vunpack.c.h.b16 %v2072
    %v2420 = vunpack.c.l.b16 %v2073
    %v2421 = vunpack.c.h.b16 %v2073
    %v2422 = vunpack.c.l.b16 %v2074
    %v2423 = vunpack.c.h.b16 %v2074
    %v2424 = vunpack.c.l.b16 %v2075
    %v2425 = vunpack.c.h.b16 %v2075
    %v2426 = vunpack.c.l.b16 %v2076
    %v2427 = vunpack.c.h.b16 %v2076
    %v2428 = vunpack.c.l.b16 %v2077
    %v2429 = vunpack.c.h.b16 %v2077
    %v2430 = vunpack.c.l.b16 %v2078
    %v2431 = vunpack.c.h.b16 %v2078
    %v2432 = vunpack.c.l.b16 %v2079
    %v2433 = vunpack.c.h.b16 %v2079
    %v2434 = vunpack.c.l.b16 %v2080
    %v2435 = vunpack.c.h.b16 %v2080
    %v2436 = vunpack.c.l.b16 %v2081
    %v2437 = vunpack.c.h.b16 %v2081
    %v2438 = vunpack.c.l.b16 %v2082
    %v2439 = vunpack.c.h.b16 %v2082
    %v2440 = vunpack.c.l.b16 %v2083
    %v2441 = vunpack.c.h.b16 %v2083
    %v2442 = vunpack.c.l.b16 %v2084
    %v2443 = vunpack.c.h.b16 %v2084
    %v2444 = vunpack.c.l.b16 %v2085
    %v2445 = vunpack.c.h.b16 %v2085
    %v2446 = vunpack.c.l.b16 %v2086
    %v2447 = vunpack.c.h.b16 %v2086
    %v2448 = vunpack.c.l.b16 %v2087
    %v2449 = vunpack.c.h.b16 %v2087
    %v2450 = vunpack.c.l.b16 %v2088
    %v2451 = vunpack.c.h.b16 %v2088
    %v2452 = vunpack.c.l.b16 %v2089
    %v2453 = vunpack.c.h.b16 %v2089
    %v2454 = vunpack.c.l.b16 %v2090
    %v2455 = vunpack.c.h.b16 %v2090
    %v2456 = vunpack.c.l.b16 %v2091
    %v2457 = vunpack.c.h.b16 %v2091
    %v2458 = vunpack.c.l.b16 %v2092
    %v2459 = vunpack.c.h.b16 %v2092
    %v2460 = vunpack.c.l.b16 %v2093
    %v2461 = vunpack.c.h.b16 %v2093
    %v2462 = vunpack.c.l.b16 %v2094
    %v2463 = vunpack.c.h.b16 %v2094
    %v2464 = vunpack.c.l.b16 %v2095
    %v2465 = vunpack.c.h.b16 %v2095
    %v2466 = vunpack.c.l.b16 %v2096
    %v2467 = vunpack.c.h.b16 %v2096
    %v2468 = vunpack.c.l.b16 %v2097
    %v2469 = vunpack.c.h.b16 %v2097
    %v2470 = vunpack.c.l.b16 %v2098
    %v2471 = vunpack.c.h.b16 %v2098
    %v2472 = vunpack.c.l.b16 %v2099
    %v2473 = vunpack.c.h.b16 %v2099
    %v2474 = vunpack.c.l.b16 %v2100
    %v2475 = vunpack.c.h.b16 %v2100
    %v2476 = vunpack.c.l.b16 %v2101
    %v2477 = vunpack.c.h.b16 %v2101
    %v2478 = vunpack.c.l.b16 %v2102
    %v2479 = vunpack.c.h.b16 %v2102
    %v2480 = vunpack.c.l.b16 %v2103
    %v2481 = vunpack.c.h.b16 %v2103
    %v2482 = vunpack.c.l.b16 %v2104
    %v2483 = vunpack.c.h.b16 %v2104
    %v2484 = vunpack.c.l.b16 %v2105
    %v2485 = vunpack.c.h.b16 %v2105
    %v2486 = vunpack.c.l.b16 %v2106
    %v2487 = vunpack.c.h.b16 %v2106
    %v2488 = vunpack.c.l.b16 %v2107
    %v2489 = vunpack.c.h.b16 %v2107
    %v2490 = vunpack.c.l.b16 %v2108
    %v2491 = vunpack.c.h.b16 %v2108
    %v2492 = vunpack.c.l.b16 %v2109
    %v2493 = vunpack.c.h.b16 %v2109
    %v2494 = vunpack.c.l.b16 %v2110
    %v2495 = vunpack.c.h.b16 %v2110
    %v2496 = vunpack.c.l.b16 %v2111
    %v2497 = vunpack.c.h.b16 %v2111
    %v2498 = vunpack.c.l.b16 %v2112
    %v2499 = vunpack.c.h.b16 %v2112
    %v2500 = vunpack.c.l.b16 %v2113
    %v2501 = vunpack.c.h.b16 %v2113
    %v2502 = vunpack.c.l.b16 %v2114
    %v2503 = vunpack.c.h.b16 %v2114
    %v2504 = vunpack.c.l.b16 %v2115
    %v2505 = vunpack.c.h.b16 %v2115
    %v2506 = vunpack.c.l.b16 %v2116
    %v2507 = vunpack.c.h.b16 %v2116
    %v2508 = vunpack.c.l.b16 %v2117
    %v2509 = vunpack.c.h.b16 %v2117
    %v2510 = vunpack.c.l.b16 %v2118
    %v2511 = vunpack.c.h.b16 %v2118
    %v2512 = vunpack.c.l.b16 %v2119
    %v2513 = vunpack.c.h.b16 %v2119
    %v2514 = vunpack.c.l.b16 %v2120
    %v2515 = vunpack.c.h.b16 %v2120
    %v2516 = vunpack.c.l.b16 %v2121
    %v2517 = vunpack.c.h.b16 %v2121
    %v2518 = vunpack.c.l.b16 %v2122
    %v2519 = vunpack.c.h.b16 %v2122
    %v2520 = vunpack.c.l.b16 %v2123
    %v2521 = vunpack.c.h.b16 %v2123
    %v2522 = vunpack.c.l.b16 %v2124
    %v2523 = vunpack.c.h.b16 %v2124
    %v2524 = vunpack.c.l.b16 %v2125
    %v2525 = vunpack.c.h.b16 %v2125
    %v2526 = vunpack.c.l.b16 %v2126
    %v2527 = vunpack.c.h.b16 %v2126
    %v2528 = vunpack.c.l.b16 %v2127
    %v2529 = vunpack.c.h.b16 %v2127
    %v2530 = vunpack.c.l.b16 %v2128
    %v2531 = vunpack.c.h.b16 %v2128
    %v2532 = vunpack.c.l.b16 %v2129
    %v2533 = vunpack.c.h.b16 %v2129
    %v2534 = vunpack.c.l.b16 %v2130
    %v2535 = vunpack.c.h.b16 %v2130
    %v2536 = vunpack.c.l.b16 %v2131
    %v2537 = vunpack.c.h.b16 %v2131
    %v2538 = vpack.c.b16 %v2286, %v2282
    %v2539 = vpack.c.b16 %v2287, %v2283
    %v2540 = vpack.c.b16 %v2288, %v2284
    %v2541 = vpack.c.b16 %v2289, %v2285
    %v2542 = vpack.c.b16 %v2294, %v2290
    %v2543 = vpack.c.b16 %v2295, %v2291
    %v2544 = vpack.c.b16 %v2296, %v2292
    %v2545 = vpack.c.b16 %v2297, %v2293
    %v2546 = vpack.c.b16 %v2302, %v2298
    %v2547 = vpack.c.b16 %v2303, %v2299
    %v2548 = vpack.c.b16 %v2304, %v2300
    %v2549 = vpack.c.b16 %v2305, %v2301
    %v2550 = vpack.c.b16 %v2310, %v2306
    %v2551 = vpack.c.b16 %v2311, %v2307
    %v2552 = vpack.c.b16 %v2312, %v2308
    %v2553 = vpack.c.b16 %v2313, %v2309
    %v2554 = vpack.c.b16 %v2318, %v2314
    %v2555 = vpack.c.b16 %v2319, %v2315
    %v2556 = vpack.c.b16 %v2320, %v2316
    %v2557 = vpack.c.b16 %v2321, %v2317
    %v2558 = vpack.c.b16 %v2326, %v2322
    %v2559 = vpack.c.b16 %v2327, %v2323
    %v2560 = vpack.c.b16 %v2328, %v2324
    %v2561 = vpack.c.b16 %v2329, %v2325
    %v2562 = vpack.c.b16 %v2334, %v2330
    %v2563 = vpack.c.b16 %v2335, %v2331
    %v2564 = vpack.c.b16 %v2336, %v2332
    %v2565 = vpack.c.b16 %v2337, %v2333
    %v2566 = vpack.c.b16 %v2342, %v2338
    %v2567 = vpack.c.b16 %v2343, %v2339
    %v2568 = vpack.c.b16 %v2344, %v2340
    %v2569 = vpack.c.b16 %v2345, %v2341
    %v2570 = vpack.c.b16 %v2350, %v2346
    %v2571 = vpack.c.b16 %v2351, %v2347
    %v2572 = vpack.c.b16 %v2352, %v2348
    %v2573 = vpack.c.b16 %v2353, %v2349
    %v2574 = vpack.c.b16 %v2358, %v2354
    %v2575 = vpack.c.b16 %v2359, %v2355
    %v2576 = vpack.c.b16 %v2360, %v2356
    %v2577 = vpack.c.b16 %v2361, %v2357
    %v2578 = vpack.c.b16 %v2366, %v2362
    %v2579 = vpack.c.b16 %v2367, %v2363
    %v2580 = vpack.c.b16 %v2368, %v2364
    %v2581 = vpack.c.b16 %v2369, %v2365
    %v2582 = vpack.c.b16 %v2374, %v2370
    %v2583 = vpack.c.b16 %v2375, %v2371
    %v2584 = vpack.c.b16 %v2376, %v2372
    %v2585 = vpack.c.b16 %v2377, %v2373
    %v2586 = vpack.c.b16 %v2382, %v2378
    %v2587 = vpack.c.b16 %v2383, %v2379
    %v2588 = vpack.c.b16 %v2384, %v2380
    %v2589 = vpack.c.b16 %v2385, %v2381
    %v2590 = vpack.c.b16 %v2390, %v2386
    %v2591 = vpack.c.b16 %v2391, %v2387
    %v2592 = vpack.c.b16 %v2392, %v2388
    %v2593 = vpack.c.b16 %v2393, %v2389
    %v2594 = vpack.c.b16 %v2398, %v2394
    %v2595 = vpack.c.b16 %v2399, %v2395
    %v2596 = vpack.c.b16 %v2400, %v2396
    %v2597 = vpack.c.b16 %v2401, %v2397
    %v2598 = vpack.c.b16 %v2406, %v2402
    %v2599 = vpack.c.b16 %v2407, %v2403
    %v2600 = vpack.c.b16 %v2408, %v2404
    %v2601 = vpack.c.b16 %v2409, %v2405
    %v2602 = vpack.c.b16 %v2414, %v2410
    %v2603 = vpack.c.b16 %v2415, %v2411
    %v2604 = vpack.c.b16 %v2416, %v2412
    %v2605 = vpack.c.b16 %v2417, %v2413
    %v2606 = vpack.c.b16 %v2422, %v2418
    %v2607 = vpack.c.b16 %v2423, %v2419
    %v2608 = vpack.c.b16 %v2424, %v2420
    %v2609 = vpack.c.b16 %v2425, %v2421
    %v2610 = vpack.c.b16 %v2430, %v2426
    %v2611 = vpack.c.b16 %v2431, %v2427
    %v2612 = vpack.c.b16 %v2432, %v2428
    %v2613 = vpack.c.b16 %v2433, %v2429
    %v2614 = vpack.c.b16 %v2438, %v2434
    %v2615 = vpack.c.b16 %v2439, %v2435
    %v2616 = vpack.c.b16 %v2440, %v2436
    %v2617 = vpack.c.b16 %v2441, %v2437
    %v2618 = vpack.c.b16 %v2446, %v2442
    %v2619 = vpack.c.b16 %v2447, %v2443
    %v2620 = vpack.c.b16 %v2448, %v2444
    %v2621 = vpack.c.b16 %v2449, %v2445
    %v2622 = vpack.c.b16 %v2454, %v2450
    %v2623 = vpack.c.b16 %v2455, %v2451
    %v2624 = vpack.c.b16 %v2456, %v2452
    %v2625 = vpack.c.b16 %v2457, %v2453
    %v2626 = vpack.c.b16 %v2462, %v2458
    %v2627 = vpack.c.b16 %v2463, %v2459
    %v2628 = vpack.c.b16 %v2464, %v2460
    %v2629 = vpack.c.b16 %v2465, %v2461
    %v2630 = vpack.c.b16 %v2470, %v2466
    %v2631 = vpack.c.b16 %v2471, %v2467
    %v2632 = vpack.c.b16 %v2472, %v2468
    %v2633 = vpack.c.b16 %v2473, %v2469
    %v2634 = vpack.c.b16 %v2478, %v2474
    %v2635 = vpack.c.b16 %v2479, %v2475
    %v2636 = vpack.c.b16 %v2480, %v2476
    %v2637 = vpack.c.b16 %v2481, %v2477
    %v2638 = vpack.c.b16 %v2486, %v2482
    %v2639 = vpack.c.b16 %v2487, %v2483
    %v2640 = vpack.c.b16 %v2488, %v2484
    %v2641 = vpack.c.b16 %v2489, %v2485
    %v2642 = vpack.c.b16 %v2494, %v2490
    %v2643 = vpack.c.b16 %v2495, %v2491
    %v2644 = vpack.c.b16 %v2496, %v2492
    %v2645 = vpack.c.b16 %v2497, %v2493
    %v2646 = vpack.c.b16 %v2502, %v2498
    %v2647 = vpack.c.b16 %v2503, %v2499
    %v2648 = vpack.c.b16 %v2504, %v2500
    %v2649 = vpack.c.b16 %v2505, %v2501
    %v2650 = vpack.c.b16 %v2510, %v2506
    %v2651 = vpack.c.b16 %v2511, %v2507
    %v2652 = vpack.c.b16 %v2512, %v2508
    %v2653 = vpack.c.b16 %v2513, %v2509
    %v2654 = vpack.c.b16 %v2518, %v2514
    %v2655 = vpack.c.b16 %v2519, %v2515
    %v2656 = vpack.c.b16 %v2520, %v2516
    %v2657 = vpack.c.b16 %v2521, %v2517
    %v2658 = vpack.c.b16 %v2526, %v2522
    %v2659 = vpack.c.b16 %v2527, %v2523
    %v2660 = vpack.c.b16 %v2528, %v2524
    %v2661 = vpack.c.b16 %v2529, %v2525
    %v2662 = vpack.c.b16 %v2534, %v2530
    %v2663 = vpack.c.b16 %v2535, %v2531
    %v2664 = vpack.c.b16 %v2536, %v2532
    %v2665 = vpack.c.b16 %v2537, %v2533
    %2794 = vmatprep.subr.bf16.mxu0 %v2539
    %2795 = vmatpush1.bf16.msra.mxu0 %v2538
    %2796 = vmatprep.subr.bf16.mxu0 %v2543
    %2797 = vmatpush1.bf16.msra.mxu0 %v2542
    %2798 = vmatprep.subr.bf16.mxu0 %v2547
    %2799 = vmatpush1.bf16.msra.mxu0 %v2546
    %2800 = vmatprep.subr.bf16.mxu0 %v2551
    %2801 = vmatpush1.bf16.msra.mxu0 %v2550
    %2802 = vmatprep.subr.bf16.mxu0 %v2555
    %2803 = vmatpush1.bf16.msra.mxu0 %v2554
    %2804 = vmatprep.subr.bf16.mxu0 %v2559
    %2805 = vmatpush1.bf16.msra.mxu0 %v2558
    %2806 = vmatprep.subr.bf16.mxu0 %v2563
    %2807 = vmatpush1.bf16.msra.mxu0 %v2562
    %2808 = vmatprep.subr.bf16.mxu0 %v2567
    %2809 = vmatpush1.bf16.msra.mxu0 %v2566
    %2810 = vmatprep.subr.bf16.mxu0 %v2571
    %2811 = vmatpush1.bf16.msra.mxu0 %v2570
    %2812 = vmatprep.subr.bf16.mxu0 %v2575
    %2813 = vmatpush1.bf16.msra.mxu0 %v2574
    %2814 = vmatprep.subr.bf16.mxu0 %v2579
    %2815 = vmatpush1.bf16.msra.mxu0 %v2578
    %2816 = vmatprep.subr.bf16.mxu0 %v2583
    %2817 = vmatpush1.bf16.msra.mxu0 %v2582
    %2818 = vmatprep.subr.bf16.mxu0 %v2587
    %2819 = vmatpush1.bf16.msra.mxu0 %v2586
    %2820 = vmatprep.subr.bf16.mxu0 %v2591
    %2821 = vmatpush1.bf16.msra.mxu0 %v2590
    %2822 = vmatprep.subr.bf16.mxu0 %v2595
    %2823 = vmatpush1.bf16.msra.mxu0 %v2594
    %2824 = vmatprep.subr.bf16.mxu0 %v2599
    %2825 = vmatpush1.bf16.msra.mxu0 %v2598
    %2826 = vmatprep.mubr.bf16.mxu0 %v1997
    %2827 = vmatmul.mubr.bf16.gmra.mrb[0].mxu0 %v1996
    %v2828 = vpop.f32.mrb[0].mxu0
    %v2829 = vadd.f32 %v2137, %v2828
    %v2830 = vpop.f32.mrb[0].mxu0
    %v2831 = vadd.f32 %v2141, %v2830
    %v2832 = vpop.f32.mrb[0].mxu0
    %v2833 = vadd.f32 %v2137, %v2832
    %v2834 = vpop.f32.mrb[0].mxu0
    %v2835 = vadd.f32 %v2141, %v2834
    %2836 = vmatprep.mubr.bf16.mxu0 %v2001
    %2837 = vmatmul.mubr.bf16.gmra.mrb[0].mxu0 %v2000
    %v2838 = vpop.f32.mrb[0].mxu0
    %v2839 = vadd.f32 %v2137, %v2838
    %v2840 = vpop.f32.mrb[0].mxu0
    %v2841 = vadd.f32 %v2141, %v2840
    %v2842 = vpop.f32.mrb[0].mxu0
    %v2843 = vadd.f32 %v2137, %v2842
    %v2844 = vpop.f32.mrb[0].mxu0
    %v2845 = vadd.f32 %v2141, %v2844
    %2846 = vdwg.mxu0
    %2847 = vmatprep.subr.bf16.mxu0 %v2603
    %2848 = vmatpush1.bf16.msra.mxu0 %v2602
    %2849 = vmatprep.subr.bf16.mxu0 %v2607
    %2850 = vmatpush1.bf16.msra.mxu0 %v2606
    %2851 = vmatprep.subr.bf16.mxu0 %v2611
    %2852 = vmatpush1.bf16.msra.mxu0 %v2610
    %2853 = vmatprep.subr.bf16.mxu0 %v2615
    %2854 = vmatpush1.bf16.msra.mxu0 %v2614
    %2855 = vmatprep.subr.bf16.mxu0 %v2619
    %2856 = vmatpush1.bf16.msra.mxu0 %v2618
    %2857 = vmatprep.subr.bf16.mxu0 %v2623
    %2858 = vmatpush1.bf16.msra.mxu0 %v2622
    %2859 = vmatprep.subr.bf16.mxu0 %v2627
    %2860 = vmatpush1.bf16.msra.mxu0 %v2626
    %2861 = vmatprep.subr.bf16.mxu0 %v2631
    %2862 = vmatpush1.bf16.msra.mxu0 %v2630
    %2863 = vmatprep.subr.bf16.mxu0 %v2635
    %2864 = vmatpush1.bf16.msra.mxu0 %v2634
    %2865 = vmatprep.subr.bf16.mxu0 %v2639
    %2866 = vmatpush1.bf16.msra.mxu0 %v2638
    %2867 = vmatprep.subr.bf16.mxu0 %v2643
    %2868 = vmatpush1.bf16.msra.mxu0 %v2642
    %2869 = vmatprep.subr.bf16.mxu0 %v2647
    %2870 = vmatpush1.bf16.msra.mxu0 %v2646
    %2871 = vmatprep.subr.bf16.mxu0 %v2651
    %2872 = vmatpush1.bf16.msra.mxu0 %v2650
    %2873 = vmatprep.subr.bf16.mxu0 %v2655
    %2874 = vmatpush1.bf16.msra.mxu0 %v2654
    %2875 = vmatprep.subr.bf16.mxu0 %v2659
    %2876 = vmatpush1.bf16.msra.mxu0 %v2658
    %2877 = vmatprep.subr.bf16.mxu0 %v2663
    %2878 = vmatpush1.bf16.msra.mxu0 %v2662
    %2879 = vmatprep.mubr.bf16.mxu0 %v1999
    %2880 = vmatmul.mubr.bf16.gmra.mrb[0].mxu0 %v1998
    %v2881 = vpop.f32.mrb[0].mxu0
    %v2882 = vadd.f32 %v2829, %v2881
    %v2883 = vpop.f32.mrb[0].mxu0
    %v2884 = vadd.f32 %v2831, %v2883
    %v2885 = vpop.f32.mrb[0].mxu0
    %v2886 = vadd.f32 %v2833, %v2885
    %v2887 = vpop.f32.mrb[0].mxu0
    %v2888 = vadd.f32 %v2835, %v2887
    %2889 = vmatprep.mubr.bf16.mxu0 %v2003
    %2890 = vmatmul.mubr.bf16.gmra.mrb[0].mxu0 %v2002
    %v2891 = vpop.f32.mrb[0].mxu0
    %v2892 = vadd.f32 %v2839, %v2891
    %v2893 = vpop.f32.mrb[0].mxu0
    %v2894 = vadd.f32 %v2841, %v2893
    %v2895 = vpop.f32.mrb[0].mxu0
    %v2896 = vadd.f32 %v2843, %v2895
    %v2897 = vpop.f32.mrb[0].mxu0
    %v2898 = vadd.f32 %v2845, %v2897
    %2899 = vdwg.mxu0
    %2900 = vmatprep.subr.bf16.mxu0 %v2541
    %2901 = vmatpush1.bf16.msra.mxu0 %v2540
    %2902 = vmatprep.subr.bf16.mxu0 %v2545
    %2903 = vmatpush1.bf16.msra.mxu0 %v2544
    %2904 = vmatprep.subr.bf16.mxu0 %v2549
    %2905 = vmatpush1.bf16.msra.mxu0 %v2548
    %2906 = vmatprep.subr.bf16.mxu0 %v2553
    %2907 = vmatpush1.bf16.msra.mxu0 %v2552
    %2908 = vmatprep.subr.bf16.mxu0 %v2557
    %2909 = vmatpush1.bf16.msra.mxu0 %v2556
    %2910 = vmatprep.subr.bf16.mxu0 %v2561
    %2911 = vmatpush1.bf16.msra.mxu0 %v2560
    %2912 = vmatprep.subr.bf16.mxu0 %v2565
    %2913 = vmatpush1.bf16.msra.mxu0 %v2564
    %2914 = vmatprep.subr.bf16.mxu0 %v2569
    %2915 = vmatpush1.bf16.msra.mxu0 %v2568
    %2916 = vmatprep.subr.bf16.mxu0 %v2573
    %2917 = vmatpush1.bf16.msra.mxu0 %v2572
    %2918 = vmatprep.subr.bf16.mxu0 %v2577
    %2919 = vmatpush1.bf16.msra.mxu0 %v2576
    %2920 = vmatprep.subr.bf16.mxu0 %v2581
    %2921 = vmatpush1.bf16.msra.mxu0 %v2580
    %2922 = vmatprep.subr.bf16.mxu0 %v2585
    %2923 = vmatpush1.bf16.msra.mxu0 %v2584
    %2924 = vmatprep.subr.bf16.mxu0 %v2589
    %2925 = vmatpush1.bf16.msra.mxu0 %v2588
    %2926 = vmatprep.subr.bf16.mxu0 %v2593
    %2927 = vmatpush1.bf16.msra.mxu0 %v2592
    %2928 = vmatprep.subr.bf16.mxu0 %v2597
    %2929 = vmatpush1.bf16.msra.mxu0 %v2596
    %2930 = vmatprep.subr.bf16.mxu0 %v2601
    %2931 = vmatpush1.bf16.msra.mxu0 %v2600
    %2932 = vmatprep.mubr.bf16.mxu0 %v1997
    %2933 = vmatmul.mubr.bf16.gmra.mrb[0].mxu0 %v1996
    %v2934 = vpop.f32.mrb[0].mxu0
    %v2935 = vadd.f32 %v2145, %v2934
    %v2936 = vpop.f32.mrb[0].mxu0
    %v2937 = vadd.f32 %v2149, %v2936
    %v2938 = vpop.f32.mrb[0].mxu0
    %v2939 = vadd.f32 %v2145, %v2938
    %v2940 = vpop.f32.mrb[0].mxu0
    %v2941 = vadd.f32 %v2149, %v2940
    %2942 = vmatprep.mubr.bf16.mxu0 %v2001
    %2943 = vmatmul.mubr.bf16.gmra.mrb[0].mxu0 %v2000
    %v2944 = vpop.f32.mrb[0].mxu0
    %v2945 = vadd.f32 %v2145, %v2944
    %v2946 = vpop.f32.mrb[0].mxu0
    %v2947 = vadd.f32 %v2149, %v2946
    %v2948 = vpop.f32.mrb[0].mxu0
    %v2949 = vadd.f32 %v2145, %v2948
    %v2950 = vpop.f32.mrb[0].mxu0
    %v2951 = vadd.f32 %v2149, %v2950
    %2952 = vdwg.mxu0
    %2953 = vmatprep.subr.bf16.mxu0 %v2605
    %2954 = vmatpush1.bf16.msra.mxu0 %v2604
    %2955 = vmatprep.subr.bf16.mxu0 %v2609
    %2956 = vmatpush1.bf16.msra.mxu0 %v2608
    %2957 = vmatprep.subr.bf16.mxu0 %v2613
    %2958 = vmatpush1.bf16.msra.mxu0 %v2612
    %2959 = vmatprep.subr.bf16.mxu0 %v2617
    %2960 = vmatpush1.bf16.msra.mxu0 %v2616
    %2961 = vmatprep.subr.bf16.mxu0 %v2621
    %2962 = vmatpush1.bf16.msra.mxu0 %v2620
    %2963 = vmatprep.subr.bf16.mxu0 %v2625
    %2964 = vmatpush1.bf16.msra.mxu0 %v2624
    %2965 = vmatprep.subr.bf16.mxu0 %v2629
    %2966 = vmatpush1.bf16.msra.mxu0 %v2628
    %2967 = vmatprep.subr.bf16.mxu0 %v2633
    %2968 = vmatpush1.bf16.msra.mxu0 %v2632
    %2969 = vmatprep.subr.bf16.mxu0 %v2637
    %2970 = vmatpush1.bf16.msra.mxu0 %v2636
    %2971 = vmatprep.subr.bf16.mxu0 %v2641
    %2972 = vmatpush1.bf16.msra.mxu0 %v2640
    %2973 = vmatprep.subr.bf16.mxu0 %v2645
    %2974 = vmatpush1.bf16.msra.mxu0 %v2644
    %2975 = vmatprep.subr.bf16.mxu0 %v2649
    %2976 = vmatpush1.bf16.msra.mxu0 %v2648
    %2977 = vmatprep.subr.bf16.mxu0 %v2653
    %2978 = vmatpush1.bf16.msra.mxu0 %v2652
    %2979 = vmatprep.subr.bf16.mxu0 %v2657
    %2980 = vmatpush1.bf16.msra.mxu0 %v2656
    %2981 = vmatprep.subr.bf16.mxu0 %v2661
    %2982 = vmatpush1.bf16.msra.mxu0 %v2660
    %2983 = vmatprep.subr.bf16.mxu0 %v2665
    %2984 = vmatpush1.bf16.msra.mxu0 %v2664
    %2985 = vmatprep.mubr.bf16.mxu0 %v1999
    %2986 = vmatmul.mubr.bf16.gmra.mrb[0].mxu0 %v1998
    %v2987 = vpop.f32.mrb[0].mxu0
    %v2988 = vadd.f32 %v2935, %v2987
    %v2989 = vpop.f32.mrb[0].mxu0
    %v2990 = vadd.f32 %v2937, %v2989
    %v2991 = vpop.f32.mrb[0].mxu0
    %v2992 = vadd.f32 %v2939, %v2991
    %v2993 = vpop.f32.mrb[0].mxu0
    %v2994 = vadd.f32 %v2941, %v2993
    %2995 = vmatprep.mubr.bf16.mxu0 %v2003
    %2996 = vmatmul.mubr.bf16.gmra.mrb[0].mxu0 %v2002
    %v2997 = vpop.f32.mrb[0].mxu0
    %v2998 = vadd.f32 %v2945, %v2997
    %v2999 = vpop.f32.mrb[0].mxu0
    %v3000 = vadd.f32 %v2947, %v2999
    %v3001 = vpop.f32.mrb[0].mxu0
    %v3002 = vadd.f32 %v2949, %v3001
    %v3003 = vpop.f32.mrb[0].mxu0
    %v3004 = vadd.f32 %v2951, %v3003
    %3005 = vdwg.mxu0
    %v3006 = vmax.f32 %v2882, 0.0
    %v3007 = vmax.f32 %v2884, 0.0
    %v3008 = vmax.f32 %v2988, 0.0
    %v3009 = vmax.f32 %v2990, 0.0
    %v3010 = vmax.f32 %v2886, 0.0
    %v3011 = vmax.f32 %v2888, 0.0
    %v3012 = vmax.f32 %v2992, 0.0
    %v3013 = vmax.f32 %v2994, 0.0
    %v3014 = vmax.f32 %v2892, 0.0
    %v3015 = vmax.f32 %v2894, 0.0
    %v3016 = vmax.f32 %v2998, 0.0
    %v3017 = vmax.f32 %v3000, 0.0
    %v3018 = vmax.f32 %v2896, 0.0
    %v3019 = vmax.f32 %v2898, 0.0
    %v3020 = vmax.f32 %v3002, 0.0
    %v3021 = vmax.f32 %v3004, 0.0
    %v3022 = vpack.c.bf16 %v3010, %v3006
    %v3023 = vpack.c.bf16 %v3011, %v3007
    %v3024 = vpack.c.bf16 %v3012, %v3008
    %v3025 = vpack.c.bf16 %v3013, %v3009
    %v3026 = vpack.c.bf16 %v3018, %v3014
    %v3027 = vpack.c.bf16 %v3019, %v3015
    %v3028 = vpack.c.bf16 %v3020, %v3016
    %v3029 = vpack.c.bf16 %v3021, %v3017
    %v3030 = vld [vmem:[#allocation8] sm:$0xff]
    %v3031 = vld [vmem:[#allocation8 + $0x8] sm:$0xff]
    %v3032 = vld [vmem:[#allocation8 + $0x10] sm:$0xff]
    %v3033 = vld [vmem:[#allocation8 + $0x18] sm:$0xff]
    %v3034 = vld [vmem:[#allocation8 + $0x20] sm:$0xff]
    %v3035 = vld [vmem:[#allocation8 + $0x28] sm:$0xff]
    %v3036 = vld [vmem:[#allocation8 + $0x30] sm:$0xff]
    %v3037 = vld [vmem:[#allocation8 + $0x38] sm:$0xff]
    %v3038 = vld [vmem:[#allocation8 + $0x40] sm:$0xff]
    %v3039 = vld [vmem:[#allocation8 + $0x48] sm:$0xff]
    %v3040 = vld [vmem:[#allocation8 + $0x50] sm:$0xff]
    %v3041 = vld [vmem:[#allocation8 + $0x58] sm:$0xff]
    %v3042 = vld [vmem:[#allocation8 + $0x60] sm:$0xff]
    %v3043 = vld [vmem:[#allocation8 + $0x68] sm:$0xff]
    %v3044 = vld [vmem:[#allocation8 + $0x70] sm:$0xff]
    %v3045 = vld [vmem:[#allocation8 + $0x78] sm:$0xff]
    %v3046 = vld [vmem:[#allocation8 + $0x80] sm:$0xff]
    %v3047 = vld [vmem:[#allocation8 + $0x88] sm:$0xff]
    %v3048 = vld [vmem:[#allocation8 + $0x90] sm:$0xff]
    %v3049 = vld [vmem:[#allocation8 + $0x98] sm:$0xff]
    %v3050 = vld [vmem:[#allocation8 + $0xa0] sm:$0xff]
    %v3051 = vld [vmem:[#allocation8 + $0xa8] sm:$0xff]
    %v3052 = vld [vmem:[#allocation8 + $0xb0] sm:$0xff]
    %v3053 = vld [vmem:[#allocation8 + $0xb8] sm:$0xff]
    %v3054 = vld [vmem:[#allocation8 + $0xc0] sm:$0xff]
    %v3055 = vld [vmem:[#allocation8 + $0xc8] sm:$0xff]
    %v3056 = vld [vmem:[#allocation8 + $0xd0] sm:$0xff]
    %v3057 = vld [vmem:[#allocation8 + $0xd8] sm:$0xff]
    %v3058 = vld [vmem:[#allocation8 + $0xe0] sm:$0xff]
    %v3059 = vld [vmem:[#allocation8 + $0xe8] sm:$0xff]
    %v3060 = vld [vmem:[#allocation8 + $0xf0] sm:$0xff]
    %v3061 = vld [vmem:[#allocation8 + $0xf8] sm:$0xff]
    %v3062 = vld [vmem:[#allocation8 + $0x100] sm:$0xff]
    %v3063 = vld [vmem:[#allocation8 + $0x108] sm:$0xff]
    %v3064 = vld [vmem:[#allocation8 + $0x110] sm:$0xff]
    %v3065 = vld [vmem:[#allocation8 + $0x118] sm:$0xff]
    %v3066 = vld [vmem:[#allocation8 + $0x120] sm:$0xff]
    %v3067 = vld [vmem:[#allocation8 + $0x128] sm:$0xff]
    %v3068 = vld [vmem:[#allocation8 + $0x130] sm:$0xff]
    %v3069 = vld [vmem:[#allocation8 + $0x138] sm:$0xff]
    %v3070 = vld [vmem:[#allocation8 + $0x140] sm:$0xff]
    %v3071 = vld [vmem:[#allocation8 + $0x148] sm:$0xff]
    %v3072 = vld [vmem:[#allocation8 + $0x150] sm:$0xff]
    %v3073 = vld [vmem:[#allocation8 + $0x158] sm:$0xff]
    %v3074 = vld [vmem:[#allocation8 + $0x160] sm:$0xff]
    %v3075 = vld [vmem:[#allocation8 + $0x168] sm:$0xff]
    %v3076 = vld [vmem:[#allocation8 + $0x170] sm:$0xff]
    %v3077 = vld [vmem:[#allocation8 + $0x178] sm:$0xff]
    %v3078 = vld [vmem:[#allocation8 + $0x180] sm:$0xff]
    %v3079 = vld [vmem:[#allocation8 + $0x188] sm:$0xff]
    %v3080 = vld [vmem:[#allocation8 + $0x190] sm:$0xff]
    %v3081 = vld [vmem:[#allocation8 + $0x198] sm:$0xff]
    %v3082 = vld [vmem:[#allocation8 + $0x1a0] sm:$0xff]
    %v3083 = vld [vmem:[#allocation8 + $0x1a8] sm:$0xff]
    %v3084 = vld [vmem:[#allocation8 + $0x1b0] sm:$0xff]
    %v3085 = vld [vmem:[#allocation8 + $0x1b8] sm:$0xff]
    %v3086 = vld [vmem:[#allocation8 + $0x1c0] sm:$0xff]
    %v3087 = vld [vmem:[#allocation8 + $0x1c8] sm:$0xff]
    %v3088 = vld [vmem:[#allocation8 + $0x1d0] sm:$0xff]
    %v3089 = vld [vmem:[#allocation8 + $0x1d8] sm:$0xff]
    %v3090 = vld [vmem:[#allocation8 + $0x1e0] sm:$0xff]
    %v3091 = vld [vmem:[#allocation8 + $0x1e8] sm:$0xff]
    %v3092 = vld [vmem:[#allocation8 + $0x1f0] sm:$0xff]
    %v3093 = vld [vmem:[#allocation8 + $0x1f8] sm:$0xff]
    %v3094 = vld [vmem:[%s6] sm:$0x3]
    %v3096 = vlaneseq
    %v3097 = vshrl.u32 %v3096, 7
    %v3098 = vsub.s32 0, %v3097
    %v3099 = vrot.slane %v3094, %v3098
    %v3100 = vlaneseq
    %v3101 = vshrl.u32 %v3100, 7
    %v3102 = vsub.s32 1, %v3101
    %v3103 = vrot.slane %v3094, %v3102
    %v3170 = vunpack.c.l.b16 %v3030
    %v3171 = vunpack.c.h.b16 %v3030
    %v3172 = vunpack.c.l.b16 %v3031
    %v3173 = vunpack.c.h.b16 %v3031
    %v3174 = vunpack.c.l.b16 %v3032
    %v3175 = vunpack.c.h.b16 %v3032
    %v3176 = vunpack.c.l.b16 %v3033
    %v3177 = vunpack.c.h.b16 %v3033
    %v3178 = vunpack.c.l.b16 %v3034
    %v3179 = vunpack.c.h.b16 %v3034
    %v3180 = vunpack.c.l.b16 %v3035
    %v3181 = vunpack.c.h.b16 %v3035
    %v3182 = vunpack.c.l.b16 %v3036
    %v3183 = vunpack.c.h.b16 %v3036
    %v3184 = vunpack.c.l.b16 %v3037
    %v3185 = vunpack.c.h.b16 %v3037
    %v3186 = vunpack.c.l.b16 %v3038
    %v3187 = vunpack.c.h.b16 %v3038
    %v3188 = vunpack.c.l.b16 %v3039
    %v3189 = vunpack.c.h.b16 %v3039
    %v3190 = vunpack.c.l.b16 %v3040
    %v3191 = vunpack.c.h.b16 %v3040
    %v3192 = vunpack.c.l.b16 %v3041
    %v3193 = vunpack.c.h.b16 %v3041
    %v3194 = vunpack.c.l.b16 %v3042
    %v3195 = vunpack.c.h.b16 %v3042
    %v3196 = vunpack.c.l.b16 %v3043
    %v3197 = vunpack.c.h.b16 %v3043
    %v3198 = vunpack.c.l.b16 %v3044
    %v3199 = vunpack.c.h.b16 %v3044
    %v3200 = vunpack.c.l.b16 %v3045
    %v3201 = vunpack.c.h.b16 %v3045
    %v3202 = vunpack.c.l.b16 %v3046
    %v3203 = vunpack.c.h.b16 %v3046
    %v3204 = vunpack.c.l.b16 %v3047
    %v3205 = vunpack.c.h.b16 %v3047
    %v3206 = vunpack.c.l.b16 %v3048
    %v3207 = vunpack.c.h.b16 %v3048
    %v3208 = vunpack.c.l.b16 %v3049
    %v3209 = vunpack.c.h.b16 %v3049
    %v3210 = vunpack.c.l.b16 %v3050
    %v3211 = vunpack.c.h.b16 %v3050
    %v3212 = vunpack.c.l.b16 %v3051
    %v3213 = vunpack.c.h.b16 %v3051
    %v3214 = vunpack.c.l.b16 %v3052
    %v3215 = vunpack.c.h.b16 %v3052
    %v3216 = vunpack.c.l.b16 %v3053
    %v3217 = vunpack.c.h.b16 %v3053
    %v3218 = vunpack.c.l.b16 %v3054
    %v3219 = vunpack.c.h.b16 %v3054
    %v3220 = vunpack.c.l.b16 %v3055
    %v3221 = vunpack.c.h.b16 %v3055
    %v3222 = vunpack.c.l.b16 %v3056
    %v3223 = vunpack.c.h.b16 %v3056
    %v3224 = vunpack.c.l.b16 %v3057
    %v3225 = vunpack.c.h.b16 %v3057
    %v3226 = vunpack.c.l.b16 %v3058
    %v3227 = vunpack.c.h.b16 %v3058
    %v3228 = vunpack.c.l.b16 %v3059
    %v3229 = vunpack.c.h.b16 %v3059
    %v3230 = vunpack.c.l.b16 %v3060
    %v3231 = vunpack.c.h.b16 %v3060
    %v3232 = vunpack.c.l.b16 %v3061
    %v3233 = vunpack.c.h.b16 %v3061
    %v3234 = vunpack.c.l.b16 %v3062
    %v3235 = vunpack.c.h.b16 %v3062
    %v3236 = vunpack.c.l.b16 %v3063
    %v3237 = vunpack.c.h.b16 %v3063
    %v3238 = vunpack.c.l.b16 %v3064
    %v3239 = vunpack.c.h.b16 %v3064
    %v3240 = vunpack.c.l.b16 %v3065
    %v3241 = vunpack.c.h.b16 %v3065
    %v3242 = vunpack.c.l.b16 %v3066
    %v3243 = vunpack.c.h.b16 %v3066
    %v3244 = vunpack.c.l.b16 %v3067
    %v3245 = vunpack.c.h.b16 %v3067
    %v3246 = vunpack.c.l.b16 %v3068
    %v3247 = vunpack.c.h.b16 %v3068
    %v3248 = vunpack.c.l.b16 %v3069
    %v3249 = vunpack.c.h.b16 %v3069
    %v3250 = vunpack.c.l.b16 %v3070
    %v3251 = vunpack.c.h.b16 %v3070
    %v3252 = vunpack.c.l.b16 %v3071
    %v3253 = vunpack.c.h.b16 %v3071
    %v3254 = vunpack.c.l.b16 %v3072
    %v3255 = vunpack.c.h.b16 %v3072
    %v3256 = vunpack.c.l.b16 %v3073
    %v3257 = vunpack.c.h.b16 %v3073
    %v3258 = vunpack.c.l.b16 %v3074
    %v3259 = vunpack.c.h.b16 %v3074
    %v3260 = vunpack.c.l.b16 %v3075
    %v3261 = vunpack.c.h.b16 %v3075
    %v3262 = vunpack.c.l.b16 %v3076
    %v3263 = vunpack.c.h.b16 %v3076
    %v3264 = vunpack.c.l.b16 %v3077
    %v3265 = vunpack.c.h.b16 %v3077
    %v3266 = vunpack.c.l.b16 %v3078
    %v3267 = vunpack.c.h.b16 %v3078
    %v3268 = vunpack.c.l.b16 %v3079
    %v3269 = vunpack.c.h.b16 %v3079
    %v3270 = vunpack.c.l.b16 %v3080
    %v3271 = vunpack.c.h.b16 %v3080
    %v3272 = vunpack.c.l.b16 %v3081
    %v3273 = vunpack.c.h.b16 %v3081
    %v3274 = vunpack.c.l.b16 %v3082
    %v3275 = vunpack.c.h.b16 %v3082
    %v3276 = vunpack.c.l.b16 %v3083
    %v3277 = vunpack.c.h.b16 %v3083
    %v3278 = vunpack.c.l.b16 %v3084
    %v3279 = vunpack.c.h.b16 %v3084
    %v3280 = vunpack.c.l.b16 %v3085
    %v3281 = vunpack.c.h.b16 %v3085
    %v3282 = vunpack.c.l.b16 %v3086
    %v3283 = vunpack.c.h.b16 %v3086
    %v3284 = vunpack.c.l.b16 %v3087
    %v3285 = vunpack.c.h.b16 %v3087
    %v3286 = vunpack.c.l.b16 %v3088
    %v3287 = vunpack.c.h.b16 %v3088
    %v3288 = vunpack.c.l.b16 %v3089
    %v3289 = vunpack.c.h.b16 %v3089
    %v3290 = vunpack.c.l.b16 %v3090
    %v3291 = vunpack.c.h.b16 %v3090
    %v3292 = vunpack.c.l.b16 %v3091
    %v3293 = vunpack.c.h.b16 %v3091
    %v3294 = vunpack.c.l.b16 %v3092
    %v3295 = vunpack.c.h.b16 %v3092
    %v3296 = vunpack.c.l.b16 %v3093
    %v3297 = vunpack.c.h.b16 %v3093
    %v3298 = vpack.c.b16 %v3172, %v3170
    %v3299 = vpack.c.b16 %v3173, %v3171
    %v3300 = vpack.c.b16 %v3176, %v3174
    %v3301 = vpack.c.b16 %v3177, %v3175
    %v3302 = vpack.c.b16 %v3180, %v3178
    %v3303 = vpack.c.b16 %v3181, %v3179
    %v3304 = vpack.c.b16 %v3184, %v3182
    %v3305 = vpack.c.b16 %v3185, %v3183
    %v3306 = vpack.c.b16 %v3188, %v3186
    %v3307 = vpack.c.b16 %v3189, %v3187
    %v3308 = vpack.c.b16 %v3192, %v3190
    %v3309 = vpack.c.b16 %v3193, %v3191
    %v3310 = vpack.c.b16 %v3196, %v3194
    %v3311 = vpack.c.b16 %v3197, %v3195
    %v3312 = vpack.c.b16 %v3200, %v3198
    %v3313 = vpack.c.b16 %v3201, %v3199
    %v3314 = vpack.c.b16 %v3204, %v3202
    %v3315 = vpack.c.b16 %v3205, %v3203
    %v3316 = vpack.c.b16 %v3208, %v3206
    %v3317 = vpack.c.b16 %v3209, %v3207
    %v3318 = vpack.c.b16 %v3212, %v3210
    %v3319 = vpack.c.b16 %v3213, %v3211
    %v3320 = vpack.c.b16 %v3216, %v3214
    %v3321 = vpack.c.b16 %v3217, %v3215
    %v3322 = vpack.c.b16 %v3220, %v3218
    %v3323 = vpack.c.b16 %v3221, %v3219
    %v3324 = vpack.c.b16 %v3224, %v3222
    %v3325 = vpack.c.b16 %v3225, %v3223
    %v3326 = vpack.c.b16 %v3228, %v3226
    %v3327 = vpack.c.b16 %v3229, %v3227
    %v3328 = vpack.c.b16 %v3232, %v3230
    %v3329 = vpack.c.b16 %v3233, %v3231
    %v3330 = vpack.c.b16 %v3236, %v3234
    %v3331 = vpack.c.b16 %v3237, %v3235
    %v3332 = vpack.c.b16 %v3240, %v3238
    %v3333 = vpack.c.b16 %v3241, %v3239
    %v3334 = vpack.c.b16 %v3244, %v3242
    %v3335 = vpack.c.b16 %v3245, %v3243
    %v3336 = vpack.c.b16 %v3248, %v3246
    %v3337 = vpack.c.b16 %v3249, %v3247
    %v3338 = vpack.c.b16 %v3252, %v3250
    %v3339 = vpack.c.b16 %v3253, %v3251
    %v3340 = vpack.c.b16 %v3256, %v3254
    %v3341 = vpack.c.b16 %v3257, %v3255
    %v3342 = vpack.c.b16 %v3260, %v3258
    %v3343 = vpack.c.b16 %v3261, %v3259
    %v3344 = vpack.c.b16 %v3264, %v3262
    %v3345 = vpack.c.b16 %v3265, %v3263
    %v3346 = vpack.c.b16 %v3268, %v3266
    %v3347 = vpack.c.b16 %v3269, %v3267
    %v3348 = vpack.c.b16 %v3272, %v3270
    %v3349 = vpack.c.b16 %v3273, %v3271
    %v3350 = vpack.c.b16 %v3276, %v3274
    %v3351 = vpack.c.b16 %v3277, %v3275
    %v3352 = vpack.c.b16 %v3280, %v3278
    %v3353 = vpack.c.b16 %v3281, %v3279
    %v3354 = vpack.c.b16 %v3284, %v3282
    %v3355 = vpack.c.b16 %v3285, %v3283
    %v3356 = vpack.c.b16 %v3288, %v3286
    %v3357 = vpack.c.b16 %v3289, %v3287
    %v3358 = vpack.c.b16 %v3292, %v3290
    %v3359 = vpack.c.b16 %v3293, %v3291
    %v3360 = vpack.c.b16 %v3296, %v3294
    %v3361 = vpack.c.b16 %v3297, %v3295
    %3426 = vmatprep.subr.bf16.mxu0 %v3299
    %3427 = vmatpush1.bf16.msra.mxu0 %v3298
    %3428 = vmatprep.subr.bf16.mxu0 %v3301
    %3429 = vmatpush1.bf16.msra.mxu0 %v3300
    %3430 = vmatprep.subr.bf16.mxu0 %v3303
    %3431 = vmatpush1.bf16.msra.mxu0 %v3302
    %3432 = vmatprep.subr.bf16.mxu0 %v3305
    %3433 = vmatpush1.bf16.msra.mxu0 %v3304
    %3434 = vmatprep.subr.bf16.mxu0 %v3307
    %3435 = vmatpush1.bf16.msra.mxu0 %v3306
    %3436 = vmatprep.subr.bf16.mxu0 %v3309
    %3437 = vmatpush1.bf16.msra.mxu0 %v3308
    %3438 = vmatprep.subr.bf16.mxu0 %v3311
    %3439 = vmatpush1.bf16.msra.mxu0 %v3310
    %3440 = vmatprep.subr.bf16.mxu0 %v3313
    %3441 = vmatpush1.bf16.msra.mxu0 %v3312
    %3442 = vmatprep.subr.bf16.mxu0 %v3315
    %3443 = vmatpush1.bf16.msra.mxu0 %v3314
    %3444 = vmatprep.subr.bf16.mxu0 %v3317
    %3445 = vmatpush1.bf16.msra.mxu0 %v3316
    %3446 = vmatprep.subr.bf16.mxu0 %v3319
    %3447 = vmatpush1.bf16.msra.mxu0 %v3318
    %3448 = vmatprep.subr.bf16.mxu0 %v3321
    %3449 = vmatpush1.bf16.msra.mxu0 %v3320
    %3450 = vmatprep.subr.bf16.mxu0 %v3323
    %3451 = vmatpush1.bf16.msra.mxu0 %v3322
    %3452 = vmatprep.subr.bf16.mxu0 %v3325
    %3453 = vmatpush1.bf16.msra.mxu0 %v3324
    %3454 = vmatprep.subr.bf16.mxu0 %v3327
    %3455 = vmatpush1.bf16.msra.mxu0 %v3326
    %3456 = vmatprep.subr.bf16.mxu0 %v3329
    %3457 = vmatpush1.bf16.msra.mxu0 %v3328
    %3458 = vmatprep.mubr.bf16.mxu0 %v3023
    %3459 = vmatmul.mubr.bf16.gmra.mrb[0].mxu0 %v3022
    %v3460 = vpop.f32.mrb[0].mxu0
    %v3461 = vadd.f32 %v3099, %v3460
    %v3462 = vpop.f32.mrb[0].mxu0
    %v3463 = vadd.f32 %v3103, %v3462
    %v3464 = vpop.f32.mrb[0].mxu0
    %v3465 = vadd.f32 %v3099, %v3464
    %v3466 = vpop.f32.mrb[0].mxu0
    %v3467 = vadd.f32 %v3103, %v3466
    %3468 = vmatprep.mubr.bf16.mxu0 %v3027
    %3469 = vmatmul.mubr.bf16.gmra.mrb[0].mxu0 %v3026
    %v3470 = vpop.f32.mrb[0].mxu0
    %v3471 = vadd.f32 %v3099, %v3470
    %v3472 = vpop.f32.mrb[0].mxu0
    %v3473 = vadd.f32 %v3103, %v3472
    %v3474 = vpop.f32.mrb[0].mxu0
    %v3475 = vadd.f32 %v3099, %v3474
    %v3476 = vpop.f32.mrb[0].mxu0
    %v3477 = vadd.f32 %v3103, %v3476
    %3478 = vdwg.mxu0
    %3479 = vmatprep.subr.bf16.mxu0 %v3331
    %3480 = vmatpush1.bf16.msra.mxu0 %v3330
    %3481 = vmatprep.subr.bf16.mxu0 %v3333
    %3482 = vmatpush1.bf16.msra.mxu0 %v3332
    %3483 = vmatprep.subr.bf16.mxu0 %v3335
    %3484 = vmatpush1.bf16.msra.mxu0 %v3334
    %3485 = vmatprep.subr.bf16.mxu0 %v3337
    %3486 = vmatpush1.bf16.msra.mxu0 %v3336
    %3487 = vmatprep.subr.bf16.mxu0 %v3339
    %3488 = vmatpush1.bf16.msra.mxu0 %v3338
    %3489 = vmatprep.subr.bf16.mxu0 %v3341
    %3490 = vmatpush1.bf16.msra.mxu0 %v3340
    %3491 = vmatprep.subr.bf16.mxu0 %v3343
    %3492 = vmatpush1.bf16.msra.mxu0 %v3342
    %3493 = vmatprep.subr.bf16.mxu0 %v3345
    %3494 = vmatpush1.bf16.msra.mxu0 %v3344
    %3495 = vmatprep.subr.bf16.mxu0 %v3347
    %3496 = vmatpush1.bf16.msra.mxu0 %v3346
    %3497 = vmatprep.subr.bf16.mxu0 %v3349
    %3498 = vmatpush1.bf16.msra.mxu0 %v3348
    %3499 = vmatprep.subr.bf16.mxu0 %v3351
    %3500 = vmatpush1.bf16.msra.mxu0 %v3350
    %3501 = vmatprep.subr.bf16.mxu0 %v3353
    %3502 = vmatpush1.bf16.msra.mxu0 %v3352
    %3503 = vmatprep.subr.bf16.mxu0 %v3355
    %3504 = vmatpush1.bf16.msra.mxu0 %v3354
    %3505 = vmatprep.subr.bf16.mxu0 %v3357
    %3506 = vmatpush1.bf16.msra.mxu0 %v3356
    %3507 = vmatprep.subr.bf16.mxu0 %v3359
    %3508 = vmatpush1.bf16.msra.mxu0 %v3358
    %3509 = vmatprep.subr.bf16.mxu0 %v3361
    %3510 = vmatpush1.bf16.msra.mxu0 %v3360
    %3511 = vmatprep.mubr.bf16.mxu0 %v3025
    %3512 = vmatmul.mubr.bf16.gmra.mrb[0].mxu0 %v3024
    %v3513 = vpop.f32.mrb[0].mxu0
    %v3514 = vadd.f32 %v3461, %v3513
    %v3515 = vpop.f32.mrb[0].mxu0
    %v3516 = vadd.f32 %v3463, %v3515
    %v3517 = vpop.f32.mrb[0].mxu0
    %v3518 = vadd.f32 %v3465, %v3517
    %v3519 = vpop.f32.mrb[0].mxu0
    %v3520 = vadd.f32 %v3467, %v3519
    %3521 = vmatprep.mubr.bf16.mxu0 %v3029
    %3522 = vmatmul.mubr.bf16.gmra.mrb[0].mxu0 %v3028
    %v3523 = vpop.f32.mrb[0].mxu0
    %v3524 = vadd.f32 %v3471, %v3523
    %v3525 = vpop.f32.mrb[0].mxu0
    %v3526 = vadd.f32 %v3473, %v3525
    %v3527 = vpop.f32.mrb[0].mxu0
    %v3528 = vadd.f32 %v3475, %v3527
    %v3529 = vpop.f32.mrb[0].mxu0
    %v3530 = vadd.f32 %v3477, %v3529
    %3531 = vdwg.mxu0
    %v3532 = vmax.f32 %v3514, 0.0
    %v3533 = vmax.f32 %v3516, 0.0
    %v3534 = vmax.f32 %v3518, 0.0
    %v3535 = vmax.f32 %v3520, 0.0
    %v3536 = vmax.f32 %v3524, 0.0
    %v3537 = vmax.f32 %v3526, 0.0
    %v3538 = vmax.f32 %v3528, 0.0
    %v3539 = vmax.f32 %v3530, 0.0
    %v3540 = vpack.c.bf16 %v3534, %v3532
    %v3541 = vpack.c.bf16 %v3535, %v3533
    %v3542 = vpack.c.bf16 %v3538, %v3536
    %v3543 = vpack.c.bf16 %v3539, %v3537
    %v3544 = vld [vmem:[#allocation10] sm:$0xf]
    %v3545 = vld [vmem:[#allocation10 + $0x4] sm:$0xf]
    %v3546 = vld [vmem:[#allocation10 + $0x8] sm:$0xf]
    %v3547 = vld [vmem:[#allocation10 + $0xc] sm:$0xf]
    %v3548 = vld [vmem:[#allocation10 + $0x10] sm:$0xf]
    %v3549 = vld [vmem:[#allocation10 + $0x14] sm:$0xf]
    %v3550 = vld [vmem:[#allocation10 + $0x18] sm:$0xf]
    %v3551 = vld [vmem:[#allocation10 + $0x1c] sm:$0xf]
    %v3552 = vld [vmem:[#allocation10 + $0x20] sm:$0xf]
    %v3553 = vld [vmem:[#allocation10 + $0x24] sm:$0xf]
    %v3554 = vld [vmem:[#allocation10 + $0x28] sm:$0xf]
    %v3555 = vld [vmem:[#allocation10 + $0x2c] sm:$0xf]
    %v3556 = vld [vmem:[#allocation10 + $0x30] sm:$0xf]
    %v3557 = vld [vmem:[#allocation10 + $0x34] sm:$0xf]
    %v3558 = vld [vmem:[#allocation10 + $0x38] sm:$0xf]
    %v3559 = vld [vmem:[#allocation10 + $0x3c] sm:$0xf]
    %v3560 = vld [vmem:[#allocation10 + $0x40] sm:$0xf]
    %v3561 = vld [vmem:[#allocation10 + $0x44] sm:$0xf]
    %v3562 = vld [vmem:[#allocation10 + $0x48] sm:$0xf]
    %v3563 = vld [vmem:[#allocation10 + $0x4c] sm:$0xf]
    %v3564 = vld [vmem:[#allocation10 + $0x50] sm:$0xf]
    %v3565 = vld [vmem:[#allocation10 + $0x54] sm:$0xf]
    %v3566 = vld [vmem:[#allocation10 + $0x58] sm:$0xf]
    %v3567 = vld [vmem:[#allocation10 + $0x5c] sm:$0xf]
    %v3568 = vld [vmem:[#allocation10 + $0x60] sm:$0xf]
    %v3569 = vld [vmem:[#allocation10 + $0x64] sm:$0xf]
    %v3570 = vld [vmem:[#allocation10 + $0x68] sm:$0xf]
    %v3571 = vld [vmem:[#allocation10 + $0x6c] sm:$0xf]
    %v3572 = vld [vmem:[#allocation10 + $0x70] sm:$0xf]
    %v3573 = vld [vmem:[#allocation10 + $0x74] sm:$0xf]
    %v3574 = vld [vmem:[#allocation10 + $0x78] sm:$0xf]
    %v3575 = vld [vmem:[#allocation10 + $0x7c] sm:$0xf]
    %v3576 = vld [vmem:[%s8] sm:$0x1]
    %v3578 = vlaneseq
    %v3579 = vshrl.u32 %v3578, 7
    %v3580 = vsub.s32 0, %v3579
    %v3581 = vrot.slane %v3576, %v3580
    %v3615 = vunpack.c.l.b16 %v3544
    %v3616 = vunpack.c.l.b16 %v3545
    %v3617 = vunpack.c.l.b16 %v3546
    %v3618 = vunpack.c.l.b16 %v3547
    %v3619 = vunpack.c.l.b16 %v3548
    %v3620 = vunpack.c.l.b16 %v3549
    %v3621 = vunpack.c.l.b16 %v3550
    %v3622 = vunpack.c.l.b16 %v3551
    %v3623 = vunpack.c.l.b16 %v3552
    %v3624 = vunpack.c.l.b16 %v3553
    %v3625 = vunpack.c.l.b16 %v3554
    %v3626 = vunpack.c.l.b16 %v3555
    %v3627 = vunpack.c.l.b16 %v3556
    %v3628 = vunpack.c.l.b16 %v3557
    %v3629 = vunpack.c.l.b16 %v3558
    %v3630 = vunpack.c.l.b16 %v3559
    %v3631 = vunpack.c.l.b16 %v3560
    %v3632 = vunpack.c.l.b16 %v3561
    %v3633 = vunpack.c.l.b16 %v3562
    %v3634 = vunpack.c.l.b16 %v3563
    %v3635 = vunpack.c.l.b16 %v3564
    %v3636 = vunpack.c.l.b16 %v3565
    %v3637 = vunpack.c.l.b16 %v3566
    %v3638 = vunpack.c.l.b16 %v3567
    %v3639 = vunpack.c.l.b16 %v3568
    %v3640 = vunpack.c.l.b16 %v3569
    %v3641 = vunpack.c.l.b16 %v3570
    %v3642 = vunpack.c.l.b16 %v3571
    %v3643 = vunpack.c.l.b16 %v3572
    %v3644 = vunpack.c.l.b16 %v3573
    %v3645 = vunpack.c.l.b16 %v3574
    %v3646 = vunpack.c.l.b16 %v3575
    %v3647 = vpack.c.b16 %v3616, %v3615
    %v3648 = vpack.c.b16 %v3618, %v3617
    %v3649 = vpack.c.b16 %v3620, %v3619
    %v3650 = vpack.c.b16 %v3622, %v3621
    %v3651 = vpack.c.b16 %v3624, %v3623
    %v3652 = vpack.c.b16 %v3626, %v3625
    %v3653 = vpack.c.b16 %v3628, %v3627
    %v3654 = vpack.c.b16 %v3630, %v3629
    %v3655 = vpack.c.b16 %v3632, %v3631
    %v3656 = vpack.c.b16 %v3634, %v3633
    %v3657 = vpack.c.b16 %v3636, %v3635
    %v3658 = vpack.c.b16 %v3638, %v3637
    %v3659 = vpack.c.b16 %v3640, %v3639
    %v3660 = vpack.c.b16 %v3642, %v3641
    %v3661 = vpack.c.b16 %v3644, %v3643
    %v3662 = vpack.c.b16 %v3646, %v3645
    %3679 = vmatprep.subr.bf16.mxu0 0
    %3680 = vmatpush1.bf16.msra.mxu0 %v3647
    %3681 = vmatprep.subr.bf16.mxu0 0
    %3682 = vmatpush1.bf16.msra.mxu0 %v3648
    %3683 = vmatprep.subr.bf16.mxu0 0
    %3684 = vmatpush1.bf16.msra.mxu0 %v3649
    %3685 = vmatprep.subr.bf16.mxu0 0
    %3686 = vmatpush1.bf16.msra.mxu0 %v3650
    %3687 = vmatprep.subr.bf16.mxu0 0
    %3688 = vmatpush1.bf16.msra.mxu0 %v3651
    %3689 = vmatprep.subr.bf16.mxu0 0
    %3690 = vmatpush1.bf16.msra.mxu0 %v3652
    %3691 = vmatprep.subr.bf16.mxu0 0
    %3692 = vmatpush1.bf16.msra.mxu0 %v3653
    %3693 = vmatprep.subr.bf16.mxu0 0
    %3694 = vmatpush1.bf16.msra.mxu0 %v3654
    %3695 = vmatprep.subr.bf16.mxu0 0
    %3696 = vmatpush1.bf16.msra.mxu0 %v3655
    %3697 = vmatprep.subr.bf16.mxu0 0
    %3698 = vmatpush1.bf16.msra.mxu0 %v3656
    %3699 = vmatprep.subr.bf16.mxu0 0
    %3700 = vmatpush1.bf16.msra.mxu0 %v3657
    %3701 = vmatprep.subr.bf16.mxu0 0
    %3702 = vmatpush1.bf16.msra.mxu0 %v3658
    %3703 = vmatprep.subr.bf16.mxu0 0
    %3704 = vmatpush1.bf16.msra.mxu0 %v3659
    %3705 = vmatprep.subr.bf16.mxu0 0
    %3706 = vmatpush1.bf16.msra.mxu0 %v3660
    %3707 = vmatprep.subr.bf16.mxu0 0
    %3708 = vmatpush1.bf16.msra.mxu0 %v3661
    %3709 = vmatprep.subr.bf16.mxu0 0
    %3710 = vmatpush1.bf16.msra.mxu0 %v3662
    %3711 = vmatprep.mubr.bf16.mxu0 %v3541
    %3712 = vmatmul.mubr.bf16.gmra.mrb[0].mxu0 %v3540
    %v3713 = vpop.f32.mrb[0].mxu0
    %v3714 = vadd.f32 %v3581, %v3713
    %v3715 = vpop.f32.mrb[0].mxu0
    %v3716 = vpop.f32.mrb[0].mxu0
    %v3717 = vadd.f32 %v3581, %v3716
    %v3718 = vpop.f32.mrb[0].mxu0
    %3719 = vmatprep.mubr.bf16.mxu0 %v3543
    %3720 = vmatmul.mubr.bf16.gmra.mrb[0].mxu0 %v3542
    %v3721 = vpop.f32.mrb[0].mxu0
    %v3722 = vadd.f32 %v3581, %v3721
    %v3723 = vpop.f32.mrb[0].mxu0
    %v3724 = vpop.f32.mrb[0].mxu0
    %v3725 = vadd.f32 %v3581, %v3724
    %v3726 = vpop.f32.mrb[0].mxu0
    %3727 = vdwg.mxu0
    %3728 = vst [vmem:[#allocation11] sm:$0xff] %v3714
    %3729 = vst [vmem:[#allocation11 + $0x8] sm:$0xff] %v3717
    %3730 = vst [vmem:[#allocation11 + $0x10] sm:$0xff] %v3722
    %3731 = vst [vmem:[#allocation11 + $0x18] sm:$0xff] %v3725
    // Predicated region
    $region58: #{tpu_custom_call.1} parent=1 // pred_check
      _
    $region59: #{tpu_custom_call.1} parent=1 // pred_check_branch
      %3733 = sbr.rel (0) target = $region61
    $region60: #{tpu_custom_call.1} parent=1 // pred_region
      %s3735 = ssub.s32 512, 512
      %3736 = vsyncadd [#allocation4], %s3735
      %s3737 = sshll.u32 [#allocation11], 4
      %s3738 = int_to_ptr.vmem [resolvable:$true] %s3737
      %3743 = dma.vmem_to_hbm [thread:$0]  %s3738, 512, %s9, [#allocation4], 128, 128, 8
    $region61: #{tpu_custom_call.1} parent=1 // pred_fallthru
      _
    // Predicated region
    $region62: #{tpu_custom_call.1} parent=1 // pred_check
      _
    $region63: #{tpu_custom_call.1} parent=1 // pred_check_branch
      %3745 = sbr.rel (0) target = $region65
    $region64: #{tpu_custom_call.1} parent=1 // pred_region
      %3746 = dma.done [#allocation4], 512
    $region65: #{tpu_custom_call.1} parent=1 // pred_fallthru
      _
    %3747 = vsyncpa [#allocation3], 1
    %3748 = vsyncpa [#allocation6], 1
    %3749 = vsyncpa [#allocation9], 1
    %3750 = vsyncpa [#allocation4], 1

</llo_original>
